<compile_context>
chip_gen: v7x
topology: tpu7x:2x2x1
jax: 0.10.0
libtpu: 0.0.40
codegen_flags: <defaults>
</compile_context>

<pallas_src>
import math
import numpy as np
import jax
import jax.numpy as jnp
from jax import lax
from jax.experimental import pallas as pl
from jax.experimental.pallas import tpu as pltpu

EPS = 1e-5  # BatchNorm1d eps (PyTorch default)


def _bn_relu_lane(z):
    """BatchNorm1d (training mode, fresh module: gamma=1, beta=0, biased variance)
    followed by ReLU, with the batch on the lane axis (axis=1).
    One-pass statistics; rsqrt goes to the EUP slot."""
    m = jnp.mean(z, axis=1, keepdims=True)
    var = jnp.mean(z * z, axis=1, keepdims=True) - m * m
    var = jnp.maximum(var, 0.0)                      # guard one-pass cancellation
    return jnp.maximum((z - m) * lax.rsqrt(var + EPS), 0.0)


def _make_kernel(nsteps, dim, H):
    # Packed-slab column layout (same for per-step and v0 slabs):
    #   [0, dim)            W1^T              (H, dim)
    #   [dim, dim+H)        W2^T              (H, H)
    #   [dim+H, dim+2H)     W3^T (row-padded) (rows_out, H) in rows [0, rows_out)
    #   dim+2H              b1                (H, 1)
    #   dim+2H+1            b2                (H, 1)
    #   dim+2H+2            b3 (row-padded)   (rows_out, 1) in rows [0, rows_out)
    C_W2 = dim
    C_W3 = dim + H
    C_B1 = dim + 2 * H
    C_B2 = C_B1 + 1
    C_B3 = C_B1 + 2

    def kernel(coef_ref,                    # SMEM scalar prefetch, flat (3*nsteps,)
               x0_ref, xi_ref,              # (dim, B), (nsteps, dim, B)
               step_ref, v0s_ref,           # (nsteps, H, COLS), (H, COLS)
               out_ref):                    # (1+dim, B)
        x0 = x0_ref[...]                                           # (dim, B)

        # ---- v0 network: 3 x (Linear -> BN -> ReLU), last layer has 1 output unit ----
        vs = v0s_ref[...]                                          # (H, COLS)
        z = _bn_relu_lane(
            jnp.dot(vs[:, 0:dim], x0, preferred_element_type=jnp.float32)
            + vs[:, C_B1:C_B1 + 1])
        z = _bn_relu_lane(
            jnp.dot(vs[:, C_W2:C_W2 + H], z, preferred_element_type=jnp.float32)
            + vs[:, C_B2:C_B2 + 1])
        z = (jnp.dot(vs[0:1, C_W3:C_W3 + H], z, preferred_element_type=jnp.float32)
             + vs[0:1, C_B3:C_B3 + 1])
        v0 = _bn_relu_lane(z)                                      # (1, B)

        def step(i, carry):
            v, x = carry
            s = step_ref[i]                                        # (H, COLS)
            c_f = coef_ref[i]                                      # lambda * h
            c_noise = coef_ref[nsteps + i]                         # sigma * sqrt(h)
            c_drift = coef_ref[2 * nsteps + i]                     # sqrt(lambda) * h

            # gradient network: Linear->BN->ReLU, Linear->BN->ReLU, Linear
            z = _bn_relu_lane(
                jnp.dot(s[:, 0:dim], x, preferred_element_type=jnp.float32)
                + s[:, C_B1:C_B1 + 1])
            z = _bn_relu_lane(
                jnp.dot(s[:, C_W2:C_W2 + H], z, preferred_element_type=jnp.float32)
                + s[:, C_B2:C_B2 + 1])
            grad = (jnp.dot(s[0:dim, C_W3:C_W3 + H], z,
                            preferred_element_type=jnp.float32)
                    + s[0:dim, C_B3:C_B3 + 1])                     # (dim, B)

            noise = c_noise * xi_ref[i]                            # sigma*sqrt(h)*xi
            f_h = c_f * jnp.sum(grad * grad, axis=0, keepdims=True)   # lambda*||grad||^2*h
            diag = jnp.sum(grad * noise, axis=0, keepdims=True)       # diag(grad @ noise^T)

            v = v - f_h + diag
            x = x - c_drift * grad + noise                         # x + alpha*h + noise
            return (v, x)

        v, x = lax.fori_loop(0, nsteps, step, (v0, x0), unroll=True)

        # Single lane-dense output buffer, written once at the end.
        out_ref[0:1, :] = v
        out_ref[1:1 + dim, :] = x

    return kernel


def net_stacked_forward(x0, xi, timegrid, params, *, lambda_, sigma):
    (w1, b1, w2, b2, w3, b3, vw1, vb1, vw2, vb2, vw3, vb3) = params
    batch, dim = x0.shape
    T = int(timegrid.shape[0])
    nsteps = T - 1
    H = dim + 10
    COLS = dim + 2 * H + 3

    # ----- host/XLA-side layout plumbing: batch -> lane axis, weights pre-transposed,
    #       per-step tensors packed into one slab, v0 tensors into another -----
    x0_t = jnp.transpose(x0)                                 # (dim, batch)
    xi_t = jnp.transpose(xi, (0, 2, 1))                      # (nsteps, dim, batch)

    def pack(wa, ba, wb, bb, wc, bc, rows_out):
        wat = jnp.swapaxes(wa, -1, -2)                       # (..., H, dim)
        wbt = jnp.swapaxes(wb, -1, -2)                       # (..., H, H)
        wct = jnp.swapaxes(wc, -1, -2)                       # (..., rows_out, H)
        bat = jnp.swapaxes(ba, -1, -2)                       # (..., H, 1)
        bbt = jnp.swapaxes(bb, -1, -2)
        bct = jnp.swapaxes(bc, -1, -2)                       # (..., rows_out, 1)
        pad = [(0, 0)] * (wct.ndim - 2) + [(0, H - rows_out), (0, 0)]
        wct = jnp.pad(wct, pad)
        bct = jnp.pad(bct, pad)
        return jnp.concatenate([wat, wbt, wct, bat, bbt, bct], axis=-1)

    step_slab = pack(w1, b1, w2, b2, w3, b3, dim).astype(jnp.float32)   # (nsteps, H, COLS)
    v0_slab = pack(vw1, vb1, vw2, vb2, vw3, vb3, 1).astype(jnp.float32)  # (H, COLS)

    h_arr = (timegrid[1:] - timegrid[:-1]).astype(jnp.float32)
    sh_arr = jnp.sqrt(h_arr)
    coef = jnp.concatenate([lambda_ * h_arr,                 # f * h   coefficient
                            sigma * sh_arr,                  # noise coefficient
                            math.sqrt(lambda_) * h_arr])     # drift coefficient
    coef = coef.astype(jnp.float32)                          # flat (3*nsteps,)

    grid_spec = pltpu.PrefetchScalarGridSpec(
        num_scalar_prefetch=1,
        grid=(1,),
        in_specs=[
            pl.BlockSpec((dim, batch), lambda i, c: (0, 0)),             # x0^T
            pl.BlockSpec((nsteps, dim, batch), lambda i, c: (0, 0, 0)),  # xi^T
            pl.BlockSpec((nsteps, H, COLS), lambda i, c: (0, 0, 0)),     # per-step slab
            pl.BlockSpec((H, COLS), lambda i, c: (0, 0)),                # v0 slab
        ],
        out_specs=pl.BlockSpec((1 + dim, batch), lambda i, c: (0, 0)),
    )

    out = pl.pallas_call(
        _make_kernel(nsteps, dim, H),
        grid_spec=grid_spec,
        out_shape=jax.ShapeDtypeStruct((1 + dim, batch), jnp.float32),
        compiler_params=pltpu.CompilerParams(dimension_semantics=("arbitrary",)),
    )(coef, x0_t, xi_t, step_slab, v0_slab)

    v = jnp.transpose(out[0:1, :])        # (batch, 1)
    x_out = jnp.transpose(out[1:, :])     # (batch, dim)
    return v, x_out


# ------------------------- pure-JAX reference (for checking) -------------------------
def _bn_relu_ref(z):
    m = jnp.mean(z, axis=0, keepdims=True)
    v = jnp.mean((z - m) * (z - m), axis=0, keepdims=True)
    zn = (z - m) / jnp.sqrt(v + EPS)
    return jnp.maximum(zn, 0.0)


def _mm(a, b):
    return jnp.dot(a, b, precision=lax.Precision.HIGHEST)


def reference_forward(x0, xi, timegrid, params, *, lambda_, sigma):
    (w1, b1, w2, b2, w3, b3, vw1, vb1, vw2, vb2, vw3, vb3) = params
    x = x0
    v = None
    T = timegrid.shape[0]
    for i in range(T - 1):
        h = timegrid[i + 1] - timegrid[i]
        sh = jnp.sqrt(h)
        z = _bn_relu_ref(_mm(x, w1[i]) + b1[i])
        z = _bn_relu_ref(_mm(z, w2[i]) + b2[i])
        grad = _mm(z, w3[i]) + b3[i]
        alpha = -math.sqrt(lambda_) * grad
        f = jnp.sum(alpha * alpha, axis=1, keepdims=True)
        diag = jnp.sum(grad * (sigma * sh * xi[i]), axis=1, keepdims=True)
        if i == 0:
            z0 = _bn_relu_ref(_mm(x0, vw1) + vb1)
            z0 = _bn_relu_ref(_mm(z0, vw2) + vb2)
            v0 = _bn_relu_ref(_mm(z0, vw3) + vb3)
            v = v0 - f * h + diag
        else:
            v = v - f * h + diag
        x = x + alpha * h + sigma * sh * xi[i]
    return v, x


# --------------------------------- parameter init ------------------------------------
def init_params(key, dim, nsteps):
    H = dim + 10

    def linear(key, nin, nout, stacked=False):
        kw, kb = jax.random.split(key)
        bound = 1.0 / math.sqrt(nin)
        shape_w = (nsteps, nin, nout) if stacked else (nin, nout)
        shape_b = (nsteps, 1, nout) if stacked else (1, nout)
        w = jax.random.uniform(kw, shape_w, jnp.float32, -bound, bound)
        b = jax.random.uniform(kb, shape_b, jnp.float32, -bound, bound)
        return w, b

    keys = jax.random.split(key, 6)
    w1, b1 = linear(keys[0], dim, H, stacked=True)
    w2, b2 = linear(keys[1], H, H, stacked=True)
    w3, b3 = linear(keys[2], H, dim, stacked=True)
    vw1, vb1 = linear(keys[3], dim, H)
    vw2, vb2 = linear(keys[4], H, H)
    vw3, vb3 = linear(keys[5], H, 1)
    # BatchNorm gamma/beta use PyTorch default init (1, 0) -> folded as identity in BN.
    return (w1, b1, w2, b2, w3, b3, vw1, vb1, vw2, vb2, vw3, vb3)


if __name__ == "__main__":
    dim = 4
    batch = 256          # scaled per perf review (>=256 Monte-Carlo paths per call)
    T = 6                # len(timegrid) -> 5 timesteps
    lambda_ = 1.0
    sigma = 1.0

    timegrid = jnp.linspace(0.0, 1.0, T).astype(jnp.float32)

    key = jax.random.PRNGKey(0)
    kp, kx, kxi = jax.random.split(key, 3)
    params = init_params(kp, dim, T - 1)
    x0 = jax.random.normal(kx, (batch, dim), jnp.float32)
    # TODO(synk): torch.randn noise of the reference forward is supplied deterministically as input.
    xi = jax.random.normal(kxi, (T - 1, batch, dim), jnp.float32)

    v, x_out = net_stacked_forward(x0, xi, timegrid, params, lambda_=lambda_, sigma=sigma)
    jax.block_until_ready((v, x_out))

    v_ref, x_ref = reference_forward(x0, xi, timegrid, params, lambda_=lambda_, sigma=sigma)
    np.testing.assert_allclose(np.asarray(v), np.asarray(v_ref), rtol=1e-3, atol=1e-4)
    np.testing.assert_allclose(np.asarray(x_out), np.asarray(x_ref), rtol=1e-3, atol=1e-4)

    print("KERNEL_OK")
</pallas_src>

<mosaic_0001>
module attributes {stable_mosaic.version = 11 : i64} {
  func.func @kernel(%arg0: i32, %arg1: memref<15xf32, #tpu.memory_space<smem>>, %arg2: memref<4x256xf32, #tpu.memory_space<vmem>>, %arg3: memref<5x4x256xf32, #tpu.memory_space<vmem>>, %arg4: memref<5x14x35xf32, #tpu.memory_space<vmem>>, %arg5: memref<14x35xf32, #tpu.memory_space<vmem>>, %arg6: memref<5x256xf32, #tpu.memory_space<vmem>>) attributes {dimension_semantics = [#tpu.dimension_semantics<arbitrary>], iteration_bounds = array<i64: 1>, scalar_prefetch = 1 : i64, scratch_operands = 0 : i64, tpu.core_type = #tpu.core_type<tc>, window_params = [{pipeline_mode = #tpu.pipeline_mode<synchronous>, transform_indices = @transform_0, window_bounds = array<i64: 4, 256>}, {pipeline_mode = #tpu.pipeline_mode<synchronous>, transform_indices = @transform_1, window_bounds = array<i64: 5, 4, 256>}, {pipeline_mode = #tpu.pipeline_mode<synchronous>, transform_indices = @transform_2, window_bounds = array<i64: 5, 14, 35>}, {pipeline_mode = #tpu.pipeline_mode<synchronous>, transform_indices = @transform_3, window_bounds = array<i64: 14, 35>}, {pipeline_mode = #tpu.pipeline_mode<synchronous>, transform_indices = @transform_4, window_bounds = array<i64: 5, 256>}]} {
    %c0 = arith.constant 0 : index
    %c0_0 = arith.constant 0 : index
    %0 = vector.load %arg2[%c0, %c0_0] : memref<4x256xf32, #tpu.memory_space<vmem>>, vector<4x256xf32>
    %c0_1 = arith.constant 0 : index
    %c0_2 = arith.constant 0 : index
    %1 = vector.load %arg5[%c0_1, %c0_2] : memref<14x35xf32, #tpu.memory_space<vmem>>, vector<14x35xf32>
    %2 = vector.extract_strided_slice %1 {offsets = [0, 0], sizes = [14, 4], strides = [1, 1]} : vector<14x35xf32> to vector<14x4xf32>
    %cst = arith.constant dense<0.000000e+00> : vector<14x256xf32>
    %3 = tpu.matmul %2, %0, %cst {dimension_numbers = #tpu.dot_dimension_numbers<[1], [0], [0], [1], [0, 0, 1, 1], [], []>} : vector<14x4xf32>, vector<4x256xf32>, vector<14x256xf32> -> vector<14x256xf32>
    %4 = vector.extract_strided_slice %1 {offsets = [0, 32], sizes = [14, 1], strides = [1, 1]} : vector<14x35xf32> to vector<14x1xf32>
    %5 = vector.broadcast %4 : vector<14x1xf32> to vector<14x256xf32>
    %6 = arith.addf %3, %5 : vector<14x256xf32>
    %cst_3 = arith.constant dense<0.000000e+00> : vector<14xf32>
    %7 = vector.multi_reduction <add>, %6, %cst_3 [1] : vector<14x256xf32> to vector<14xf32>
    %8 = vector.shape_cast %7 : vector<14xf32> to vector<14x1xf32>
    %cst_4 = arith.constant 2.560000e+02 : f32
    %9 = vector.broadcast %cst_4 : f32 to vector<14x1xf32>
    %10 = arith.divf %8, %9 : vector<14x1xf32>
    %11 = arith.mulf %6, %6 : vector<14x256xf32>
    %cst_5 = arith.constant dense<0.000000e+00> : vector<14xf32>
    %12 = vector.multi_reduction <add>, %11, %cst_5 [1] : vector<14x256xf32> to vector<14xf32>
    %13 = vector.shape_cast %12 : vector<14xf32> to vector<14x1xf32>
    %cst_6 = arith.constant 2.560000e+02 : f32
    %14 = vector.broadcast %cst_6 : f32 to vector<14x1xf32>
    %15 = arith.divf %13, %14 : vector<14x1xf32>
    %16 = arith.mulf %10, %10 : vector<14x1xf32>
    %17 = arith.subf %15, %16 : vector<14x1xf32>
    %cst_7 = arith.constant 0.000000e+00 : f32
    %18 = vector.broadcast %cst_7 : f32 to vector<14x1xf32>
    %19 = arith.maximumf %17, %18 : vector<14x1xf32>
    %20 = vector.broadcast %10 : vector<14x1xf32> to vector<14x256xf32>
    %21 = arith.subf %6, %20 : vector<14x256xf32>
    %cst_8 = arith.constant 9.99999974E-6 : f32
    %22 = vector.broadcast %cst_8 : f32 to vector<14x1xf32>
    %23 = arith.addf %19, %22 : vector<14x1xf32>
    %24 = math.rsqrt %23 : vector<14x1xf32>
    %25 = vector.broadcast %24 : vector<14x1xf32> to vector<14x256xf32>
    %26 = arith.mulf %21, %25 : vector<14x256xf32>
    %cst_9 = arith.constant 0.000000e+00 : f32
    %27 = vector.broadcast %cst_9 : f32 to vector<14x256xf32>
    %28 = arith.maximumf %26, %27 : vector<14x256xf32>
    %29 = vector.extract_strided_slice %1 {offsets = [0, 4], sizes = [14, 14], strides = [1, 1]} : vector<14x35xf32> to vector<14x14xf32>
    %cst_10 = arith.constant dense<0.000000e+00> : vector<14x256xf32>
    %30 = tpu.matmul %29, %28, %cst_10 {dimension_numbers = #tpu.dot_dimension_numbers<[1], [0], [0], [1], [0, 0, 1, 1], [], []>} : vector<14x14xf32>, vector<14x256xf32>, vector<14x256xf32> -> vector<14x256xf32>
    %31 = vector.extract_strided_slice %1 {offsets = [0, 33], sizes = [14, 1], strides = [1, 1]} : vector<14x35xf32> to vector<14x1xf32>
    %32 = vector.broadcast %31 : vector<14x1xf32> to vector<14x256xf32>
    %33 = arith.addf %30, %32 : vector<14x256xf32>
    %cst_11 = arith.constant dense<0.000000e+00> : vector<14xf32>
    %34 = vector.multi_reduction <add>, %33, %cst_11 [1] : vector<14x256xf32> to vector<14xf32>
    %35 = vector.shape_cast %34 : vector<14xf32> to vector<14x1xf32>
    %cst_12 = arith.constant 2.560000e+02 : f32
    %36 = vector.broadcast %cst_12 : f32 to vector<14x1xf32>
    %37 = arith.divf %35, %36 : vector<14x1xf32>
    %38 = arith.mulf %33, %33 : vector<14x256xf32>
    %cst_13 = arith.constant dense<0.000000e+00> : vector<14xf32>
    %39 = vector.multi_reduction <add>, %38, %cst_13 [1] : vector<14x256xf32> to vector<14xf32>
    %40 = vector.shape_cast %39 : vector<14xf32> to vector<14x1xf32>
    %cst_14 = arith.constant 2.560000e+02 : f32
    %41 = vector.broadcast %cst_14 : f32 to vector<14x1xf32>
    %42 = arith.divf %40, %41 : vector<14x1xf32>
    %43 = arith.mulf %37, %37 : vector<14x1xf32>
    %44 = arith.subf %42, %43 : vector<14x1xf32>
    %cst_15 = arith.constant 0.000000e+00 : f32
    %45 = vector.broadcast %cst_15 : f32 to vector<14x1xf32>
    %46 = arith.maximumf %44, %45 : vector<14x1xf32>
    %47 = vector.broadcast %37 : vector<14x1xf32> to vector<14x256xf32>
    %48 = arith.subf %33, %47 : vector<14x256xf32>
    %cst_16 = arith.constant 9.99999974E-6 : f32
    %49 = vector.broadcast %cst_16 : f32 to vector<14x1xf32>
    %50 = arith.addf %46, %49 : vector<14x1xf32>
    %51 = math.rsqrt %50 : vector<14x1xf32>
    %52 = vector.broadcast %51 : vector<14x1xf32> to vector<14x256xf32>
    %53 = arith.mulf %48, %52 : vector<14x256xf32>
    %cst_17 = arith.constant 0.000000e+00 : f32
    %54 = vector.broadcast %cst_17 : f32 to vector<14x256xf32>
    %55 = arith.maximumf %53, %54 : vector<14x256xf32>
    %56 = vector.extract_strided_slice %1 {offsets = [0, 18], sizes = [1, 14], strides = [1, 1]} : vector<14x35xf32> to vector<1x14xf32>
    %cst_18 = arith.constant dense<0.000000e+00> : vector<1x256xf32>
    %57 = tpu.matmul %56, %55, %cst_18 {dimension_numbers = #tpu.dot_dimension_numbers<[1], [0], [0], [1], [0, 0, 1, 1], [], []>} : vector<1x14xf32>, vector<14x256xf32>, vector<1x256xf32> -> vector<1x256xf32>
    %58 = vector.extract_strided_slice %1 {offsets = [0, 34], sizes = [1, 1], strides = [1, 1]} : vector<14x35xf32> to vector<1x1xf32>
    %59 = vector.broadcast %58 : vector<1x1xf32> to vector<1x256xf32>
    %60 = arith.addf %57, %59 : vector<1x256xf32>
    %cst_19 = arith.constant dense<0.000000e+00> : vector<1xf32>
    %61 = vector.multi_reduction <add>, %60, %cst_19 [1] : vector<1x256xf32> to vector<1xf32>
    %62 = vector.shape_cast %61 : vector<1xf32> to vector<1x1xf32>
    %cst_20 = arith.constant 2.560000e+02 : f32
    %63 = vector.broadcast %cst_20 : f32 to vector<1x1xf32>
    %64 = arith.divf %62, %63 : vector<1x1xf32>
    %65 = arith.mulf %60, %60 : vector<1x256xf32>
    %cst_21 = arith.constant dense<0.000000e+00> : vector<1xf32>
    %66 = vector.multi_reduction <add>, %65, %cst_21 [1] : vector<1x256xf32> to vector<1xf32>
    %67 = vector.shape_cast %66 : vector<1xf32> to vector<1x1xf32>
    %cst_22 = arith.constant 2.560000e+02 : f32
    %68 = vector.broadcast %cst_22 : f32 to vector<1x1xf32>
    %69 = arith.divf %67, %68 : vector<1x1xf32>
    %70 = arith.mulf %64, %64 : vector<1x1xf32>
    %71 = arith.subf %69, %70 : vector<1x1xf32>
    %cst_23 = arith.constant 0.000000e+00 : f32
    %72 = vector.broadcast %cst_23 : f32 to vector<1x1xf32>
    %73 = arith.maximumf %71, %72 : vector<1x1xf32>
    %74 = vector.broadcast %64 : vector<1x1xf32> to vector<1x256xf32>
    %75 = arith.subf %60, %74 : vector<1x256xf32>
    %cst_24 = arith.constant 9.99999974E-6 : f32
    %76 = vector.broadcast %cst_24 : f32 to vector<1x1xf32>
    %77 = arith.addf %73, %76 : vector<1x1xf32>
    %78 = math.rsqrt %77 : vector<1x1xf32>
    %79 = vector.broadcast %78 : vector<1x1xf32> to vector<1x256xf32>
    %80 = arith.mulf %75, %79 : vector<1x256xf32>
    %cst_25 = arith.constant 0.000000e+00 : f32
    %81 = vector.broadcast %cst_25 : f32 to vector<1x256xf32>
    %82 = arith.maximumf %80, %81 : vector<1x256xf32>
    %c0_i32 = arith.constant 0 : i32
    %83 = arith.index_cast %c0_i32 : i32 to index
    %c0_26 = arith.constant 0 : index
    %c0_27 = arith.constant 0 : index
    %84 = vector.load %arg4[%83, %c0_26, %c0_27] : memref<5x14x35xf32, #tpu.memory_space<vmem>>, vector<1x14x35xf32>
    %85 = vector.shape_cast %84 : vector<1x14x35xf32> to vector<14x35xf32>
    %86 = arith.index_cast %c0_i32 : i32 to index
    %87 = memref.load %arg1[%86] : memref<15xf32, #tpu.memory_space<smem>>
    %c5_i32 = arith.constant 5 : i32
    %88 = arith.addi %c5_i32, %c0_i32 : i32
    %89 = arith.index_cast %88 : i32 to index
    %90 = memref.load %arg1[%89] : memref<15xf32, #tpu.memory_space<smem>>
    %c10_i32 = arith.constant 10 : i32
    %91 = arith.addi %c10_i32, %c0_i32 : i32
    %92 = arith.index_cast %91 : i32 to index
    %93 = memref.load %arg1[%92] : memref<15xf32, #tpu.memory_space<smem>>
    %94 = vector.extract_strided_slice %85 {offsets = [0, 0], sizes = [14, 4], strides = [1, 1]} : vector<14x35xf32> to vector<14x4xf32>
    %cst_28 = arith.constant dense<0.000000e+00> : vector<14x256xf32>
    %95 = tpu.matmul %94, %0, %cst_28 {dimension_numbers = #tpu.dot_dimension_numbers<[1], [0], [0], [1], [0, 0, 1, 1], [], []>} : vector<14x4xf32>, vector<4x256xf32>, vector<14x256xf32> -> vector<14x256xf32>
    %96 = vector.extract_strided_slice %85 {offsets = [0, 32], sizes = [14, 1], strides = [1, 1]} : vector<14x35xf32> to vector<14x1xf32>
    %97 = vector.broadcast %96 : vector<14x1xf32> to vector<14x256xf32>
    %98 = arith.addf %95, %97 : vector<14x256xf32>
    %cst_29 = arith.constant dense<0.000000e+00> : vector<14xf32>
    %99 = vector.multi_reduction <add>, %98, %cst_29 [1] : vector<14x256xf32> to vector<14xf32>
    %100 = vector.shape_cast %99 : vector<14xf32> to vector<14x1xf32>
    %cst_30 = arith.constant 2.560000e+02 : f32
    %101 = vector.broadcast %cst_30 : f32 to vector<14x1xf32>
    %102 = arith.divf %100, %101 : vector<14x1xf32>
    %103 = arith.mulf %98, %98 : vector<14x256xf32>
    %cst_31 = arith.constant dense<0.000000e+00> : vector<14xf32>
    %104 = vector.multi_reduction <add>, %103, %cst_31 [1] : vector<14x256xf32> to vector<14xf32>
    %105 = vector.shape_cast %104 : vector<14xf32> to vector<14x1xf32>
    %cst_32 = arith.constant 2.560000e+02 : f32
    %106 = vector.broadcast %cst_32 : f32 to vector<14x1xf32>
    %107 = arith.divf %105, %106 : vector<14x1xf32>
    %108 = arith.mulf %102, %102 : vector<14x1xf32>
    %109 = arith.subf %107, %108 : vector<14x1xf32>
    %cst_33 = arith.constant 0.000000e+00 : f32
    %110 = vector.broadcast %cst_33 : f32 to vector<14x1xf32>
    %111 = arith.maximumf %109, %110 : vector<14x1xf32>
    %112 = vector.broadcast %102 : vector<14x1xf32> to vector<14x256xf32>
    %113 = arith.subf %98, %112 : vector<14x256xf32>
    %cst_34 = arith.constant 9.99999974E-6 : f32
    %114 = vector.broadcast %cst_34 : f32 to vector<14x1xf32>
    %115 = arith.addf %111, %114 : vector<14x1xf32>
    %116 = math.rsqrt %115 : vector<14x1xf32>
    %117 = vector.broadcast %116 : vector<14x1xf32> to vector<14x256xf32>
    %118 = arith.mulf %113, %117 : vector<14x256xf32>
    %cst_35 = arith.constant 0.000000e+00 : f32
    %119 = vector.broadcast %cst_35 : f32 to vector<14x256xf32>
    %120 = arith.maximumf %118, %119 : vector<14x256xf32>
    %121 = vector.extract_strided_slice %85 {offsets = [0, 4], sizes = [14, 14], strides = [1, 1]} : vector<14x35xf32> to vector<14x14xf32>
    %cst_36 = arith.constant dense<0.000000e+00> : vector<14x256xf32>
    %122 = tpu.matmul %121, %120, %cst_36 {dimension_numbers = #tpu.dot_dimension_numbers<[1], [0], [0], [1], [0, 0, 1, 1], [], []>} : vector<14x14xf32>, vector<14x256xf32>, vector<14x256xf32> -> vector<14x256xf32>
    %123 = vector.extract_strided_slice %85 {offsets = [0, 33], sizes = [14, 1], strides = [1, 1]} : vector<14x35xf32> to vector<14x1xf32>
    %124 = vector.broadcast %123 : vector<14x1xf32> to vector<14x256xf32>
    %125 = arith.addf %122, %124 : vector<14x256xf32>
    %cst_37 = arith.constant dense<0.000000e+00> : vector<14xf32>
    %126 = vector.multi_reduction <add>, %125, %cst_37 [1] : vector<14x256xf32> to vector<14xf32>
    %127 = vector.shape_cast %126 : vector<14xf32> to vector<14x1xf32>
    %cst_38 = arith.constant 2.560000e+02 : f32
    %128 = vector.broadcast %cst_38 : f32 to vector<14x1xf32>
    %129 = arith.divf %127, %128 : vector<14x1xf32>
    %130 = arith.mulf %125, %125 : vector<14x256xf32>
    %cst_39 = arith.constant dense<0.000000e+00> : vector<14xf32>
    %131 = vector.multi_reduction <add>, %130, %cst_39 [1] : vector<14x256xf32> to vector<14xf32>
    %132 = vector.shape_cast %131 : vector<14xf32> to vector<14x1xf32>
    %cst_40 = arith.constant 2.560000e+02 : f32
    %133 = vector.broadcast %cst_40 : f32 to vector<14x1xf32>
    %134 = arith.divf %132, %133 : vector<14x1xf32>
    %135 = arith.mulf %129, %129 : vector<14x1xf32>
    %136 = arith.subf %134, %135 : vector<14x1xf32>
    %cst_41 = arith.constant 0.000000e+00 : f32
    %137 = vector.broadcast %cst_41 : f32 to vector<14x1xf32>
    %138 = arith.maximumf %136, %137 : vector<14x1xf32>
    %139 = vector.broadcast %129 : vector<14x1xf32> to vector<14x256xf32>
    %140 = arith.subf %125, %139 : vector<14x256xf32>
    %cst_42 = arith.constant 9.99999974E-6 : f32
    %141 = vector.broadcast %cst_42 : f32 to vector<14x1xf32>
    %142 = arith.addf %138, %141 : vector<14x1xf32>
    %143 = math.rsqrt %142 : vector<14x1xf32>
    %144 = vector.broadcast %143 : vector<14x1xf32> to vector<14x256xf32>
    %145 = arith.mulf %140, %144 : vector<14x256xf32>
    %cst_43 = arith.constant 0.000000e+00 : f32
    %146 = vector.broadcast %cst_43 : f32 to vector<14x256xf32>
    %147 = arith.maximumf %145, %146 : vector<14x256xf32>
    %148 = vector.extract_strided_slice %85 {offsets = [0, 18], sizes = [4, 14], strides = [1, 1]} : vector<14x35xf32> to vector<4x14xf32>
    %cst_44 = arith.constant dense<0.000000e+00> : vector<4x256xf32>
    %149 = tpu.matmul %148, %147, %cst_44 {dimension_numbers = #tpu.dot_dimension_numbers<[1], [0], [0], [1], [0, 0, 1, 1], [], []>} : vector<4x14xf32>, vector<14x256xf32>, vector<4x256xf32> -> vector<4x256xf32>
    %150 = vector.extract_strided_slice %85 {offsets = [0, 34], sizes = [4, 1], strides = [1, 1]} : vector<14x35xf32> to vector<4x1xf32>
    %151 = vector.broadcast %150 : vector<4x1xf32> to vector<4x256xf32>
    %152 = arith.addf %149, %151 : vector<4x256xf32>
    %153 = arith.index_cast %c0_i32 : i32 to index
    %c0_45 = arith.constant 0 : index
    %c0_46 = arith.constant 0 : index
    %154 = vector.load %arg3[%153, %c0_45, %c0_46] : memref<5x4x256xf32, #tpu.memory_space<vmem>>, vector<1x4x256xf32>
    %155 = vector.shape_cast %154 : vector<1x4x256xf32> to vector<4x256xf32>
    %156 = vector.broadcast %90 : f32 to vector<4x256xf32>
    %157 = arith.mulf %156, %155 : vector<4x256xf32>
    %158 = arith.mulf %152, %152 : vector<4x256xf32>
    %cst_47 = arith.constant dense<0.000000e+00> : vector<256xf32>
    %159 = vector.multi_reduction <add>, %158, %cst_47 [0] : vector<4x256xf32> to vector<256xf32>
    %160 = vector.shape_cast %159 : vector<256xf32> to vector<1x256xf32>
    %161 = vector.broadcast %87 : f32 to vector<1x256xf32>
    %162 = arith.mulf %161, %160 : vector<1x256xf32>
    %163 = arith.mulf %152, %157 : vector<4x256xf32>
    %cst_48 = arith.constant dense<0.000000e+00> : vector<256xf32>
    %164 = vector.multi_reduction <add>, %163, %cst_48 [0] : vector<4x256xf32> to vector<256xf32>
    %165 = vector.shape_cast %164 : vector<256xf32> to vector<1x256xf32>
    %166 = arith.subf %82, %162 : vector<1x256xf32>
    %167 = arith.addf %166, %165 : vector<1x256xf32>
    %168 = vector.broadcast %93 : f32 to vector<4x256xf32>
    %169 = arith.mulf %168, %152 : vector<4x256xf32>
    %170 = arith.subf %0, %169 : vector<4x256xf32>
    %171 = arith.addf %170, %157 : vector<4x256xf32>
    %c1_i32 = arith.constant 1 : i32
    %172 = arith.index_cast %c1_i32 : i32 to index
    %c0_49 = arith.constant 0 : index
    %c0_50 = arith.constant 0 : index
    %173 = vector.load %arg4[%172, %c0_49, %c0_50] : memref<5x14x35xf32, #tpu.memory_space<vmem>>, vector<1x14x35xf32>
    %174 = vector.shape_cast %173 : vector<1x14x35xf32> to vector<14x35xf32>
    %175 = arith.index_cast %c1_i32 : i32 to index
    %176 = memref.load %arg1[%175] : memref<15xf32, #tpu.memory_space<smem>>
    %c5_i32_51 = arith.constant 5 : i32
    %177 = arith.addi %c5_i32_51, %c1_i32 : i32
    %178 = arith.index_cast %177 : i32 to index
    %179 = memref.load %arg1[%178] : memref<15xf32, #tpu.memory_space<smem>>
    %c10_i32_52 = arith.constant 10 : i32
    %180 = arith.addi %c10_i32_52, %c1_i32 : i32
    %181 = arith.index_cast %180 : i32 to index
    %182 = memref.load %arg1[%181] : memref<15xf32, #tpu.memory_space<smem>>
    %183 = vector.extract_strided_slice %174 {offsets = [0, 0], sizes = [14, 4], strides = [1, 1]} : vector<14x35xf32> to vector<14x4xf32>
    %cst_53 = arith.constant dense<0.000000e+00> : vector<14x256xf32>
    %184 = tpu.matmul %183, %171, %cst_53 {dimension_numbers = #tpu.dot_dimension_numbers<[1], [0], [0], [1], [0, 0, 1, 1], [], []>} : vector<14x4xf32>, vector<4x256xf32>, vector<14x256xf32> -> vector<14x256xf32>
    %185 = vector.extract_strided_slice %174 {offsets = [0, 32], sizes = [14, 1], strides = [1, 1]} : vector<14x35xf32> to vector<14x1xf32>
    %186 = vector.broadcast %185 : vector<14x1xf32> to vector<14x256xf32>
    %187 = arith.addf %184, %186 : vector<14x256xf32>
    %cst_54 = arith.constant dense<0.000000e+00> : vector<14xf32>
    %188 = vector.multi_reduction <add>, %187, %cst_54 [1] : vector<14x256xf32> to vector<14xf32>
    %189 = vector.shape_cast %188 : vector<14xf32> to vector<14x1xf32>
    %cst_55 = arith.constant 2.560000e+02 : f32
    %190 = vector.broadcast %cst_55 : f32 to vector<14x1xf32>
    %191 = arith.divf %189, %190 : vector<14x1xf32>
    %192 = arith.mulf %187, %187 : vector<14x256xf32>
    %cst_56 = arith.constant dense<0.000000e+00> : vector<14xf32>
    %193 = vector.multi_reduction <add>, %192, %cst_56 [1] : vector<14x256xf32> to vector<14xf32>
    %194 = vector.shape_cast %193 : vector<14xf32> to vector<14x1xf32>
    %cst_57 = arith.constant 2.560000e+02 : f32
    %195 = vector.broadcast %cst_57 : f32 to vector<14x1xf32>
    %196 = arith.divf %194, %195 : vector<14x1xf32>
    %197 = arith.mulf %191, %191 : vector<14x1xf32>
    %198 = arith.subf %196, %197 : vector<14x1xf32>
    %cst_58 = arith.constant 0.000000e+00 : f32
    %199 = vector.broadcast %cst_58 : f32 to vector<14x1xf32>
    %200 = arith.maximumf %198, %199 : vector<14x1xf32>
    %201 = vector.broadcast %191 : vector<14x1xf32> to vector<14x256xf32>
    %202 = arith.subf %187, %201 : vector<14x256xf32>
    %cst_59 = arith.constant 9.99999974E-6 : f32
    %203 = vector.broadcast %cst_59 : f32 to vector<14x1xf32>
    %204 = arith.addf %200, %203 : vector<14x1xf32>
    %205 = math.rsqrt %204 : vector<14x1xf32>
    %206 = vector.broadcast %205 : vector<14x1xf32> to vector<14x256xf32>
    %207 = arith.mulf %202, %206 : vector<14x256xf32>
    %cst_60 = arith.constant 0.000000e+00 : f32
    %208 = vector.broadcast %cst_60 : f32 to vector<14x256xf32>
    %209 = arith.maximumf %207, %208 : vector<14x256xf32>
    %210 = vector.extract_strided_slice %174 {offsets = [0, 4], sizes = [14, 14], strides = [1, 1]} : vector<14x35xf32> to vector<14x14xf32>
    %cst_61 = arith.constant dense<0.000000e+00> : vector<14x256xf32>
    %211 = tpu.matmul %210, %209, %cst_61 {dimension_numbers = #tpu.dot_dimension_numbers<[1], [0], [0], [1], [0, 0, 1, 1], [], []>} : vector<14x14xf32>, vector<14x256xf32>, vector<14x256xf32> -> vector<14x256xf32>
    %212 = vector.extract_strided_slice %174 {offsets = [0, 33], sizes = [14, 1], strides = [1, 1]} : vector<14x35xf32> to vector<14x1xf32>
    %213 = vector.broadcast %212 : vector<14x1xf32> to vector<14x256xf32>
    %214 = arith.addf %211, %213 : vector<14x256xf32>
    %cst_62 = arith.constant dense<0.000000e+00> : vector<14xf32>
    %215 = vector.multi_reduction <add>, %214, %cst_62 [1] : vector<14x256xf32> to vector<14xf32>
    %216 = vector.shape_cast %215 : vector<14xf32> to vector<14x1xf32>
    %cst_63 = arith.constant 2.560000e+02 : f32
    %217 = vector.broadcast %cst_63 : f32 to vector<14x1xf32>
    %218 = arith.divf %216, %217 : vector<14x1xf32>
    %219 = arith.mulf %214, %214 : vector<14x256xf32>
    %cst_64 = arith.constant dense<0.000000e+00> : vector<14xf32>
    %220 = vector.multi_reduction <add>, %219, %cst_64 [1] : vector<14x256xf32> to vector<14xf32>
    %221 = vector.shape_cast %220 : vector<14xf32> to vector<14x1xf32>
    %cst_65 = arith.constant 2.560000e+02 : f32
    %222 = vector.broadcast %cst_65 : f32 to vector<14x1xf32>
    %223 = arith.divf %221, %222 : vector<14x1xf32>
    %224 = arith.mulf %218, %218 : vector<14x1xf32>
    %225 = arith.subf %223, %224 : vector<14x1xf32>
    %cst_66 = arith.constant 0.000000e+00 : f32
    %226 = vector.broadcast %cst_66 : f32 to vector<14x1xf32>
    %227 = arith.maximumf %225, %226 : vector<14x1xf32>
    %228 = vector.broadcast %218 : vector<14x1xf32> to vector<14x256xf32>
    %229 = arith.subf %214, %228 : vector<14x256xf32>
    %cst_67 = arith.constant 9.99999974E-6 : f32
    %230 = vector.broadcast %cst_67 : f32 to vector<14x1xf32>
    %231 = arith.addf %227, %230 : vector<14x1xf32>
    %232 = math.rsqrt %231 : vector<14x1xf32>
    %233 = vector.broadcast %232 : vector<14x1xf32> to vector<14x256xf32>
    %234 = arith.mulf %229, %233 : vector<14x256xf32>
    %cst_68 = arith.constant 0.000000e+00 : f32
    %235 = vector.broadcast %cst_68 : f32 to vector<14x256xf32>
    %236 = arith.maximumf %234, %235 : vector<14x256xf32>
    %237 = vector.extract_strided_slice %174 {offsets = [0, 18], sizes = [4, 14], strides = [1, 1]} : vector<14x35xf32> to vector<4x14xf32>
    %cst_69 = arith.constant dense<0.000000e+00> : vector<4x256xf32>
    %238 = tpu.matmul %237, %236, %cst_69 {dimension_numbers = #tpu.dot_dimension_numbers<[1], [0], [0], [1], [0, 0, 1, 1], [], []>} : vector<4x14xf32>, vector<14x256xf32>, vector<4x256xf32> -> vector<4x256xf32>
    %239 = vector.extract_strided_slice %174 {offsets = [0, 34], sizes = [4, 1], strides = [1, 1]} : vector<14x35xf32> to vector<4x1xf32>
    %240 = vector.broadcast %239 : vector<4x1xf32> to vector<4x256xf32>
    %241 = arith.addf %238, %240 : vector<4x256xf32>
    %242 = arith.index_cast %c1_i32 : i32 to index
    %c0_70 = arith.constant 0 : index
    %c0_71 = arith.constant 0 : index
    %243 = vector.load %arg3[%242, %c0_70, %c0_71] : memref<5x4x256xf32, #tpu.memory_space<vmem>>, vector<1x4x256xf32>
    %244 = vector.shape_cast %243 : vector<1x4x256xf32> to vector<4x256xf32>
    %245 = vector.broadcast %179 : f32 to vector<4x256xf32>
    %246 = arith.mulf %245, %244 : vector<4x256xf32>
    %247 = arith.mulf %241, %241 : vector<4x256xf32>
    %cst_72 = arith.constant dense<0.000000e+00> : vector<256xf32>
    %248 = vector.multi_reduction <add>, %247, %cst_72 [0] : vector<4x256xf32> to vector<256xf32>
    %249 = vector.shape_cast %248 : vector<256xf32> to vector<1x256xf32>
    %250 = vector.broadcast %176 : f32 to vector<1x256xf32>
    %251 = arith.mulf %250, %249 : vector<1x256xf32>
    %252 = arith.mulf %241, %246 : vector<4x256xf32>
    %cst_73 = arith.constant dense<0.000000e+00> : vector<256xf32>
    %253 = vector.multi_reduction <add>, %252, %cst_73 [0] : vector<4x256xf32> to vector<256xf32>
    %254 = vector.shape_cast %253 : vector<256xf32> to vector<1x256xf32>
    %255 = arith.subf %167, %251 : vector<1x256xf32>
    %256 = arith.addf %255, %254 : vector<1x256xf32>
    %257 = vector.broadcast %182 : f32 to vector<4x256xf32>
    %258 = arith.mulf %257, %241 : vector<4x256xf32>
    %259 = arith.subf %171, %258 : vector<4x256xf32>
    %260 = arith.addf %259, %246 : vector<4x256xf32>
    %c2_i32 = arith.constant 2 : i32
    %261 = arith.index_cast %c2_i32 : i32 to index
    %c0_74 = arith.constant 0 : index
    %c0_75 = arith.constant 0 : index
    %262 = vector.load %arg4[%261, %c0_74, %c0_75] : memref<5x14x35xf32, #tpu.memory_space<vmem>>, vector<1x14x35xf32>
    %263 = vector.shape_cast %262 : vector<1x14x35xf32> to vector<14x35xf32>
    %264 = arith.index_cast %c2_i32 : i32 to index
    %265 = memref.load %arg1[%264] : memref<15xf32, #tpu.memory_space<smem>>
    %c5_i32_76 = arith.constant 5 : i32
    %266 = arith.addi %c5_i32_76, %c2_i32 : i32
    %267 = arith.index_cast %266 : i32 to index
    %268 = memref.load %arg1[%267] : memref<15xf32, #tpu.memory_space<smem>>
    %c10_i32_77 = arith.constant 10 : i32
    %269 = arith.addi %c10_i32_77, %c2_i32 : i32
    %270 = arith.index_cast %269 : i32 to index
    %271 = memref.load %arg1[%270] : memref<15xf32, #tpu.memory_space<smem>>
    %272 = vector.extract_strided_slice %263 {offsets = [0, 0], sizes = [14, 4], strides = [1, 1]} : vector<14x35xf32> to vector<14x4xf32>
    %cst_78 = arith.constant dense<0.000000e+00> : vector<14x256xf32>
    %273 = tpu.matmul %272, %260, %cst_78 {dimension_numbers = #tpu.dot_dimension_numbers<[1], [0], [0], [1], [0, 0, 1, 1], [], []>} : vector<14x4xf32>, vector<4x256xf32>, vector<14x256xf32> -> vector<14x256xf32>
    %274 = vector.extract_strided_slice %263 {offsets = [0, 32], sizes = [14, 1], strides = [1, 1]} : vector<14x35xf32> to vector<14x1xf32>
    %275 = vector.broadcast %274 : vector<14x1xf32> to vector<14x256xf32>
    %276 = arith.addf %273, %275 : vector<14x256xf32>
    %cst_79 = arith.constant dense<0.000000e+00> : vector<14xf32>
    %277 = vector.multi_reduction <add>, %276, %cst_79 [1] : vector<14x256xf32> to vector<14xf32>
    %278 = vector.shape_cast %277 : vector<14xf32> to vector<14x1xf32>
    %cst_80 = arith.constant 2.560000e+02 : f32
    %279 = vector.broadcast %cst_80 : f32 to vector<14x1xf32>
    %280 = arith.divf %278, %279 : vector<14x1xf32>
    %281 = arith.mulf %276, %276 : vector<14x256xf32>
    %cst_81 = arith.constant dense<0.000000e+00> : vector<14xf32>
    %282 = vector.multi_reduction <add>, %281, %cst_81 [1] : vector<14x256xf32> to vector<14xf32>
    %283 = vector.shape_cast %282 : vector<14xf32> to vector<14x1xf32>
    %cst_82 = arith.constant 2.560000e+02 : f32
    %284 = vector.broadcast %cst_82 : f32 to vector<14x1xf32>
    %285 = arith.divf %283, %284 : vector<14x1xf32>
    %286 = arith.mulf %280, %280 : vector<14x1xf32>
    %287 = arith.subf %285, %286 : vector<14x1xf32>
    %cst_83 = arith.constant 0.000000e+00 : f32
    %288 = vector.broadcast %cst_83 : f32 to vector<14x1xf32>
    %289 = arith.maximumf %287, %288 : vector<14x1xf32>
    %290 = vector.broadcast %280 : vector<14x1xf32> to vector<14x256xf32>
    %291 = arith.subf %276, %290 : vector<14x256xf32>
    %cst_84 = arith.constant 9.99999974E-6 : f32
    %292 = vector.broadcast %cst_84 : f32 to vector<14x1xf32>
    %293 = arith.addf %289, %292 : vector<14x1xf32>
    %294 = math.rsqrt %293 : vector<14x1xf32>
    %295 = vector.broadcast %294 : vector<14x1xf32> to vector<14x256xf32>
    %296 = arith.mulf %291, %295 : vector<14x256xf32>
    %cst_85 = arith.constant 0.000000e+00 : f32
    %297 = vector.broadcast %cst_85 : f32 to vector<14x256xf32>
    %298 = arith.maximumf %296, %297 : vector<14x256xf32>
    %299 = vector.extract_strided_slice %263 {offsets = [0, 4], sizes = [14, 14], strides = [1, 1]} : vector<14x35xf32> to vector<14x14xf32>
    %cst_86 = arith.constant dense<0.000000e+00> : vector<14x256xf32>
    %300 = tpu.matmul %299, %298, %cst_86 {dimension_numbers = #tpu.dot_dimension_numbers<[1], [0], [0], [1], [0, 0, 1, 1], [], []>} : vector<14x14xf32>, vector<14x256xf32>, vector<14x256xf32> -> vector<14x256xf32>
    %301 = vector.extract_strided_slice %263 {offsets = [0, 33], sizes = [14, 1], strides = [1, 1]} : vector<14x35xf32> to vector<14x1xf32>
    %302 = vector.broadcast %301 : vector<14x1xf32> to vector<14x256xf32>
    %303 = arith.addf %300, %302 : vector<14x256xf32>
    %cst_87 = arith.constant dense<0.000000e+00> : vector<14xf32>
    %304 = vector.multi_reduction <add>, %303, %cst_87 [1] : vector<14x256xf32> to vector<14xf32>
    %305 = vector.shape_cast %304 : vector<14xf32> to vector<14x1xf32>
    %cst_88 = arith.constant 2.560000e+02 : f32
    %306 = vector.broadcast %cst_88 : f32 to vector<14x1xf32>
    %307 = arith.divf %305, %306 : vector<14x1xf32>
    %308 = arith.mulf %303, %303 : vector<14x256xf32>
    %cst_89 = arith.constant dense<0.000000e+00> : vector<14xf32>
    %309 = vector.multi_reduction <add>, %308, %cst_89 [1] : vector<14x256xf32> to vector<14xf32>
    %310 = vector.shape_cast %309 : vector<14xf32> to vector<14x1xf32>
    %cst_90 = arith.constant 2.560000e+02 : f32
    %311 = vector.broadcast %cst_90 : f32 to vector<14x1xf32>
    %312 = arith.divf %310, %311 : vector<14x1xf32>
    %313 = arith.mulf %307, %307 : vector<14x1xf32>
    %314 = arith.subf %312, %313 : vector<14x1xf32>
    %cst_91 = arith.constant 0.000000e+00 : f32
    %315 = vector.broadcast %cst_91 : f32 to vector<14x1xf32>
    %316 = arith.maximumf %314, %315 : vector<14x1xf32>
    %317 = vector.broadcast %307 : vector<14x1xf32> to vector<14x256xf32>
    %318 = arith.subf %303, %317 : vector<14x256xf32>
    %cst_92 = arith.constant 9.99999974E-6 : f32
    %319 = vector.broadcast %cst_92 : f32 to vector<14x1xf32>
    %320 = arith.addf %316, %319 : vector<14x1xf32>
    %321 = math.rsqrt %320 : vector<14x1xf32>
    %322 = vector.broadcast %321 : vector<14x1xf32> to vector<14x256xf32>
    %323 = arith.mulf %318, %322 : vector<14x256xf32>
    %cst_93 = arith.constant 0.000000e+00 : f32
    %324 = vector.broadcast %cst_93 : f32 to vector<14x256xf32>
    %325 = arith.maximumf %323, %324 : vector<14x256xf32>
    %326 = vector.extract_strided_slice %263 {offsets = [0, 18], sizes = [4, 14], strides = [1, 1]} : vector<14x35xf32> to vector<4x14xf32>
    %cst_94 = arith.constant dense<0.000000e+00> : vector<4x256xf32>
    %327 = tpu.matmul %326, %325, %cst_94 {dimension_numbers = #tpu.dot_dimension_numbers<[1], [0], [0], [1], [0, 0, 1, 1], [], []>} : vector<4x14xf32>, vector<14x256xf32>, vector<4x256xf32> -> vector<4x256xf32>
    %328 = vector.extract_strided_slice %263 {offsets = [0, 34], sizes = [4, 1], strides = [1, 1]} : vector<14x35xf32> to vector<4x1xf32>
    %329 = vector.broadcast %328 : vector<4x1xf32> to vector<4x256xf32>
    %330 = arith.addf %327, %329 : vector<4x256xf32>
    %331 = arith.index_cast %c2_i32 : i32 to index
    %c0_95 = arith.constant 0 : index
    %c0_96 = arith.constant 0 : index
    %332 = vector.load %arg3[%331, %c0_95, %c0_96] : memref<5x4x256xf32, #tpu.memory_space<vmem>>, vector<1x4x256xf32>
    %333 = vector.shape_cast %332 : vector<1x4x256xf32> to vector<4x256xf32>
    %334 = vector.broadcast %268 : f32 to vector<4x256xf32>
    %335 = arith.mulf %334, %333 : vector<4x256xf32>
    %336 = arith.mulf %330, %330 : vector<4x256xf32>
    %cst_97 = arith.constant dense<0.000000e+00> : vector<256xf32>
    %337 = vector.multi_reduction <add>, %336, %cst_97 [0] : vector<4x256xf32> to vector<256xf32>
    %338 = vector.shape_cast %337 : vector<256xf32> to vector<1x256xf32>
    %339 = vector.broadcast %265 : f32 to vector<1x256xf32>
    %340 = arith.mulf %339, %338 : vector<1x256xf32>
    %341 = arith.mulf %330, %335 : vector<4x256xf32>
    %cst_98 = arith.constant dense<0.000000e+00> : vector<256xf32>
    %342 = vector.multi_reduction <add>, %341, %cst_98 [0] : vector<4x256xf32> to vector<256xf32>
    %343 = vector.shape_cast %342 : vector<256xf32> to vector<1x256xf32>
    %344 = arith.subf %256, %340 : vector<1x256xf32>
    %345 = arith.addf %344, %343 : vector<1x256xf32>
    %346 = vector.broadcast %271 : f32 to vector<4x256xf32>
    %347 = arith.mulf %346, %330 : vector<4x256xf32>
    %348 = arith.subf %260, %347 : vector<4x256xf32>
    %349 = arith.addf %348, %335 : vector<4x256xf32>
    %c3_i32 = arith.constant 3 : i32
    %350 = arith.index_cast %c3_i32 : i32 to index
    %c0_99 = arith.constant 0 : index
    %c0_100 = arith.constant 0 : index
    %351 = vector.load %arg4[%350, %c0_99, %c0_100] : memref<5x14x35xf32, #tpu.memory_space<vmem>>, vector<1x14x35xf32>
    %352 = vector.shape_cast %351 : vector<1x14x35xf32> to vector<14x35xf32>
    %353 = arith.index_cast %c3_i32 : i32 to index
    %354 = memref.load %arg1[%353] : memref<15xf32, #tpu.memory_space<smem>>
    %c5_i32_101 = arith.constant 5 : i32
    %355 = arith.addi %c5_i32_101, %c3_i32 : i32
    %356 = arith.index_cast %355 : i32 to index
    %357 = memref.load %arg1[%356] : memref<15xf32, #tpu.memory_space<smem>>
    %c10_i32_102 = arith.constant 10 : i32
    %358 = arith.addi %c10_i32_102, %c3_i32 : i32
    %359 = arith.index_cast %358 : i32 to index
    %360 = memref.load %arg1[%359] : memref<15xf32, #tpu.memory_space<smem>>
    %361 = vector.extract_strided_slice %352 {offsets = [0, 0], sizes = [14, 4], strides = [1, 1]} : vector<14x35xf32> to vector<14x4xf32>
    %cst_103 = arith.constant dense<0.000000e+00> : vector<14x256xf32>
    %362 = tpu.matmul %361, %349, %cst_103 {dimension_numbers = #tpu.dot_dimension_numbers<[1], [0], [0], [1], [0, 0, 1, 1], [], []>} : vector<14x4xf32>, vector<4x256xf32>, vector<14x256xf32> -> vector<14x256xf32>
    %363 = vector.extract_strided_slice %352 {offsets = [0, 32], sizes = [14, 1], strides = [1, 1]} : vector<14x35xf32> to vector<14x1xf32>
    %364 = vector.broadcast %363 : vector<14x1xf32> to vector<14x256xf32>
    %365 = arith.addf %362, %364 : vector<14x256xf32>
    %cst_104 = arith.constant dense<0.000000e+00> : vector<14xf32>
    %366 = vector.multi_reduction <add>, %365, %cst_104 [1] : vector<14x256xf32> to vector<14xf32>
    %367 = vector.shape_cast %366 : vector<14xf32> to vector<14x1xf32>
    %cst_105 = arith.constant 2.560000e+02 : f32
    %368 = vector.broadcast %cst_105 : f32 to vector<14x1xf32>
    %369 = arith.divf %367, %368 : vector<14x1xf32>
    %370 = arith.mulf %365, %365 : vector<14x256xf32>
    %cst_106 = arith.constant dense<0.000000e+00> : vector<14xf32>
    %371 = vector.multi_reduction <add>, %370, %cst_106 [1] : vector<14x256xf32> to vector<14xf32>
    %372 = vector.shape_cast %371 : vector<14xf32> to vector<14x1xf32>
    %cst_107 = arith.constant 2.560000e+02 : f32
    %373 = vector.broadcast %cst_107 : f32 to vector<14x1xf32>
    %374 = arith.divf %372, %373 : vector<14x1xf32>
    %375 = arith.mulf %369, %369 : vector<14x1xf32>
    %376 = arith.subf %374, %375 : vector<14x1xf32>
    %cst_108 = arith.constant 0.000000e+00 : f32
    %377 = vector.broadcast %cst_108 : f32 to vector<14x1xf32>
    %378 = arith.maximumf %376, %377 : vector<14x1xf32>
    %379 = vector.broadcast %369 : vector<14x1xf32> to vector<14x256xf32>
    %380 = arith.subf %365, %379 : vector<14x256xf32>
    %cst_109 = arith.constant 9.99999974E-6 : f32
    %381 = vector.broadcast %cst_109 : f32 to vector<14x1xf32>
    %382 = arith.addf %378, %381 : vector<14x1xf32>
    %383 = math.rsqrt %382 : vector<14x1xf32>
    %384 = vector.broadcast %383 : vector<14x1xf32> to vector<14x256xf32>
    %385 = arith.mulf %380, %384 : vector<14x256xf32>
    %cst_110 = arith.constant 0.000000e+00 : f32
    %386 = vector.broadcast %cst_110 : f32 to vector<14x256xf32>
    %387 = arith.maximumf %385, %386 : vector<14x256xf32>
    %388 = vector.extract_strided_slice %352 {offsets = [0, 4], sizes = [14, 14], strides = [1, 1]} : vector<14x35xf32> to vector<14x14xf32>
    %cst_111 = arith.constant dense<0.000000e+00> : vector<14x256xf32>
    %389 = tpu.matmul %388, %387, %cst_111 {dimension_numbers = #tpu.dot_dimension_numbers<[1], [0], [0], [1], [0, 0, 1, 1], [], []>} : vector<14x14xf32>, vector<14x256xf32>, vector<14x256xf32> -> vector<14x256xf32>
    %390 = vector.extract_strided_slice %352 {offsets = [0, 33], sizes = [14, 1], strides = [1, 1]} : vector<14x35xf32> to vector<14x1xf32>
    %391 = vector.broadcast %390 : vector<14x1xf32> to vector<14x256xf32>
    %392 = arith.addf %389, %391 : vector<14x256xf32>
    %cst_112 = arith.constant dense<0.000000e+00> : vector<14xf32>
    %393 = vector.multi_reduction <add>, %392, %cst_112 [1] : vector<14x256xf32> to vector<14xf32>
    %394 = vector.shape_cast %393 : vector<14xf32> to vector<14x1xf32>
    %cst_113 = arith.constant 2.560000e+02 : f32
    %395 = vector.broadcast %cst_113 : f32 to vector<14x1xf32>
    %396 = arith.divf %394, %395 : vector<14x1xf32>
    %397 = arith.mulf %392, %392 : vector<14x256xf32>
    %cst_114 = arith.constant dense<0.000000e+00> : vector<14xf32>
    %398 = vector.multi_reduction <add>, %397, %cst_114 [1] : vector<14x256xf32> to vector<14xf32>
    %399 = vector.shape_cast %398 : vector<14xf32> to vector<14x1xf32>
    %cst_115 = arith.constant 2.560000e+02 : f32
    %400 = vector.broadcast %cst_115 : f32 to vector<14x1xf32>
    %401 = arith.divf %399, %400 : vector<14x1xf32>
    %402 = arith.mulf %396, %396 : vector<14x1xf32>
    %403 = arith.subf %401, %402 : vector<14x1xf32>
    %cst_116 = arith.constant 0.000000e+00 : f32
    %404 = vector.broadcast %cst_116 : f32 to vector<14x1xf32>
    %405 = arith.maximumf %403, %404 : vector<14x1xf32>
    %406 = vector.broadcast %396 : vector<14x1xf32> to vector<14x256xf32>
    %407 = arith.subf %392, %406 : vector<14x256xf32>
    %cst_117 = arith.constant 9.99999974E-6 : f32
    %408 = vector.broadcast %cst_117 : f32 to vector<14x1xf32>
    %409 = arith.addf %405, %408 : vector<14x1xf32>
    %410 = math.rsqrt %409 : vector<14x1xf32>
    %411 = vector.broadcast %410 : vector<14x1xf32> to vector<14x256xf32>
    %412 = arith.mulf %407, %411 : vector<14x256xf32>
    %cst_118 = arith.constant 0.000000e+00 : f32
    %413 = vector.broadcast %cst_118 : f32 to vector<14x256xf32>
    %414 = arith.maximumf %412, %413 : vector<14x256xf32>
    %415 = vector.extract_strided_slice %352 {offsets = [0, 18], sizes = [4, 14], strides = [1, 1]} : vector<14x35xf32> to vector<4x14xf32>
    %cst_119 = arith.constant dense<0.000000e+00> : vector<4x256xf32>
    %416 = tpu.matmul %415, %414, %cst_119 {dimension_numbers = #tpu.dot_dimension_numbers<[1], [0], [0], [1], [0, 0, 1, 1], [], []>} : vector<4x14xf32>, vector<14x256xf32>, vector<4x256xf32> -> vector<4x256xf32>
    %417 = vector.extract_strided_slice %352 {offsets = [0, 34], sizes = [4, 1], strides = [1, 1]} : vector<14x35xf32> to vector<4x1xf32>
    %418 = vector.broadcast %417 : vector<4x1xf32> to vector<4x256xf32>
    %419 = arith.addf %416, %418 : vector<4x256xf32>
    %420 = arith.index_cast %c3_i32 : i32 to index
    %c0_120 = arith.constant 0 : index
    %c0_121 = arith.constant 0 : index
    %421 = vector.load %arg3[%420, %c0_120, %c0_121] : memref<5x4x256xf32, #tpu.memory_space<vmem>>, vector<1x4x256xf32>
    %422 = vector.shape_cast %421 : vector<1x4x256xf32> to vector<4x256xf32>
    %423 = vector.broadcast %357 : f32 to vector<4x256xf32>
    %424 = arith.mulf %423, %422 : vector<4x256xf32>
    %425 = arith.mulf %419, %419 : vector<4x256xf32>
    %cst_122 = arith.constant dense<0.000000e+00> : vector<256xf32>
    %426 = vector.multi_reduction <add>, %425, %cst_122 [0] : vector<4x256xf32> to vector<256xf32>
    %427 = vector.shape_cast %426 : vector<256xf32> to vector<1x256xf32>
    %428 = vector.broadcast %354 : f32 to vector<1x256xf32>
    %429 = arith.mulf %428, %427 : vector<1x256xf32>
    %430 = arith.mulf %419, %424 : vector<4x256xf32>
    %cst_123 = arith.constant dense<0.000000e+00> : vector<256xf32>
    %431 = vector.multi_reduction <add>, %430, %cst_123 [0] : vector<4x256xf32> to vector<256xf32>
    %432 = vector.shape_cast %431 : vector<256xf32> to vector<1x256xf32>
    %433 = arith.subf %345, %429 : vector<1x256xf32>
    %434 = arith.addf %433, %432 : vector<1x256xf32>
    %435 = vector.broadcast %360 : f32 to vector<4x256xf32>
    %436 = arith.mulf %435, %419 : vector<4x256xf32>
    %437 = arith.subf %349, %436 : vector<4x256xf32>
    %438 = arith.addf %437, %424 : vector<4x256xf32>
    %c4_i32 = arith.constant 4 : i32
    %439 = arith.index_cast %c4_i32 : i32 to index
    %c0_124 = arith.constant 0 : index
    %c0_125 = arith.constant 0 : index
    %440 = vector.load %arg4[%439, %c0_124, %c0_125] : memref<5x14x35xf32, #tpu.memory_space<vmem>>, vector<1x14x35xf32>
    %441 = vector.shape_cast %440 : vector<1x14x35xf32> to vector<14x35xf32>
    %442 = arith.index_cast %c4_i32 : i32 to index
    %443 = memref.load %arg1[%442] : memref<15xf32, #tpu.memory_space<smem>>
    %c5_i32_126 = arith.constant 5 : i32
    %444 = arith.addi %c5_i32_126, %c4_i32 : i32
    %445 = arith.index_cast %444 : i32 to index
    %446 = memref.load %arg1[%445] : memref<15xf32, #tpu.memory_space<smem>>
    %c10_i32_127 = arith.constant 10 : i32
    %447 = arith.addi %c10_i32_127, %c4_i32 : i32
    %448 = arith.index_cast %447 : i32 to index
    %449 = memref.load %arg1[%448] : memref<15xf32, #tpu.memory_space<smem>>
    %450 = vector.extract_strided_slice %441 {offsets = [0, 0], sizes = [14, 4], strides = [1, 1]} : vector<14x35xf32> to vector<14x4xf32>
    %cst_128 = arith.constant dense<0.000000e+00> : vector<14x256xf32>
    %451 = tpu.matmul %450, %438, %cst_128 {dimension_numbers = #tpu.dot_dimension_numbers<[1], [0], [0], [1], [0, 0, 1, 1], [], []>} : vector<14x4xf32>, vector<4x256xf32>, vector<14x256xf32> -> vector<14x256xf32>
    %452 = vector.extract_strided_slice %441 {offsets = [0, 32], sizes = [14, 1], strides = [1, 1]} : vector<14x35xf32> to vector<14x1xf32>
    %453 = vector.broadcast %452 : vector<14x1xf32> to vector<14x256xf32>
    %454 = arith.addf %451, %453 : vector<14x256xf32>
    %cst_129 = arith.constant dense<0.000000e+00> : vector<14xf32>
    %455 = vector.multi_reduction <add>, %454, %cst_129 [1] : vector<14x256xf32> to vector<14xf32>
    %456 = vector.shape_cast %455 : vector<14xf32> to vector<14x1xf32>
    %cst_130 = arith.constant 2.560000e+02 : f32
    %457 = vector.broadcast %cst_130 : f32 to vector<14x1xf32>
    %458 = arith.divf %456, %457 : vector<14x1xf32>
    %459 = arith.mulf %454, %454 : vector<14x256xf32>
    %cst_131 = arith.constant dense<0.000000e+00> : vector<14xf32>
    %460 = vector.multi_reduction <add>, %459, %cst_131 [1] : vector<14x256xf32> to vector<14xf32>
    %461 = vector.shape_cast %460 : vector<14xf32> to vector<14x1xf32>
    %cst_132 = arith.constant 2.560000e+02 : f32
    %462 = vector.broadcast %cst_132 : f32 to vector<14x1xf32>
    %463 = arith.divf %461, %462 : vector<14x1xf32>
    %464 = arith.mulf %458, %458 : vector<14x1xf32>
    %465 = arith.subf %463, %464 : vector<14x1xf32>
    %cst_133 = arith.constant 0.000000e+00 : f32
    %466 = vector.broadcast %cst_133 : f32 to vector<14x1xf32>
    %467 = arith.maximumf %465, %466 : vector<14x1xf32>
    %468 = vector.broadcast %458 : vector<14x1xf32> to vector<14x256xf32>
    %469 = arith.subf %454, %468 : vector<14x256xf32>
    %cst_134 = arith.constant 9.99999974E-6 : f32
    %470 = vector.broadcast %cst_134 : f32 to vector<14x1xf32>
    %471 = arith.addf %467, %470 : vector<14x1xf32>
    %472 = math.rsqrt %471 : vector<14x1xf32>
    %473 = vector.broadcast %472 : vector<14x1xf32> to vector<14x256xf32>
    %474 = arith.mulf %469, %473 : vector<14x256xf32>
    %cst_135 = arith.constant 0.000000e+00 : f32
    %475 = vector.broadcast %cst_135 : f32 to vector<14x256xf32>
    %476 = arith.maximumf %474, %475 : vector<14x256xf32>
    %477 = vector.extract_strided_slice %441 {offsets = [0, 4], sizes = [14, 14], strides = [1, 1]} : vector<14x35xf32> to vector<14x14xf32>
    %cst_136 = arith.constant dense<0.000000e+00> : vector<14x256xf32>
    %478 = tpu.matmul %477, %476, %cst_136 {dimension_numbers = #tpu.dot_dimension_numbers<[1], [0], [0], [1], [0, 0, 1, 1], [], []>} : vector<14x14xf32>, vector<14x256xf32>, vector<14x256xf32> -> vector<14x256xf32>
    %479 = vector.extract_strided_slice %441 {offsets = [0, 33], sizes = [14, 1], strides = [1, 1]} : vector<14x35xf32> to vector<14x1xf32>
    %480 = vector.broadcast %479 : vector<14x1xf32> to vector<14x256xf32>
    %481 = arith.addf %478, %480 : vector<14x256xf32>
    %cst_137 = arith.constant dense<0.000000e+00> : vector<14xf32>
    %482 = vector.multi_reduction <add>, %481, %cst_137 [1] : vector<14x256xf32> to vector<14xf32>
    %483 = vector.shape_cast %482 : vector<14xf32> to vector<14x1xf32>
    %cst_138 = arith.constant 2.560000e+02 : f32
    %484 = vector.broadcast %cst_138 : f32 to vector<14x1xf32>
    %485 = arith.divf %483, %484 : vector<14x1xf32>
    %486 = arith.mulf %481, %481 : vector<14x256xf32>
    %cst_139 = arith.constant dense<0.000000e+00> : vector<14xf32>
    %487 = vector.multi_reduction <add>, %486, %cst_139 [1] : vector<14x256xf32> to vector<14xf32>
    %488 = vector.shape_cast %487 : vector<14xf32> to vector<14x1xf32>
    %cst_140 = arith.constant 2.560000e+02 : f32
    %489 = vector.broadcast %cst_140 : f32 to vector<14x1xf32>
    %490 = arith.divf %488, %489 : vector<14x1xf32>
    %491 = arith.mulf %485, %485 : vector<14x1xf32>
    %492 = arith.subf %490, %491 : vector<14x1xf32>
    %cst_141 = arith.constant 0.000000e+00 : f32
    %493 = vector.broadcast %cst_141 : f32 to vector<14x1xf32>
    %494 = arith.maximumf %492, %493 : vector<14x1xf32>
    %495 = vector.broadcast %485 : vector<14x1xf32> to vector<14x256xf32>
    %496 = arith.subf %481, %495 : vector<14x256xf32>
    %cst_142 = arith.constant 9.99999974E-6 : f32
    %497 = vector.broadcast %cst_142 : f32 to vector<14x1xf32>
    %498 = arith.addf %494, %497 : vector<14x1xf32>
    %499 = math.rsqrt %498 : vector<14x1xf32>
    %500 = vector.broadcast %499 : vector<14x1xf32> to vector<14x256xf32>
    %501 = arith.mulf %496, %500 : vector<14x256xf32>
    %cst_143 = arith.constant 0.000000e+00 : f32
    %502 = vector.broadcast %cst_143 : f32 to vector<14x256xf32>
    %503 = arith.maximumf %501, %502 : vector<14x256xf32>
    %504 = vector.extract_strided_slice %441 {offsets = [0, 18], sizes = [4, 14], strides = [1, 1]} : vector<14x35xf32> to vector<4x14xf32>
    %cst_144 = arith.constant dense<0.000000e+00> : vector<4x256xf32>
    %505 = tpu.matmul %504, %503, %cst_144 {dimension_numbers = #tpu.dot_dimension_numbers<[1], [0], [0], [1], [0, 0, 1, 1], [], []>} : vector<4x14xf32>, vector<14x256xf32>, vector<4x256xf32> -> vector<4x256xf32>
    %506 = vector.extract_strided_slice %441 {offsets = [0, 34], sizes = [4, 1], strides = [1, 1]} : vector<14x35xf32> to vector<4x1xf32>
    %507 = vector.broadcast %506 : vector<4x1xf32> to vector<4x256xf32>
    %508 = arith.addf %505, %507 : vector<4x256xf32>
    %509 = arith.index_cast %c4_i32 : i32 to index
    %c0_145 = arith.constant 0 : index
    %c0_146 = arith.constant 0 : index
    %510 = vector.load %arg3[%509, %c0_145, %c0_146] : memref<5x4x256xf32, #tpu.memory_space<vmem>>, vector<1x4x256xf32>
    %511 = vector.shape_cast %510 : vector<1x4x256xf32> to vector<4x256xf32>
    %512 = vector.broadcast %446 : f32 to vector<4x256xf32>
    %513 = arith.mulf %512, %511 : vector<4x256xf32>
    %514 = arith.mulf %508, %508 : vector<4x256xf32>
    %cst_147 = arith.constant dense<0.000000e+00> : vector<256xf32>
    %515 = vector.multi_reduction <add>, %514, %cst_147 [0] : vector<4x256xf32> to vector<256xf32>
    %516 = vector.shape_cast %515 : vector<256xf32> to vector<1x256xf32>
    %517 = vector.broadcast %443 : f32 to vector<1x256xf32>
    %518 = arith.mulf %517, %516 : vector<1x256xf32>
    %519 = arith.mulf %508, %513 : vector<4x256xf32>
    %cst_148 = arith.constant dense<0.000000e+00> : vector<256xf32>
    %520 = vector.multi_reduction <add>, %519, %cst_148 [0] : vector<4x256xf32> to vector<256xf32>
    %521 = vector.shape_cast %520 : vector<256xf32> to vector<1x256xf32>
    %522 = arith.subf %434, %518 : vector<1x256xf32>
    %523 = arith.addf %522, %521 : vector<1x256xf32>
    %524 = vector.broadcast %449 : f32 to vector<4x256xf32>
    %525 = arith.mulf %524, %508 : vector<4x256xf32>
    %526 = arith.subf %438, %525 : vector<4x256xf32>
    %527 = arith.addf %526, %513 : vector<4x256xf32>
    %c5_i32_149 = arith.constant 5 : i32
    %c0_150 = arith.constant 0 : index
    %c0_151 = arith.constant 0 : index
    %528 = vector.load %arg6[%c0_150, %c0_151] : memref<5x256xf32, #tpu.memory_space<vmem>>, vector<1x256xf32>
    tpu.vector_store %arg6[%c0_150, %c0_151], %523 {strides = array<i32>} : memref<5x256xf32, #tpu.memory_space<vmem>>, vector<1x256xf32>,
    %c1 = arith.constant 1 : index
    %c0_152 = arith.constant 0 : index
    %529 = vector.load %arg6[%c1, %c0_152] : memref<5x256xf32, #tpu.memory_space<vmem>>, vector<4x256xf32>
    tpu.vector_store %arg6[%c1, %c0_152], %527 {strides = array<i32>} : memref<5x256xf32, #tpu.memory_space<vmem>>, vector<4x256xf32>,
    return
  }
  func.func @transform_0(%arg0: i32, %arg1: memref<15xf32, #tpu.memory_space<smem>>) -> (i32, i32) {
    %c0_i32 = arith.constant 0 : i32
    %c0_i32_0 = arith.constant 0 : i32
    %c0_i32_1 = arith.constant 0 : i32
    return %c0_i32, %c0_i32_0 : i32, i32
  }
  func.func @transform_1(%arg0: i32, %arg1: memref<15xf32, #tpu.memory_space<smem>>) -> (i32, i32, i32) {
    %c0_i32 = arith.constant 0 : i32
    %c0_i32_0 = arith.constant 0 : i32
    %c0_i32_1 = arith.constant 0 : i32
    %c0_i32_2 = arith.constant 0 : i32
    return %c0_i32, %c0_i32_0, %c0_i32_1 : i32, i32, i32
  }
  func.func @transform_2(%arg0: i32, %arg1: memref<15xf32, #tpu.memory_space<smem>>) -> (i32, i32, i32) {
    %c0_i32 = arith.constant 0 : i32
    %c0_i32_0 = arith.constant 0 : i32
    %c0_i32_1 = arith.constant 0 : i32
    %c0_i32_2 = arith.constant 0 : i32
    return %c0_i32, %c0_i32_0, %c0_i32_1 : i32, i32, i32
  }
  func.func @transform_3(%arg0: i32, %arg1: memref<15xf32, #tpu.memory_space<smem>>) -> (i32, i32) {
    %c0_i32 = arith.constant 0 : i32
    %c0_i32_0 = arith.constant 0 : i32
    %c0_i32_1 = arith.constant 0 : i32
    return %c0_i32, %c0_i32_0 : i32, i32
  }
  func.func @transform_4(%arg0: i32, %arg1: memref<15xf32, #tpu.memory_space<smem>>) -> (i32, i32) {
    %c0_i32 = arith.constant 0 : i32
    %c0_i32_0 = arith.constant 0 : i32
    %c0_i32_1 = arith.constant 0 : i32
    return %c0_i32, %c0_i32_0 : i32, i32
  }
}

</mosaic_0001>

<llo_original>
// kernel: tpu_custom_call.1
$region0: #{tpu_custom_call.1}
  #allocation0 [shape = 'u32[]', space=smem, size = 0x4, offset = 0x4, fixed_abs, tag = 'smem constant byte address 0x4 - core index']
  #allocation1 [shape = 'u32[144,128]{1,0:T(1,128)}', space=vmem, size = 0x12000, scoped, tag = 'internal scratch']
  #allocation2 [shape = 's32[1]{0}', space=sflag, size = 0x4, scoped, tag = 'scoped memory for tpu_custom_call.1']
  #allocation3 [shape = 'u8[512]{0}', space=smem, size = 0x200, scoped, tag = 'prefetched SMEM operand 0']
  %s0 = inlined_call_operand.hbm [shape: f32[15], index: 0, kind: input, shape index: {}]
  %s1 = inlined_call_operand.hbm [shape: f32[4,256], index: 1, kind: input, shape index: {}]
  %s2 = inlined_call_operand.hbm [shape: f32[5,4,256], index: 2, kind: input, shape index: {}]
  %s3 = inlined_call_operand.hbm [shape: f32[5,14,35], index: 3, kind: input, shape index: {}]
  %s4 = inlined_call_operand.hbm [shape: f32[14,35], index: 4, kind: input, shape index: {}]
  %s5 = inlined_call_operand.hbm [shape: f32[5,256], index: 5, kind: output, shape index: {}]
  %s6 = sld [smem:[#allocation0]]
  $region42: #{tpu_custom_call.1} parent=0
    _
  %s8 = ssub.s32 1, %s6
  %s9 = scalar_select 0, %s8, %s6
  %11 = dma.hbm_to_smem %s0, 16, [#allocation3], [#allocation2]
  %12 = dma.done [#allocation2], 16
  %13 = sfence
  $region1: #{tpu_custom_call.1} parent=0
    #allocation4 [shape = 'u8[4096]{0}', space=vmem, size = 0x1000, scoped, tag = 'input window, operand 1, single buffered']
    #allocation5 [shape = 's32[1]{0}', space=sflag, size = 0x4, scoped, tag = 'scoped memory for tpu_custom_call.1']
    #allocation6 [shape = 's32[1]{0}', space=sflag, size = 0x4, scoped, tag = 'scoped memory for tpu_custom_call.1']
    #allocation7 [shape = 'u8[20480]{0}', space=vmem, size = 0x5000, scoped, tag = 'input window, operand 2, single buffered']
    #allocation8 [shape = 's32[1]{0}', space=sflag, size = 0x4, scoped, tag = 'scoped memory for tpu_custom_call.1']
    #allocation9 [shape = 'u8[40960]{0}', space=vmem, size = 0xa000, scoped, tag = 'input window, operand 3, single buffered']
    #allocation10 [shape = 'u8[8192]{0}', space=vmem, size = 0x2000, scoped, tag = 'input window, operand 4, single buffered']
    #allocation11 [shape = 's32[1]{0}', space=sflag, size = 0x4, scoped, tag = 'scoped memory for tpu_custom_call.1']
    #allocation12 [shape = 'u8[8192]{0}', space=vmem, size = 0x2000, scoped, tag = 'output window, operand 0, single buffered']
    %14 = vsyncpa [#allocation5], 0
    %15 = vsyncpa [#allocation8], 0
    %16 = vsyncpa [#allocation11], 0
    %17 = vsyncpa [#allocation6], 0
    // Predicated region
    $region2: #{tpu_custom_call.1} parent=1 // pred_check
      _
    $region3: #{tpu_custom_call.1} parent=1 // pred_check_branch
      %19 = sbr.rel (0) target = $region5
    $region4: #{tpu_custom_call.1} parent=1 // pred_region
      %s21 = ssub.s32 128, 128
      %22 = vsyncadd [#allocation5], %s21
      %s24 = sshll.u32 [#allocation4], 4
      %s25 = int_to_ptr.vmem [resolvable:$true] %s24
      %27 = dma.hbm_to_vmem [thread:$0]  %s1, 128, %s25, [#allocation5]
    $region5: #{tpu_custom_call.1} parent=1 // pred_fallthru
      _
    // Predicated region
    $region6: #{tpu_custom_call.1} parent=1 // pred_check
      _
    $region7: #{tpu_custom_call.1} parent=1 // pred_check_branch
      %29 = sbr.rel (0) target = $region9
    $region8: #{tpu_custom_call.1} parent=1 // pred_region
      %s31 = ssub.s32 640, 640
      %32 = vsyncadd [#allocation8], %s31
      %s33 = sshll.u32 [#allocation7], 4
      %s34 = int_to_ptr.vmem [resolvable:$true] %s33
      %39 = dma.hbm_to_vmem [thread:$0]  %s2, 640, %s34, [#allocation8], 128, 128, 8
    $region9: #{tpu_custom_call.1} parent=1 // pred_fallthru
      _
    // Predicated region
    $region10: #{tpu_custom_call.1} parent=1 // pred_check
      _
    $region11: #{tpu_custom_call.1} parent=1 // pred_check_branch
      %41 = sbr.rel (0) target = $region13
    $region12: #{tpu_custom_call.1} parent=1 // pred_region
      %s43 = ssub.s32 1280, 1280
      %44 = vsyncadd [#allocation8], %s43
      %s45 = sshll.u32 [#allocation9], 4
      %s46 = int_to_ptr.vmem [resolvable:$true] %s45
      %51 = dma.hbm_to_vmem [thread:$0]  %s3, 1280, %s46, [#allocation8], 128, 128, 8
    $region13: #{tpu_custom_call.1} parent=1 // pred_fallthru
      _
    // Predicated region
    $region14: #{tpu_custom_call.1} parent=1 // pred_check
      _
    $region15: #{tpu_custom_call.1} parent=1 // pred_check_branch
      %53 = sbr.rel (0) target = $region17
    $region16: #{tpu_custom_call.1} parent=1 // pred_region
      %s55 = ssub.s32 256, 256
      %56 = vsyncadd [#allocation11], %s55
      %s57 = sshll.u32 [#allocation10], 4
      %s58 = int_to_ptr.vmem [resolvable:$true] %s57
      %63 = dma.hbm_to_vmem [thread:$0]  %s4, 256, %s58, [#allocation11], 128, 128, 8
    $region17: #{tpu_custom_call.1} parent=1 // pred_fallthru
      _
    // Predicated region
    $region18: #{tpu_custom_call.1} parent=1 // pred_check
      _
    $region19: #{tpu_custom_call.1} parent=1 // pred_check_branch
      %65 = sbr.rel (0) target = $region21
    $region20: #{tpu_custom_call.1} parent=1 // pred_region
      %66 = dma.done [#allocation5], 128
    $region21: #{tpu_custom_call.1} parent=1 // pred_fallthru
      _
    // Predicated region
    $region22: #{tpu_custom_call.1} parent=1 // pred_check
      _
    $region23: #{tpu_custom_call.1} parent=1 // pred_check_branch
      %68 = sbr.rel (0) target = $region25
    $region24: #{tpu_custom_call.1} parent=1 // pred_region
      %69 = dma.done [#allocation8], 640
    $region25: #{tpu_custom_call.1} parent=1 // pred_fallthru
      _
    // Predicated region
    $region26: #{tpu_custom_call.1} parent=1 // pred_check
      _
    $region27: #{tpu_custom_call.1} parent=1 // pred_check_branch
      %71 = sbr.rel (0) target = $region29
    $region28: #{tpu_custom_call.1} parent=1 // pred_region
      %72 = dma.done [#allocation8], 1280
    $region29: #{tpu_custom_call.1} parent=1 // pred_fallthru
      _
    // Predicated region
    $region30: #{tpu_custom_call.1} parent=1 // pred_check
      _
    $region31: #{tpu_custom_call.1} parent=1 // pred_check_branch
      %74 = sbr.rel (0) target = $region33
    $region32: #{tpu_custom_call.1} parent=1 // pred_region
      %75 = dma.done [#allocation11], 256
    $region33: #{tpu_custom_call.1} parent=1 // pred_fallthru
      _
    %v76 = vld [vmem:[#allocation4] sm:$0xff]
    %v77 = vld [vmem:[#allocation10] sm:$0xff]
    %v78 = vld [vmem:[#allocation10 + $0x8] sm:$0x3f]
    %80 = vset.pattern.permute.xlu0 32
    %81 = vperm.xlu0 %80, %v77
    %v82 = vpop.permute.xlu0 %81
    %85 = vset.pattern.permute.xlu0 32
    %86 = vperm.xlu0 %85, %v78
    %v87 = vpop.permute.xlu0 %86
    %v90 = vcombine.high %v76, %v76
    %vm91 = vcmask 31744
    %v92 = vsel %vm91, %v77, 0
    %v94 = vsel %vm91, %v78, 0
    %vm96 = vcmask 1043456
    %v97 = vsel %vm96, %v76, 0
    %v99 = vsel %vm96, %v90, 0
    %101 = vmatprep.subr.mxu0 %v99
    %102 = vmatpush1.msra.mxu0 %v97
    %103 = vmatprep.subr.mxu0 0.0
    %104 = vmatpush1.msra.mxu0 0.0
    %105 = vmatprep.subr.mxu0 0.0
    %106 = vmatpush1.msra.mxu0 0.0
    %107 = vmatprep.subr.mxu0 0.0
    %108 = vmatpush1.msra.mxu0 0.0
    %109 = vmatprep.subr.mxu0 0.0
    %110 = vmatpush1.msra.mxu0 0.0
    %111 = vmatprep.subr.mxu0 0.0
    %112 = vmatpush1.msra.mxu0 0.0
    %113 = vmatprep.subr.mxu0 0.0
    %114 = vmatpush1.msra.mxu0 0.0
    %115 = vmatprep.subr.mxu0 0.0
    %116 = vmatpush1.msra.mxu0 0.0
    %117 = vmatprep.subr.mxu0 0.0
    %118 = vmatpush1.msra.mxu0 0.0
    %119 = vmatprep.subr.mxu0 0.0
    %120 = vmatpush1.msra.mxu0 0.0
    %121 = vmatprep.subr.mxu0 0.0
    %122 = vmatpush1.msra.mxu0 0.0
    %123 = vmatprep.subr.mxu0 0.0
    %124 = vmatpush1.msra.mxu0 0.0
    %125 = vmatprep.subr.mxu0 0.0
    %126 = vmatpush1.msra.mxu0 0.0
    %127 = vmatprep.subr.mxu0 0.0
    %128 = vmatpush1.msra.mxu0 0.0
    %129 = vmatprep.subr.mxu0 0.0
    %130 = vmatpush1.msra.mxu0 0.0
    %131 = vmatprep.subr.mxu0 0.0
    %132 = vmatpush1.msra.mxu0 0.0
    %133 = vmatprep.subr.mxu0 0.0
    %134 = vmatpush1.msra.mxu0 0.0
    %135 = vmatprep.subr.mxu0 0.0
    %136 = vmatpush1.msra.mxu0 0.0
    %137 = vmatprep.subr.mxu0 0.0
    %138 = vmatpush1.msra.mxu0 0.0
    %139 = vmatprep.subr.mxu0 0.0
    %140 = vmatpush1.msra.mxu0 0.0
    %141 = vmatprep.subr.mxu0 0.0
    %142 = vmatpush1.msra.mxu0 0.0
    %143 = vmatprep.subr.mxu0 0.0
    %144 = vmatpush1.msra.mxu0 0.0
    %145 = vmatprep.subr.mxu0 0.0
    %146 = vmatpush1.msra.mxu0 0.0
    %147 = vmatprep.subr.mxu0 0.0
    %148 = vmatpush1.msra.mxu0 0.0
    %149 = vmatprep.subr.mxu0 0.0
    %150 = vmatpush1.msra.mxu0 0.0
    %151 = vmatprep.subr.mxu0 0.0
    %152 = vmatpush1.msra.mxu0 0.0
    %153 = vmatprep.subr.mxu0 0.0
    %154 = vmatpush1.msra.mxu0 0.0
    %155 = vmatprep.subr.mxu0 0.0
    %156 = vmatpush1.msra.mxu0 0.0
    %157 = vmatprep.subr.mxu0 0.0
    %158 = vmatpush1.msra.mxu0 0.0
    %159 = vmatprep.subr.mxu0 0.0
    %160 = vmatpush1.msra.mxu0 0.0
    %161 = vmatprep.subr.mxu0 0.0
    %162 = vmatpush1.msra.mxu0 0.0
    %163 = vmatprep.subr.mxu0 0.0
    %164 = vmatpush1.msra.mxu0 0.0
    %165 = vmatprep.mubr.f32.mxu0 0.0
    %166 = vmatmul.mubr.f32.gmra.mrb[0].mxu0 %v92
    %v167 = vpop.f32.mrb[0].mxu0
    %v168 = vadd.f32 %v82, %v167
    %v169 = vpop.f32.mrb[0].mxu0
    %v170 = vadd.f32 %v82, %v169
    %171 = vmatprep.mubr.f32.mxu0 0.0
    %172 = vmatmul.mubr.f32.gmra.mrb[0].mxu0 %v94
    %v173 = vpop.f32.mrb[0].mxu0
    %v174 = vadd.f32 %v87, %v173
    %v175 = vpop.f32.mrb[0].mxu0
    %v176 = vadd.f32 %v87, %v175
    %177 = vdwg.mxu0
    %v178 = vadd.f32 %v168, %v170
    %179 = vadd.xlane.f32.xlu0 %v178
    %v180 = vpop.xlane.xlu0 %179
    %vm181 = vcmask 1045504
    %v182 = vsel %vm181, %v174, 0.0
    %v183 = vsel %vm181, %v176, 0.0
    %v184 = vadd.f32 %v182, %v183
    %185 = vadd.xlane.f32.xlu0 %v184
    %v186 = vpop.xlane.xlu0 %185
    %v187 = vrcp.pop 256.0
    %v188 = vmul.f32 %v180, %v187
    %v189 = vmul.f32 %v186, %v187
    %v190 = vmul.f32 %v168, %v168
    %v191 = vmul.f32 %v170, %v170
    %v192 = vmul.f32 %v174, %v174
    %v193 = vmul.f32 %v176, %v176
    %v194 = vadd.f32 %v190, %v191
    %195 = vadd.xlane.f32.xlu0 %v194
    %v196 = vpop.xlane.xlu0 %195
    %v197 = vsel %vm181, %v192, 0.0
    %v198 = vsel %vm181, %v193, 0.0
    %v199 = vadd.f32 %v197, %v198
    %200 = vadd.xlane.f32.xlu0 %v199
    %v201 = vpop.xlane.xlu0 %200
    %v202 = vmul.f32 %v196, %v187
    %v203 = vmul.f32 %v201, %v187
    %v204 = vmul.f32 %v188, %v188
    %v205 = vmul.f32 %v189, %v189
    %v206 = vsub.f32 %v202, %v204
    %v207 = vsub.f32 %v203, %v205
    %v208 = vmax.f32 %v206, 0.0
    %v209 = vmax.f32 %v207, 0.0
    %v210 = vsub.f32 %v168, %v188
    %v211 = vsub.f32 %v170, %v188
    %v212 = vsub.f32 %v174, %v189
    %v213 = vsub.f32 %v176, %v189
    %v214 = vadd.f32 %v208, 1e-05
    %v215 = vadd.f32 %v209, 1e-05
    %v216 = vrsqrt.pop %v214
    %v217 = vrsqrt.pop %v215
    %v218 = vmul.f32 %v210, %v216
    %v219 = vmul.f32 %v211, %v216
    %v220 = vmul.f32 %v212, %v217
    %v221 = vmul.f32 %v213, %v217
    %v222 = vmax.f32 %v218, 0.0
    %v223 = vmax.f32 %v219, 0.0
    %v224 = vmax.f32 %v220, 0.0
    %v225 = vmax.f32 %v221, 0.0
    %226 = vset.pattern.permute.xlu0 33
    %227 = vperm.xlu0 %226, %v77
    %v228 = vpop.permute.xlu0 %227
    %230 = vset.pattern.permute.xlu0 33
    %231 = vperm.xlu0 %230, %v78
    %v232 = vpop.permute.xlu0 %231
    %234 = vrot.lane.b32.xlu0 %v77, 124
    %v235 = vpop.permute.xlu0 %234
    %236 = vrot.lane.b32.xlu0 %v78, 124
    %v237 = vpop.permute.xlu0 %236
    %vm238 = vcmask 113664
    %v239 = vsel %vm238, %v235, 0
    %v241 = vsel %vm238, %v237, 0
    %v244 = vsel %vm181, %v224, 0
    %v247 = vsel %vm181, %v225, 0
    %249 = vmatprep.subr.mxu0 %v223
    %250 = vmatpush1.msra.mxu0 %v222
    %251 = vmatprep.subr.mxu0 %v247
    %252 = vmatpush1.msra.mxu0 %v244
    %253 = vmatprep.subr.mxu0 0.0
    %254 = vmatpush1.msra.mxu0 0.0
    %255 = vmatprep.subr.mxu0 0.0
    %256 = vmatpush1.msra.mxu0 0.0
    %257 = vmatprep.subr.mxu0 0.0
    %258 = vmatpush1.msra.mxu0 0.0
    %259 = vmatprep.subr.mxu0 0.0
    %260 = vmatpush1.msra.mxu0 0.0
    %261 = vmatprep.subr.mxu0 0.0
    %262 = vmatpush1.msra.mxu0 0.0
    %263 = vmatprep.subr.mxu0 0.0
    %264 = vmatpush1.msra.mxu0 0.0
    %265 = vmatprep.subr.mxu0 0.0
    %266 = vmatpush1.msra.mxu0 0.0
    %267 = vmatprep.subr.mxu0 0.0
    %268 = vmatpush1.msra.mxu0 0.0
    %269 = vmatprep.subr.mxu0 0.0
    %270 = vmatpush1.msra.mxu0 0.0
    %271 = vmatprep.subr.mxu0 0.0
    %272 = vmatpush1.msra.mxu0 0.0
    %273 = vmatprep.subr.mxu0 0.0
    %274 = vmatpush1.msra.mxu0 0.0
    %275 = vmatprep.subr.mxu0 0.0
    %276 = vmatpush1.msra.mxu0 0.0
    %277 = vmatprep.subr.mxu0 0.0
    %278 = vmatpush1.msra.mxu0 0.0
    %279 = vmatprep.subr.mxu0 0.0
    %280 = vmatpush1.msra.mxu0 0.0
    %281 = vmatprep.subr.mxu0 0.0
    %282 = vmatpush1.msra.mxu0 0.0
    %283 = vmatprep.subr.mxu0 0.0
    %284 = vmatpush1.msra.mxu0 0.0
    %285 = vmatprep.subr.mxu0 0.0
    %286 = vmatpush1.msra.mxu0 0.0
    %287 = vmatprep.subr.mxu0 0.0
    %288 = vmatpush1.msra.mxu0 0.0
    %289 = vmatprep.subr.mxu0 0.0
    %290 = vmatpush1.msra.mxu0 0.0
    %291 = vmatprep.subr.mxu0 0.0
    %292 = vmatpush1.msra.mxu0 0.0
    %293 = vmatprep.subr.mxu0 0.0
    %294 = vmatpush1.msra.mxu0 0.0
    %295 = vmatprep.subr.mxu0 0.0
    %296 = vmatpush1.msra.mxu0 0.0
    %297 = vmatprep.subr.mxu0 0.0
    %298 = vmatpush1.msra.mxu0 0.0
    %299 = vmatprep.subr.mxu0 0.0
    %300 = vmatpush1.msra.mxu0 0.0
    %301 = vmatprep.subr.mxu0 0.0
    %302 = vmatpush1.msra.mxu0 0.0
    %303 = vmatprep.subr.mxu0 0.0
    %304 = vmatpush1.msra.mxu0 0.0
    %305 = vmatprep.subr.mxu0 0.0
    %306 = vmatpush1.msra.mxu0 0.0
    %307 = vmatprep.subr.mxu0 0.0
    %308 = vmatpush1.msra.mxu0 0.0
    %309 = vmatprep.subr.mxu0 0.0
    %310 = vmatpush1.msra.mxu0 0.0
    %311 = vmatprep.subr.mxu0 0.0
    %312 = vmatpush1.msra.mxu0 0.0
    %313 = vmatprep.mubr.f32.mxu0 0.0
    %314 = vmatmul.mubr.f32.gmra.mrb[0].mxu0 %v239
    %v315 = vpop.f32.mrb[0].mxu0
    %v316 = vadd.f32 %v228, %v315
    %v317 = vpop.f32.mrb[0].mxu0
    %v318 = vadd.f32 %v228, %v317
    %319 = vmatprep.mubr.f32.mxu0 0.0
    %320 = vmatmul.mubr.f32.gmra.mrb[0].mxu0 %v241
    %v321 = vpop.f32.mrb[0].mxu0
    %v322 = vadd.f32 %v232, %v321
    %v323 = vpop.f32.mrb[0].mxu0
    %v324 = vadd.f32 %v232, %v323
    %325 = vdwg.mxu0
    %v326 = vadd.f32 %v316, %v318
    %327 = vadd.xlane.f32.xlu0 %v326
    %v328 = vpop.xlane.xlu0 %327
    %v329 = vsel %vm181, %v322, 0.0
    %v330 = vsel %vm181, %v324, 0.0
    %v331 = vadd.f32 %v329, %v330
    %332 = vadd.xlane.f32.xlu0 %v331
    %v333 = vpop.xlane.xlu0 %332
    %v334 = vmul.f32 %v328, %v187
    %v335 = vmul.f32 %v333, %v187
    %v336 = vmul.f32 %v316, %v316
    %v337 = vmul.f32 %v318, %v318
    %v338 = vmul.f32 %v322, %v322
    %v339 = vmul.f32 %v324, %v324
    %v340 = vadd.f32 %v336, %v337
    %341 = vadd.xlane.f32.xlu0 %v340
    %v342 = vpop.xlane.xlu0 %341
    %v343 = vsel %vm181, %v338, 0.0
    %v344 = vsel %vm181, %v339, 0.0
    %v345 = vadd.f32 %v343, %v344
    %346 = vadd.xlane.f32.xlu0 %v345
    %v347 = vpop.xlane.xlu0 %346
    %v348 = vmul.f32 %v342, %v187
    %v349 = vmul.f32 %v347, %v187
    %v350 = vmul.f32 %v334, %v334
    %v351 = vmul.f32 %v335, %v335
    %v352 = vsub.f32 %v348, %v350
    %v353 = vsub.f32 %v349, %v351
    %v354 = vmax.f32 %v352, 0.0
    %v355 = vmax.f32 %v353, 0.0
    %v356 = vsub.f32 %v316, %v334
    %v357 = vsub.f32 %v318, %v334
    %v358 = vsub.f32 %v322, %v335
    %v359 = vsub.f32 %v324, %v335
    %v360 = vadd.f32 %v354, 1e-05
    %v361 = vadd.f32 %v355, 1e-05
    %v362 = vrsqrt.pop %v360
    %v363 = vrsqrt.pop %v361
    %v364 = vmul.f32 %v356, %v362
    %v365 = vmul.f32 %v357, %v362
    %v366 = vmul.f32 %v358, %v363
    %v367 = vmul.f32 %v359, %v363
    %v368 = vmax.f32 %v364, 0.0
    %v369 = vmax.f32 %v365, 0.0
    %v370 = vmax.f32 %v366, 0.0
    %v371 = vmax.f32 %v367, 0.0
    %372 = vset.pattern.permute.xlu0 34
    %373 = vperm.xlu0 %372, %v77
    %v374 = vpop.permute.xlu0 %373
    %376 = vrot.lane.b32.xlu0 %v77, 110
    %v377 = vpop.permute.xlu0 %376
    %v378 = vsel %vm238, %v377, 0
    %v381 = vsel %vm181, %v370, 0
    %v384 = vsel %vm181, %v371, 0
    %386 = vmatprep.subr.mxu0 %v369
    %387 = vmatpush1.msra.mxu0 %v368
    %388 = vmatprep.subr.mxu0 %v384
    %389 = vmatpush1.msra.mxu0 %v381
    %390 = vmatprep.subr.mxu0 0.0
    %391 = vmatpush1.msra.mxu0 0.0
    %392 = vmatprep.subr.mxu0 0.0
    %393 = vmatpush1.msra.mxu0 0.0
    %394 = vmatprep.subr.mxu0 0.0
    %395 = vmatpush1.msra.mxu0 0.0
    %396 = vmatprep.subr.mxu0 0.0
    %397 = vmatpush1.msra.mxu0 0.0
    %398 = vmatprep.subr.mxu0 0.0
    %399 = vmatpush1.msra.mxu0 0.0
    %400 = vmatprep.subr.mxu0 0.0
    %401 = vmatpush1.msra.mxu0 0.0
    %402 = vmatprep.subr.mxu0 0.0
    %403 = vmatpush1.msra.mxu0 0.0
    %404 = vmatprep.subr.mxu0 0.0
    %405 = vmatpush1.msra.mxu0 0.0
    %406 = vmatprep.subr.mxu0 0.0
    %407 = vmatpush1.msra.mxu0 0.0
    %408 = vmatprep.subr.mxu0 0.0
    %409 = vmatpush1.msra.mxu0 0.0
    %410 = vmatprep.subr.mxu0 0.0
    %411 = vmatpush1.msra.mxu0 0.0
    %412 = vmatprep.subr.mxu0 0.0
    %413 = vmatpush1.msra.mxu0 0.0
    %414 = vmatprep.subr.mxu0 0.0
    %415 = vmatpush1.msra.mxu0 0.0
    %416 = vmatprep.subr.mxu0 0.0
    %417 = vmatpush1.msra.mxu0 0.0
    %418 = vmatprep.subr.mxu0 0.0
    %419 = vmatpush1.msra.mxu0 0.0
    %420 = vmatprep.subr.mxu0 0.0
    %421 = vmatpush1.msra.mxu0 0.0
    %422 = vmatprep.subr.mxu0 0.0
    %423 = vmatpush1.msra.mxu0 0.0
    %424 = vmatprep.subr.mxu0 0.0
    %425 = vmatpush1.msra.mxu0 0.0
    %426 = vmatprep.subr.mxu0 0.0
    %427 = vmatpush1.msra.mxu0 0.0
    %428 = vmatprep.subr.mxu0 0.0
    %429 = vmatpush1.msra.mxu0 0.0
    %430 = vmatprep.subr.mxu0 0.0
    %431 = vmatpush1.msra.mxu0 0.0
    %432 = vmatprep.subr.mxu0 0.0
    %433 = vmatpush1.msra.mxu0 0.0
    %434 = vmatprep.subr.mxu0 0.0
    %435 = vmatpush1.msra.mxu0 0.0
    %436 = vmatprep.subr.mxu0 0.0
    %437 = vmatpush1.msra.mxu0 0.0
    %438 = vmatprep.subr.mxu0 0.0
    %439 = vmatpush1.msra.mxu0 0.0
    %440 = vmatprep.subr.mxu0 0.0
    %441 = vmatpush1.msra.mxu0 0.0
    %442 = vmatprep.subr.mxu0 0.0
    %443 = vmatpush1.msra.mxu0 0.0
    %444 = vmatprep.subr.mxu0 0.0
    %445 = vmatpush1.msra.mxu0 0.0
    %446 = vmatprep.subr.mxu0 0.0
    %447 = vmatpush1.msra.mxu0 0.0
    %448 = vmatprep.subr.mxu0 0.0
    %449 = vmatpush1.msra.mxu0 0.0
    %450 = vmatprep.mubr.f32.mxu0 0.0
    %451 = vmatmul.mubr.f32.gmra.mrb[0].mxu0 %v378
    %v452 = vpop.f32.mrb[0].mxu0
    %v453 = vadd.f32 %v374, %v452
    %v454 = vpop.f32.mrb[0].mxu0
    %v455 = vadd.f32 %v374, %v454
    %456 = vdwg.mxu0
    %vm457 = vcmask 1040384
    %v458 = vsel %vm457, %v453, 0.0
    %v459 = vsel %vm457, %v455, 0.0
    %v460 = vadd.f32 %v458, %v459
    %461 = vadd.xlane.f32.xlu0 %v460
    %v462 = vpop.xlane.xlu0 %461
    %v463 = vmul.f32 %v462, %v187
    %v464 = vmul.f32 %v453, %v453
    %v465 = vmul.f32 %v455, %v455
    %v466 = vsel %vm457, %v464, 0.0
    %v467 = vsel %vm457, %v465, 0.0
    %v468 = vadd.f32 %v466, %v467
    %469 = vadd.xlane.f32.xlu0 %v468
    %v470 = vpop.xlane.xlu0 %469
    %v471 = vmul.f32 %v470, %v187
    %v472 = vmul.f32 %v463, %v463
    %v473 = vsub.f32 %v471, %v472
    %v474 = vmax.f32 %v473, 0.0
    %v475 = vsub.f32 %v453, %v463
    %v476 = vsub.f32 %v455, %v463
    %v477 = vadd.f32 %v474, 1e-05
    %v478 = vrsqrt.pop %v477
    %v479 = vmul.f32 %v475, %v478
    %v480 = vmul.f32 %v476, %v478
    %v481 = vmax.f32 %v479, 0.0
    %v482 = vmax.f32 %v480, 0.0
    %v483 = vld [vmem:[#allocation9] sm:$0xff]
    %v484 = vld [vmem:[#allocation9 + $0x8] sm:$0x3f]
    %s485 = sld [smem:[#allocation3]]
    %s486 = sld [smem:[#allocation3 + $0x5]]
    %s487 = sld [smem:[#allocation3 + $0xa]]
    %489 = vset.pattern.permute.xlu0 32
    %490 = vperm.xlu0 %489, %v483
    %v491 = vpop.permute.xlu0 %490
    %494 = vset.pattern.permute.xlu0 32
    %495 = vperm.xlu0 %494, %v484
    %v496 = vpop.permute.xlu0 %495
    %v498 = vsel %vm91, %v483, 0
    %v500 = vsel %vm91, %v484, 0
    %502 = vmatprep.subr.mxu0 %v99
    %503 = vmatpush1.msra.mxu0 %v97
    %504 = vmatprep.subr.mxu0 0.0
    %505 = vmatpush1.msra.mxu0 0.0
    %506 = vmatprep.subr.mxu0 0.0
    %507 = vmatpush1.msra.mxu0 0.0
    %508 = vmatprep.subr.mxu0 0.0
    %509 = vmatpush1.msra.mxu0 0.0
    %510 = vmatprep.subr.mxu0 0.0
    %511 = vmatpush1.msra.mxu0 0.0
    %512 = vmatprep.subr.mxu0 0.0
    %513 = vmatpush1.msra.mxu0 0.0
    %514 = vmatprep.subr.mxu0 0.0
    %515 = vmatpush1.msra.mxu0 0.0
    %516 = vmatprep.subr.mxu0 0.0
    %517 = vmatpush1.msra.mxu0 0.0
    %518 = vmatprep.subr.mxu0 0.0
    %519 = vmatpush1.msra.mxu0 0.0
    %520 = vmatprep.subr.mxu0 0.0
    %521 = vmatpush1.msra.mxu0 0.0
    %522 = vmatprep.subr.mxu0 0.0
    %523 = vmatpush1.msra.mxu0 0.0
    %524 = vmatprep.subr.mxu0 0.0
    %525 = vmatpush1.msra.mxu0 0.0
    %526 = vmatprep.subr.mxu0 0.0
    %527 = vmatpush1.msra.mxu0 0.0
    %528 = vmatprep.subr.mxu0 0.0
    %529 = vmatpush1.msra.mxu0 0.0
    %530 = vmatprep.subr.mxu0 0.0
    %531 = vmatpush1.msra.mxu0 0.0
    %532 = vmatprep.subr.mxu0 0.0
    %533 = vmatpush1.msra.mxu0 0.0
    %534 = vmatprep.subr.mxu0 0.0
    %535 = vmatpush1.msra.mxu0 0.0
    %536 = vmatprep.subr.mxu0 0.0
    %537 = vmatpush1.msra.mxu0 0.0
    %538 = vmatprep.subr.mxu0 0.0
    %539 = vmatpush1.msra.mxu0 0.0
    %540 = vmatprep.subr.mxu0 0.0
    %541 = vmatpush1.msra.mxu0 0.0
    %542 = vmatprep.subr.mxu0 0.0
    %543 = vmatpush1.msra.mxu0 0.0
    %544 = vmatprep.subr.mxu0 0.0
    %545 = vmatpush1.msra.mxu0 0.0
    %546 = vmatprep.subr.mxu0 0.0
    %547 = vmatpush1.msra.mxu0 0.0
    %548 = vmatprep.subr.mxu0 0.0
    %549 = vmatpush1.msra.mxu0 0.0
    %550 = vmatprep.subr.mxu0 0.0
    %551 = vmatpush1.msra.mxu0 0.0
    %552 = vmatprep.subr.mxu0 0.0
    %553 = vmatpush1.msra.mxu0 0.0
    %554 = vmatprep.subr.mxu0 0.0
    %555 = vmatpush1.msra.mxu0 0.0
    %556 = vmatprep.subr.mxu0 0.0
    %557 = vmatpush1.msra.mxu0 0.0
    %558 = vmatprep.subr.mxu0 0.0
    %559 = vmatpush1.msra.mxu0 0.0
    %560 = vmatprep.subr.mxu0 0.0
    %561 = vmatpush1.msra.mxu0 0.0
    %562 = vmatprep.subr.mxu0 0.0
    %563 = vmatpush1.msra.mxu0 0.0
    %564 = vmatprep.subr.mxu0 0.0
    %565 = vmatpush1.msra.mxu0 0.0
    %566 = vmatprep.mubr.f32.mxu0 0.0
    %567 = vmatmul.mubr.f32.gmra.mrb[0].mxu0 %v498
    %v568 = vpop.f32.mrb[0].mxu0
    %v569 = vadd.f32 %v491, %v568
    %v570 = vpop.f32.mrb[0].mxu0
    %v571 = vadd.f32 %v491, %v570
    %572 = vmatprep.mubr.f32.mxu0 0.0
    %573 = vmatmul.mubr.f32.gmra.mrb[0].mxu0 %v500
    %v574 = vpop.f32.mrb[0].mxu0
    %v575 = vadd.f32 %v496, %v574
    %v576 = vpop.f32.mrb[0].mxu0
    %v577 = vadd.f32 %v496, %v576
    %578 = vdwg.mxu0
    %v579 = vadd.f32 %v569, %v571
    %580 = vadd.xlane.f32.xlu0 %v579
    %v581 = vpop.xlane.xlu0 %580
    %v582 = vsel %vm181, %v575, 0.0
    %v583 = vsel %vm181, %v577, 0.0
    %v584 = vadd.f32 %v582, %v583
    %585 = vadd.xlane.f32.xlu0 %v584
    %v586 = vpop.xlane.xlu0 %585
    %v587 = vmul.f32 %v581, %v187
    %v588 = vmul.f32 %v586, %v187
    %v589 = vmul.f32 %v569, %v569
    %v590 = vmul.f32 %v571, %v571
    %v591 = vmul.f32 %v575, %v575
    %v592 = vmul.f32 %v577, %v577
    %v593 = vadd.f32 %v589, %v590
    %594 = vadd.xlane.f32.xlu0 %v593
    %v595 = vpop.xlane.xlu0 %594
    %v596 = vsel %vm181, %v591, 0.0
    %v597 = vsel %vm181, %v592, 0.0
    %v598 = vadd.f32 %v596, %v597
    %599 = vadd.xlane.f32.xlu0 %v598
    %v600 = vpop.xlane.xlu0 %599
    %v601 = vmul.f32 %v595, %v187
    %v602 = vmul.f32 %v600, %v187
    %v603 = vmul.f32 %v587, %v587
    %v604 = vmul.f32 %v588, %v588
    %v605 = vsub.f32 %v601, %v603
    %v606 = vsub.f32 %v602, %v604
    %v607 = vmax.f32 %v605, 0.0
    %v608 = vmax.f32 %v606, 0.0
    %v609 = vsub.f32 %v569, %v587
    %v610 = vsub.f32 %v571, %v587
    %v611 = vsub.f32 %v575, %v588
    %v612 = vsub.f32 %v577, %v588
    %v613 = vadd.f32 %v607, 1e-05
    %v614 = vadd.f32 %v608, 1e-05
    %v615 = vrsqrt.pop %v613
    %v616 = vrsqrt.pop %v614
    %v617 = vmul.f32 %v609, %v615
    %v618 = vmul.f32 %v610, %v615
    %v619 = vmul.f32 %v611, %v616
    %v620 = vmul.f32 %v612, %v616
    %v621 = vmax.f32 %v617, 0.0
    %v622 = vmax.f32 %v618, 0.0
    %v623 = vmax.f32 %v619, 0.0
    %v624 = vmax.f32 %v620, 0.0
    %625 = vset.pattern.permute.xlu0 33
    %626 = vperm.xlu0 %625, %v483
    %v627 = vpop.permute.xlu0 %626
    %629 = vset.pattern.permute.xlu0 33
    %630 = vperm.xlu0 %629, %v484
    %v631 = vpop.permute.xlu0 %630
    %633 = vrot.lane.b32.xlu0 %v483, 124
    %v634 = vpop.permute.xlu0 %633
    %635 = vrot.lane.b32.xlu0 %v484, 124
    %v636 = vpop.permute.xlu0 %635
    %v637 = vsel %vm238, %v634, 0
    %v639 = vsel %vm238, %v636, 0
    %v642 = vsel %vm181, %v623, 0
    %v645 = vsel %vm181, %v624, 0
    %647 = vmatprep.subr.mxu0 %v622
    %648 = vmatpush1.msra.mxu0 %v621
    %649 = vmatprep.subr.mxu0 %v645
    %650 = vmatpush1.msra.mxu0 %v642
    %651 = vmatprep.subr.mxu0 0.0
    %652 = vmatpush1.msra.mxu0 0.0
    %653 = vmatprep.subr.mxu0 0.0
    %654 = vmatpush1.msra.mxu0 0.0
    %655 = vmatprep.subr.mxu0 0.0
    %656 = vmatpush1.msra.mxu0 0.0
    %657 = vmatprep.subr.mxu0 0.0
    %658 = vmatpush1.msra.mxu0 0.0
    %659 = vmatprep.subr.mxu0 0.0
    %660 = vmatpush1.msra.mxu0 0.0
    %661 = vmatprep.subr.mxu0 0.0
    %662 = vmatpush1.msra.mxu0 0.0
    %663 = vmatprep.subr.mxu0 0.0
    %664 = vmatpush1.msra.mxu0 0.0
    %665 = vmatprep.subr.mxu0 0.0
    %666 = vmatpush1.msra.mxu0 0.0
    %667 = vmatprep.subr.mxu0 0.0
    %668 = vmatpush1.msra.mxu0 0.0
    %669 = vmatprep.subr.mxu0 0.0
    %670 = vmatpush1.msra.mxu0 0.0
    %671 = vmatprep.subr.mxu0 0.0
    %672 = vmatpush1.msra.mxu0 0.0
    %673 = vmatprep.subr.mxu0 0.0
    %674 = vmatpush1.msra.mxu0 0.0
    %675 = vmatprep.subr.mxu0 0.0
    %676 = vmatpush1.msra.mxu0 0.0
    %677 = vmatprep.subr.mxu0 0.0
    %678 = vmatpush1.msra.mxu0 0.0
    %679 = vmatprep.subr.mxu0 0.0
    %680 = vmatpush1.msra.mxu0 0.0
    %681 = vmatprep.subr.mxu0 0.0
    %682 = vmatpush1.msra.mxu0 0.0
    %683 = vmatprep.subr.mxu0 0.0
    %684 = vmatpush1.msra.mxu0 0.0
    %685 = vmatprep.subr.mxu0 0.0
    %686 = vmatpush1.msra.mxu0 0.0
    %687 = vmatprep.subr.mxu0 0.0
    %688 = vmatpush1.msra.mxu0 0.0
    %689 = vmatprep.subr.mxu0 0.0
    %690 = vmatpush1.msra.mxu0 0.0
    %691 = vmatprep.subr.mxu0 0.0
    %692 = vmatpush1.msra.mxu0 0.0
    %693 = vmatprep.subr.mxu0 0.0
    %694 = vmatpush1.msra.mxu0 0.0
    %695 = vmatprep.subr.mxu0 0.0
    %696 = vmatpush1.msra.mxu0 0.0
    %697 = vmatprep.subr.mxu0 0.0
    %698 = vmatpush1.msra.mxu0 0.0
    %699 = vmatprep.subr.mxu0 0.0
    %700 = vmatpush1.msra.mxu0 0.0
    %701 = vmatprep.subr.mxu0 0.0
    %702 = vmatpush1.msra.mxu0 0.0
    %703 = vmatprep.subr.mxu0 0.0
    %704 = vmatpush1.msra.mxu0 0.0
    %705 = vmatprep.subr.mxu0 0.0
    %706 = vmatpush1.msra.mxu0 0.0
    %707 = vmatprep.subr.mxu0 0.0
    %708 = vmatpush1.msra.mxu0 0.0
    %709 = vmatprep.subr.mxu0 0.0
    %710 = vmatpush1.msra.mxu0 0.0
    %711 = vmatprep.mubr.f32.mxu0 0.0
    %712 = vmatmul.mubr.f32.gmra.mrb[0].mxu0 %v637
    %v713 = vpop.f32.mrb[0].mxu0
    %v714 = vadd.f32 %v627, %v713
    %v715 = vpop.f32.mrb[0].mxu0
    %v716 = vadd.f32 %v627, %v715
    %717 = vmatprep.mubr.f32.mxu0 0.0
    %718 = vmatmul.mubr.f32.gmra.mrb[0].mxu0 %v639
    %v719 = vpop.f32.mrb[0].mxu0
    %v720 = vadd.f32 %v631, %v719
    %v721 = vpop.f32.mrb[0].mxu0
    %v722 = vadd.f32 %v631, %v721
    %723 = vdwg.mxu0
    %v724 = vadd.f32 %v714, %v716
    %725 = vadd.xlane.f32.xlu0 %v724
    %v726 = vpop.xlane.xlu0 %725
    %v727 = vsel %vm181, %v720, 0.0
    %v728 = vsel %vm181, %v722, 0.0
    %v729 = vadd.f32 %v727, %v728
    %730 = vadd.xlane.f32.xlu0 %v729
    %v731 = vpop.xlane.xlu0 %730
    %v732 = vmul.f32 %v726, %v187
    %v733 = vmul.f32 %v731, %v187
    %v734 = vmul.f32 %v714, %v714
    %v735 = vmul.f32 %v716, %v716
    %v736 = vmul.f32 %v720, %v720
    %v737 = vmul.f32 %v722, %v722
    %v738 = vadd.f32 %v734, %v735
    %739 = vadd.xlane.f32.xlu0 %v738
    %v740 = vpop.xlane.xlu0 %739
    %v741 = vsel %vm181, %v736, 0.0
    %v742 = vsel %vm181, %v737, 0.0
    %v743 = vadd.f32 %v741, %v742
    %744 = vadd.xlane.f32.xlu0 %v743
    %v745 = vpop.xlane.xlu0 %744
    %v746 = vmul.f32 %v740, %v187
    %v747 = vmul.f32 %v745, %v187
    %v748 = vmul.f32 %v732, %v732
    %v749 = vmul.f32 %v733, %v733
    %v750 = vsub.f32 %v746, %v748
    %v751 = vsub.f32 %v747, %v749
    %v752 = vmax.f32 %v750, 0.0
    %v753 = vmax.f32 %v751, 0.0
    %v754 = vsub.f32 %v714, %v732
    %v755 = vsub.f32 %v716, %v732
    %v756 = vsub.f32 %v720, %v733
    %v757 = vsub.f32 %v722, %v733
    %v758 = vadd.f32 %v752, 1e-05
    %v759 = vadd.f32 %v753, 1e-05
    %v760 = vrsqrt.pop %v758
    %v761 = vrsqrt.pop %v759
    %v762 = vmul.f32 %v754, %v760
    %v763 = vmul.f32 %v755, %v760
    %v764 = vmul.f32 %v756, %v761
    %v765 = vmul.f32 %v757, %v761
    %v766 = vmax.f32 %v762, 0.0
    %v767 = vmax.f32 %v763, 0.0
    %v768 = vmax.f32 %v764, 0.0
    %v769 = vmax.f32 %v765, 0.0
    %770 = vset.pattern.permute.xlu0 34
    %771 = vperm.xlu0 %770, %v483
    %v772 = vpop.permute.xlu0 %771
    %774 = vrot.lane.b32.xlu0 %v483, 110
    %v775 = vpop.permute.xlu0 %774
    %v776 = vsel %vm238, %v775, 0
    %v779 = vsel %vm181, %v768, 0
    %v782 = vsel %vm181, %v769, 0
    %784 = vmatprep.subr.mxu0 %v767
    %785 = vmatpush1.msra.mxu0 %v766
    %786 = vmatprep.subr.mxu0 %v782
    %787 = vmatpush1.msra.mxu0 %v779
    %788 = vmatprep.subr.mxu0 0.0
    %789 = vmatpush1.msra.mxu0 0.0
    %790 = vmatprep.subr.mxu0 0.0
    %791 = vmatpush1.msra.mxu0 0.0
    %792 = vmatprep.subr.mxu0 0.0
    %793 = vmatpush1.msra.mxu0 0.0
    %794 = vmatprep.subr.mxu0 0.0
    %795 = vmatpush1.msra.mxu0 0.0
    %796 = vmatprep.subr.mxu0 0.0
    %797 = vmatpush1.msra.mxu0 0.0
    %798 = vmatprep.subr.mxu0 0.0
    %799 = vmatpush1.msra.mxu0 0.0
    %800 = vmatprep.subr.mxu0 0.0
    %801 = vmatpush1.msra.mxu0 0.0
    %802 = vmatprep.subr.mxu0 0.0
    %803 = vmatpush1.msra.mxu0 0.0
    %804 = vmatprep.subr.mxu0 0.0
    %805 = vmatpush1.msra.mxu0 0.0
    %806 = vmatprep.subr.mxu0 0.0
    %807 = vmatpush1.msra.mxu0 0.0
    %808 = vmatprep.subr.mxu0 0.0
    %809 = vmatpush1.msra.mxu0 0.0
    %810 = vmatprep.subr.mxu0 0.0
    %811 = vmatpush1.msra.mxu0 0.0
    %812 = vmatprep.subr.mxu0 0.0
    %813 = vmatpush1.msra.mxu0 0.0
    %814 = vmatprep.subr.mxu0 0.0
    %815 = vmatpush1.msra.mxu0 0.0
    %816 = vmatprep.subr.mxu0 0.0
    %817 = vmatpush1.msra.mxu0 0.0
    %818 = vmatprep.subr.mxu0 0.0
    %819 = vmatpush1.msra.mxu0 0.0
    %820 = vmatprep.subr.mxu0 0.0
    %821 = vmatpush1.msra.mxu0 0.0
    %822 = vmatprep.subr.mxu0 0.0
    %823 = vmatpush1.msra.mxu0 0.0
    %824 = vmatprep.subr.mxu0 0.0
    %825 = vmatpush1.msra.mxu0 0.0
    %826 = vmatprep.subr.mxu0 0.0
    %827 = vmatpush1.msra.mxu0 0.0
    %828 = vmatprep.subr.mxu0 0.0
    %829 = vmatpush1.msra.mxu0 0.0
    %830 = vmatprep.subr.mxu0 0.0
    %831 = vmatpush1.msra.mxu0 0.0
    %832 = vmatprep.subr.mxu0 0.0
    %833 = vmatpush1.msra.mxu0 0.0
    %834 = vmatprep.subr.mxu0 0.0
    %835 = vmatpush1.msra.mxu0 0.0
    %836 = vmatprep.subr.mxu0 0.0
    %837 = vmatpush1.msra.mxu0 0.0
    %838 = vmatprep.subr.mxu0 0.0
    %839 = vmatpush1.msra.mxu0 0.0
    %840 = vmatprep.subr.mxu0 0.0
    %841 = vmatpush1.msra.mxu0 0.0
    %842 = vmatprep.subr.mxu0 0.0
    %843 = vmatpush1.msra.mxu0 0.0
    %844 = vmatprep.subr.mxu0 0.0
    %845 = vmatpush1.msra.mxu0 0.0
    %846 = vmatprep.subr.mxu0 0.0
    %847 = vmatpush1.msra.mxu0 0.0
    %848 = vmatprep.mubr.f32.mxu0 0.0
    %849 = vmatmul.mubr.f32.gmra.mrb[0].mxu0 %v776
    %v850 = vpop.f32.mrb[0].mxu0
    %v851 = vadd.f32 %v772, %v850
    %v852 = vpop.f32.mrb[0].mxu0
    %v853 = vadd.f32 %v772, %v852
    %854 = vdwg.mxu0
    %v855 = vld [vmem:[#allocation7] sm:$0xff]
    %v856 = vstv %s486
    %v857 = vmul.f32 %v856, %v855
    %v858 = vmul.f32 %v851, %v851
    %v859 = vmul.f32 %v853, %v853
    %v860 = vsel %vm96, %v858, 0.0
    %v861 = vrot.slane %v860, 4
    %v862 = vadd.f32 %v860, %v861
    %v863 = vrot.slane %v862, 2
    %v864 = vadd.f32 %v862, %v863
    %v865 = vrot.slane %v864, 1
    %v866 = vadd.f32 %v864, %v865
    %v867 = vsel %vm96, %v859, 0.0
    %v868 = vrot.slane %v867, 4
    %v869 = vadd.f32 %v867, %v868
    %v870 = vrot.slane %v869, 2
    %v871 = vadd.f32 %v869, %v870
    %v872 = vrot.slane %v871, 1
    %v873 = vadd.f32 %v871, %v872
    %v874 = vstv %s485
    %v875 = vmul.f32 %v874, %v866
    %v876 = vmul.f32 %v874, %v873
    %v878 = vcombine.high %v857, %v857
    %v880 = vmul.f32 %v851, %v857
    %v881 = vmul.f32 %v853, %v878
    %v882 = vsel %vm96, %v880, 0.0
    %v883 = vrot.slane %v882, 4
    %v884 = vadd.f32 %v882, %v883
    %v885 = vrot.slane %v884, 2
    %v886 = vadd.f32 %v884, %v885
    %v887 = vrot.slane %v886, 1
    %v888 = vadd.f32 %v886, %v887
    %v889 = vsel %vm96, %v881, 0.0
    %v890 = vrot.slane %v889, 4
    %v891 = vadd.f32 %v889, %v890
    %v892 = vrot.slane %v891, 2
    %v893 = vadd.f32 %v891, %v892
    %v894 = vrot.slane %v893, 1
    %v895 = vadd.f32 %v893, %v894
    %v896 = vsub.f32 %v481, %v875
    %v897 = vsub.f32 %v482, %v876
    %v898 = vadd.f32 %v896, %v888
    %v899 = vadd.f32 %v897, %v895
    %v900 = vstv %s487
    %v901 = vmul.f32 %v900, %v851
    %v902 = vmul.f32 %v900, %v853
    %v905 = vcombine.low %v901, %v902
    %v907 = vsub.f32 %v76, %v905
    %v908 = vadd.f32 %v907, %v857
    %s909 = scalar_lea.vmem [#allocation9], 16
    %v910 = vld [vmem:[%s909] sm:$0xff]
    %v911 = vld [vmem:[%s909 + $0x8] sm:$0x3f]
    %s912 = sld [smem:[#allocation3 + $0x1]]
    %s913 = sld [smem:[#allocation3 + $0x6]]
    %s914 = sld [smem:[#allocation3 + $0xb]]
    %916 = vset.pattern.permute.xlu0 32
    %917 = vperm.xlu0 %916, %v910
    %v918 = vpop.permute.xlu0 %917
    %921 = vset.pattern.permute.xlu0 32
    %922 = vperm.xlu0 %921, %v911
    %v923 = vpop.permute.xlu0 %922
    %v926 = vcombine.high %v908, %v908
    %v927 = vsel %vm91, %v910, 0
    %v929 = vsel %vm91, %v911, 0
    %v931 = vsel %vm96, %v908, 0
    %v933 = vsel %vm96, %v926, 0
    %935 = vmatprep.subr.mxu0 %v933
    %936 = vmatpush1.msra.mxu0 %v931
    %937 = vmatprep.subr.mxu0 0.0
    %938 = vmatpush1.msra.mxu0 0.0
    %939 = vmatprep.subr.mxu0 0.0
    %940 = vmatpush1.msra.mxu0 0.0
    %941 = vmatprep.subr.mxu0 0.0
    %942 = vmatpush1.msra.mxu0 0.0
    %943 = vmatprep.subr.mxu0 0.0
    %944 = vmatpush1.msra.mxu0 0.0
    %945 = vmatprep.subr.mxu0 0.0
    %946 = vmatpush1.msra.mxu0 0.0
    %947 = vmatprep.subr.mxu0 0.0
    %948 = vmatpush1.msra.mxu0 0.0
    %949 = vmatprep.subr.mxu0 0.0
    %950 = vmatpush1.msra.mxu0 0.0
    %951 = vmatprep.subr.mxu0 0.0
    %952 = vmatpush1.msra.mxu0 0.0
    %953 = vmatprep.subr.mxu0 0.0
    %954 = vmatpush1.msra.mxu0 0.0
    %955 = vmatprep.subr.mxu0 0.0
    %956 = vmatpush1.msra.mxu0 0.0
    %957 = vmatprep.subr.mxu0 0.0
    %958 = vmatpush1.msra.mxu0 0.0
    %959 = vmatprep.subr.mxu0 0.0
    %960 = vmatpush1.msra.mxu0 0.0
    %961 = vmatprep.subr.mxu0 0.0
    %962 = vmatpush1.msra.mxu0 0.0
    %963 = vmatprep.subr.mxu0 0.0
    %964 = vmatpush1.msra.mxu0 0.0
    %965 = vmatprep.subr.mxu0 0.0
    %966 = vmatpush1.msra.mxu0 0.0
    %967 = vmatprep.subr.mxu0 0.0
    %968 = vmatpush1.msra.mxu0 0.0
    %969 = vmatprep.subr.mxu0 0.0
    %970 = vmatpush1.msra.mxu0 0.0
    %971 = vmatprep.subr.mxu0 0.0
    %972 = vmatpush1.msra.mxu0 0.0
    %973 = vmatprep.subr.mxu0 0.0
    %974 = vmatpush1.msra.mxu0 0.0
    %975 = vmatprep.subr.mxu0 0.0
    %976 = vmatpush1.msra.mxu0 0.0
    %977 = vmatprep.subr.mxu0 0.0
    %978 = vmatpush1.msra.mxu0 0.0
    %979 = vmatprep.subr.mxu0 0.0
    %980 = vmatpush1.msra.mxu0 0.0
    %981 = vmatprep.subr.mxu0 0.0
    %982 = vmatpush1.msra.mxu0 0.0
    %983 = vmatprep.subr.mxu0 0.0
    %984 = vmatpush1.msra.mxu0 0.0
    %985 = vmatprep.subr.mxu0 0.0
    %986 = vmatpush1.msra.mxu0 0.0
    %987 = vmatprep.subr.mxu0 0.0
    %988 = vmatpush1.msra.mxu0 0.0
    %989 = vmatprep.subr.mxu0 0.0
    %990 = vmatpush1.msra.mxu0 0.0
    %991 = vmatprep.subr.mxu0 0.0
    %992 = vmatpush1.msra.mxu0 0.0
    %993 = vmatprep.subr.mxu0 0.0
    %994 = vmatpush1.msra.mxu0 0.0
    %995 = vmatprep.subr.mxu0 0.0
    %996 = vmatpush1.msra.mxu0 0.0
    %997 = vmatprep.subr.mxu0 0.0
    %998 = vmatpush1.msra.mxu0 0.0
    %999 = vmatprep.mubr.f32.mxu0 0.0
    %1000 = vmatmul.mubr.f32.gmra.mrb[0].mxu0 %v927
    %v1001 = vpop.f32.mrb[0].mxu0
    %v1002 = vadd.f32 %v918, %v1001
    %v1003 = vpop.f32.mrb[0].mxu0
    %v1004 = vadd.f32 %v918, %v1003
    %1005 = vmatprep.mubr.f32.mxu0 0.0
    %1006 = vmatmul.mubr.f32.gmra.mrb[0].mxu0 %v929
    %v1007 = vpop.f32.mrb[0].mxu0
    %v1008 = vadd.f32 %v923, %v1007
    %v1009 = vpop.f32.mrb[0].mxu0
    %v1010 = vadd.f32 %v923, %v1009
    %1011 = vdwg.mxu0
    %v1012 = vadd.f32 %v1002, %v1004
    %1013 = vadd.xlane.f32.xlu0 %v1012
    %v1014 = vpop.xlane.xlu0 %1013
    %v1015 = vsel %vm181, %v1008, 0.0
    %v1016 = vsel %vm181, %v1010, 0.0
    %v1017 = vadd.f32 %v1015, %v1016
    %1018 = vadd.xlane.f32.xlu0 %v1017
    %v1019 = vpop.xlane.xlu0 %1018
    %v1020 = vmul.f32 %v1014, %v187
    %v1021 = vmul.f32 %v1019, %v187
    %v1022 = vmul.f32 %v1002, %v1002
    %v1023 = vmul.f32 %v1004, %v1004
    %v1024 = vmul.f32 %v1008, %v1008
    %v1025 = vmul.f32 %v1010, %v1010
    %v1026 = vadd.f32 %v1022, %v1023
    %1027 = vadd.xlane.f32.xlu0 %v1026
    %v1028 = vpop.xlane.xlu0 %1027
    %v1029 = vsel %vm181, %v1024, 0.0
    %v1030 = vsel %vm181, %v1025, 0.0
    %v1031 = vadd.f32 %v1029, %v1030
    %1032 = vadd.xlane.f32.xlu0 %v1031
    %v1033 = vpop.xlane.xlu0 %1032
    %v1034 = vmul.f32 %v1028, %v187
    %v1035 = vmul.f32 %v1033, %v187
    %v1036 = vmul.f32 %v1020, %v1020
    %v1037 = vmul.f32 %v1021, %v1021
    %v1038 = vsub.f32 %v1034, %v1036
    %v1039 = vsub.f32 %v1035, %v1037
    %v1040 = vmax.f32 %v1038, 0.0
    %v1041 = vmax.f32 %v1039, 0.0
    %v1042 = vsub.f32 %v1002, %v1020
    %v1043 = vsub.f32 %v1004, %v1020
    %v1044 = vsub.f32 %v1008, %v1021
    %v1045 = vsub.f32 %v1010, %v1021
    %v1046 = vadd.f32 %v1040, 1e-05
    %v1047 = vadd.f32 %v1041, 1e-05
    %v1048 = vrsqrt.pop %v1046
    %v1049 = vrsqrt.pop %v1047
    %v1050 = vmul.f32 %v1042, %v1048
    %v1051 = vmul.f32 %v1043, %v1048
    %v1052 = vmul.f32 %v1044, %v1049
    %v1053 = vmul.f32 %v1045, %v1049
    %v1054 = vmax.f32 %v1050, 0.0
    %v1055 = vmax.f32 %v1051, 0.0
    %v1056 = vmax.f32 %v1052, 0.0
    %v1057 = vmax.f32 %v1053, 0.0
    %1058 = vset.pattern.permute.xlu0 33
    %1059 = vperm.xlu0 %1058, %v910
    %v1060 = vpop.permute.xlu0 %1059
    %1062 = vset.pattern.permute.xlu0 33
    %1063 = vperm.xlu0 %1062, %v911
    %v1064 = vpop.permute.xlu0 %1063
    %1066 = vrot.lane.b32.xlu0 %v910, 124
    %v1067 = vpop.permute.xlu0 %1066
    %1068 = vrot.lane.b32.xlu0 %v911, 124
    %v1069 = vpop.permute.xlu0 %1068
    %v1070 = vsel %vm238, %v1067, 0
    %v1072 = vsel %vm238, %v1069, 0
    %v1075 = vsel %vm181, %v1056, 0
    %v1078 = vsel %vm181, %v1057, 0
    %1080 = vmatprep.subr.mxu0 %v1055
    %1081 = vmatpush1.msra.mxu0 %v1054
    %1082 = vmatprep.subr.mxu0 %v1078
    %1083 = vmatpush1.msra.mxu0 %v1075
    %1084 = vmatprep.subr.mxu0 0.0
    %1085 = vmatpush1.msra.mxu0 0.0
    %1086 = vmatprep.subr.mxu0 0.0
    %1087 = vmatpush1.msra.mxu0 0.0
    %1088 = vmatprep.subr.mxu0 0.0
    %1089 = vmatpush1.msra.mxu0 0.0
    %1090 = vmatprep.subr.mxu0 0.0
    %1091 = vmatpush1.msra.mxu0 0.0
    %1092 = vmatprep.subr.mxu0 0.0
    %1093 = vmatpush1.msra.mxu0 0.0
    %1094 = vmatprep.subr.mxu0 0.0
    %1095 = vmatpush1.msra.mxu0 0.0
    %1096 = vmatprep.subr.mxu0 0.0
    %1097 = vmatpush1.msra.mxu0 0.0
    %1098 = vmatprep.subr.mxu0 0.0
    %1099 = vmatpush1.msra.mxu0 0.0
    %1100 = vmatprep.subr.mxu0 0.0
    %1101 = vmatpush1.msra.mxu0 0.0
    %1102 = vmatprep.subr.mxu0 0.0
    %1103 = vmatpush1.msra.mxu0 0.0
    %1104 = vmatprep.subr.mxu0 0.0
    %1105 = vmatpush1.msra.mxu0 0.0
    %1106 = vmatprep.subr.mxu0 0.0
    %1107 = vmatpush1.msra.mxu0 0.0
    %1108 = vmatprep.subr.mxu0 0.0
    %1109 = vmatpush1.msra.mxu0 0.0
    %1110 = vmatprep.subr.mxu0 0.0
    %1111 = vmatpush1.msra.mxu0 0.0
    %1112 = vmatprep.subr.mxu0 0.0
    %1113 = vmatpush1.msra.mxu0 0.0
    %1114 = vmatprep.subr.mxu0 0.0
    %1115 = vmatpush1.msra.mxu0 0.0
    %1116 = vmatprep.subr.mxu0 0.0
    %1117 = vmatpush1.msra.mxu0 0.0
    %1118 = vmatprep.subr.mxu0 0.0
    %1119 = vmatpush1.msra.mxu0 0.0
    %1120 = vmatprep.subr.mxu0 0.0
    %1121 = vmatpush1.msra.mxu0 0.0
    %1122 = vmatprep.subr.mxu0 0.0
    %1123 = vmatpush1.msra.mxu0 0.0
    %1124 = vmatprep.subr.mxu0 0.0
    %1125 = vmatpush1.msra.mxu0 0.0
    %1126 = vmatprep.subr.mxu0 0.0
    %1127 = vmatpush1.msra.mxu0 0.0
    %1128 = vmatprep.subr.mxu0 0.0
    %1129 = vmatpush1.msra.mxu0 0.0
    %1130 = vmatprep.subr.mxu0 0.0
    %1131 = vmatpush1.msra.mxu0 0.0
    %1132 = vmatprep.subr.mxu0 0.0
    %1133 = vmatpush1.msra.mxu0 0.0
    %1134 = vmatprep.subr.mxu0 0.0
    %1135 = vmatpush1.msra.mxu0 0.0
    %1136 = vmatprep.subr.mxu0 0.0
    %1137 = vmatpush1.msra.mxu0 0.0
    %1138 = vmatprep.subr.mxu0 0.0
    %1139 = vmatpush1.msra.mxu0 0.0
    %1140 = vmatprep.subr.mxu0 0.0
    %1141 = vmatpush1.msra.mxu0 0.0
    %1142 = vmatprep.subr.mxu0 0.0
    %1143 = vmatpush1.msra.mxu0 0.0
    %1144 = vmatprep.mubr.f32.mxu0 0.0
    %1145 = vmatmul.mubr.f32.gmra.mrb[0].mxu0 %v1070
    %v1146 = vpop.f32.mrb[0].mxu0
    %v1147 = vadd.f32 %v1060, %v1146
    %v1148 = vpop.f32.mrb[0].mxu0
    %v1149 = vadd.f32 %v1060, %v1148
    %1150 = vmatprep.mubr.f32.mxu0 0.0
    %1151 = vmatmul.mubr.f32.gmra.mrb[0].mxu0 %v1072
    %v1152 = vpop.f32.mrb[0].mxu0
    %v1153 = vadd.f32 %v1064, %v1152
    %v1154 = vpop.f32.mrb[0].mxu0
    %v1155 = vadd.f32 %v1064, %v1154
    %1156 = vdwg.mxu0
    %v1157 = vadd.f32 %v1147, %v1149
    %1158 = vadd.xlane.f32.xlu0 %v1157
    %v1159 = vpop.xlane.xlu0 %1158
    %v1160 = vsel %vm181, %v1153, 0.0
    %v1161 = vsel %vm181, %v1155, 0.0
    %v1162 = vadd.f32 %v1160, %v1161
    %1163 = vadd.xlane.f32.xlu0 %v1162
    %v1164 = vpop.xlane.xlu0 %1163
    %v1165 = vmul.f32 %v1159, %v187
    %v1166 = vmul.f32 %v1164, %v187
    %v1167 = vmul.f32 %v1147, %v1147
    %v1168 = vmul.f32 %v1149, %v1149
    %v1169 = vmul.f32 %v1153, %v1153
    %v1170 = vmul.f32 %v1155, %v1155
    %v1171 = vadd.f32 %v1167, %v1168
    %1172 = vadd.xlane.f32.xlu0 %v1171
    %v1173 = vpop.xlane.xlu0 %1172
    %v1174 = vsel %vm181, %v1169, 0.0
    %v1175 = vsel %vm181, %v1170, 0.0
    %v1176 = vadd.f32 %v1174, %v1175
    %1177 = vadd.xlane.f32.xlu0 %v1176
    %v1178 = vpop.xlane.xlu0 %1177
    %v1179 = vmul.f32 %v1173, %v187
    %v1180 = vmul.f32 %v1178, %v187
    %v1181 = vmul.f32 %v1165, %v1165
    %v1182 = vmul.f32 %v1166, %v1166
    %v1183 = vsub.f32 %v1179, %v1181
    %v1184 = vsub.f32 %v1180, %v1182
    %v1185 = vmax.f32 %v1183, 0.0
    %v1186 = vmax.f32 %v1184, 0.0
    %v1187 = vsub.f32 %v1147, %v1165
    %v1188 = vsub.f32 %v1149, %v1165
    %v1189 = vsub.f32 %v1153, %v1166
    %v1190 = vsub.f32 %v1155, %v1166
    %v1191 = vadd.f32 %v1185, 1e-05
    %v1192 = vadd.f32 %v1186, 1e-05
    %v1193 = vrsqrt.pop %v1191
    %v1194 = vrsqrt.pop %v1192
    %v1195 = vmul.f32 %v1187, %v1193
    %v1196 = vmul.f32 %v1188, %v1193
    %v1197 = vmul.f32 %v1189, %v1194
    %v1198 = vmul.f32 %v1190, %v1194
    %v1199 = vmax.f32 %v1195, 0.0
    %v1200 = vmax.f32 %v1196, 0.0
    %v1201 = vmax.f32 %v1197, 0.0
    %v1202 = vmax.f32 %v1198, 0.0
    %1203 = vset.pattern.permute.xlu0 34
    %1204 = vperm.xlu0 %1203, %v910
    %v1205 = vpop.permute.xlu0 %1204
    %1207 = vrot.lane.b32.xlu0 %v910, 110
    %v1208 = vpop.permute.xlu0 %1207
    %v1209 = vsel %vm238, %v1208, 0
    %v1212 = vsel %vm181, %v1201, 0
    %v1215 = vsel %vm181, %v1202, 0
    %1217 = vmatprep.subr.mxu0 %v1200
    %1218 = vmatpush1.msra.mxu0 %v1199
    %1219 = vmatprep.subr.mxu0 %v1215
    %1220 = vmatpush1.msra.mxu0 %v1212
    %1221 = vmatprep.subr.mxu0 0.0
    %1222 = vmatpush1.msra.mxu0 0.0
    %1223 = vmatprep.subr.mxu0 0.0
    %1224 = vmatpush1.msra.mxu0 0.0
    %1225 = vmatprep.subr.mxu0 0.0
    %1226 = vmatpush1.msra.mxu0 0.0
    %1227 = vmatprep.subr.mxu0 0.0
    %1228 = vmatpush1.msra.mxu0 0.0
    %1229 = vmatprep.subr.mxu0 0.0
    %1230 = vmatpush1.msra.mxu0 0.0
    %1231 = vmatprep.subr.mxu0 0.0
    %1232 = vmatpush1.msra.mxu0 0.0
    %1233 = vmatprep.subr.mxu0 0.0
    %1234 = vmatpush1.msra.mxu0 0.0
    %1235 = vmatprep.subr.mxu0 0.0
    %1236 = vmatpush1.msra.mxu0 0.0
    %1237 = vmatprep.subr.mxu0 0.0
    %1238 = vmatpush1.msra.mxu0 0.0
    %1239 = vmatprep.subr.mxu0 0.0
    %1240 = vmatpush1.msra.mxu0 0.0
    %1241 = vmatprep.subr.mxu0 0.0
    %1242 = vmatpush1.msra.mxu0 0.0
    %1243 = vmatprep.subr.mxu0 0.0
    %1244 = vmatpush1.msra.mxu0 0.0
    %1245 = vmatprep.subr.mxu0 0.0
    %1246 = vmatpush1.msra.mxu0 0.0
    %1247 = vmatprep.subr.mxu0 0.0
    %1248 = vmatpush1.msra.mxu0 0.0
    %1249 = vmatprep.subr.mxu0 0.0
    %1250 = vmatpush1.msra.mxu0 0.0
    %1251 = vmatprep.subr.mxu0 0.0
    %1252 = vmatpush1.msra.mxu0 0.0
    %1253 = vmatprep.subr.mxu0 0.0
    %1254 = vmatpush1.msra.mxu0 0.0
    %1255 = vmatprep.subr.mxu0 0.0
    %1256 = vmatpush1.msra.mxu0 0.0
    %1257 = vmatprep.subr.mxu0 0.0
    %1258 = vmatpush1.msra.mxu0 0.0
    %1259 = vmatprep.subr.mxu0 0.0
    %1260 = vmatpush1.msra.mxu0 0.0
    %1261 = vmatprep.subr.mxu0 0.0
    %1262 = vmatpush1.msra.mxu0 0.0
    %1263 = vmatprep.subr.mxu0 0.0
    %1264 = vmatpush1.msra.mxu0 0.0
    %1265 = vmatprep.subr.mxu0 0.0
    %1266 = vmatpush1.msra.mxu0 0.0
    %1267 = vmatprep.subr.mxu0 0.0
    %1268 = vmatpush1.msra.mxu0 0.0
    %1269 = vmatprep.subr.mxu0 0.0
    %1270 = vmatpush1.msra.mxu0 0.0
    %1271 = vmatprep.subr.mxu0 0.0
    %1272 = vmatpush1.msra.mxu0 0.0
    %1273 = vmatprep.subr.mxu0 0.0
    %1274 = vmatpush1.msra.mxu0 0.0
    %1275 = vmatprep.subr.mxu0 0.0
    %1276 = vmatpush1.msra.mxu0 0.0
    %1277 = vmatprep.subr.mxu0 0.0
    %1278 = vmatpush1.msra.mxu0 0.0
    %1279 = vmatprep.subr.mxu0 0.0
    %1280 = vmatpush1.msra.mxu0 0.0
    %1281 = vmatprep.mubr.f32.mxu0 0.0
    %1282 = vmatmul.mubr.f32.gmra.mrb[0].mxu0 %v1209
    %v1283 = vpop.f32.mrb[0].mxu0
    %v1284 = vadd.f32 %v1205, %v1283
    %v1285 = vpop.f32.mrb[0].mxu0
    %v1286 = vadd.f32 %v1205, %v1285
    %1287 = vdwg.mxu0
    %s1288 = scalar_lea.vmem [#allocation7], 8
    %v1289 = vld [vmem:[%s1288] sm:$0xff]
    %v1290 = vstv %s913
    %v1291 = vmul.f32 %v1290, %v1289
    %v1292 = vmul.f32 %v1284, %v1284
    %v1293 = vmul.f32 %v1286, %v1286
    %v1294 = vsel %vm96, %v1292, 0.0
    %v1295 = vrot.slane %v1294, 4
    %v1296 = vadd.f32 %v1294, %v1295
    %v1297 = vrot.slane %v1296, 2
    %v1298 = vadd.f32 %v1296, %v1297
    %v1299 = vrot.slane %v1298, 1
    %v1300 = vadd.f32 %v1298, %v1299
    %v1301 = vsel %vm96, %v1293, 0.0
    %v1302 = vrot.slane %v1301, 4
    %v1303 = vadd.f32 %v1301, %v1302
    %v1304 = vrot.slane %v1303, 2
    %v1305 = vadd.f32 %v1303, %v1304
    %v1306 = vrot.slane %v1305, 1
    %v1307 = vadd.f32 %v1305, %v1306
    %v1308 = vstv %s912
    %v1309 = vmul.f32 %v1308, %v1300
    %v1310 = vmul.f32 %v1308, %v1307
    %v1312 = vcombine.high %v1291, %v1291
    %v1314 = vmul.f32 %v1284, %v1291
    %v1315 = vmul.f32 %v1286, %v1312
    %v1316 = vsel %vm96, %v1314, 0.0
    %v1317 = vrot.slane %v1316, 4
    %v1318 = vadd.f32 %v1316, %v1317
    %v1319 = vrot.slane %v1318, 2
    %v1320 = vadd.f32 %v1318, %v1319
    %v1321 = vrot.slane %v1320, 1
    %v1322 = vadd.f32 %v1320, %v1321
    %v1323 = vsel %vm96, %v1315, 0.0
    %v1324 = vrot.slane %v1323, 4
    %v1325 = vadd.f32 %v1323, %v1324
    %v1326 = vrot.slane %v1325, 2
    %v1327 = vadd.f32 %v1325, %v1326
    %v1328 = vrot.slane %v1327, 1
    %v1329 = vadd.f32 %v1327, %v1328
    %v1330 = vsub.f32 %v898, %v1309
    %v1331 = vsub.f32 %v899, %v1310
    %v1332 = vadd.f32 %v1330, %v1322
    %v1333 = vadd.f32 %v1331, %v1329
    %v1334 = vstv %s914
    %v1335 = vmul.f32 %v1334, %v1284
    %v1336 = vmul.f32 %v1334, %v1286
    %v1339 = vcombine.low %v1335, %v1336
    %v1341 = vsub.f32 %v908, %v1339
    %v1342 = vadd.f32 %v1341, %v1291
    %s1343 = scalar_lea.vmem [#allocation9], 32
    %v1344 = vld [vmem:[%s1343] sm:$0xff]
    %v1345 = vld [vmem:[%s1343 + $0x8] sm:$0x3f]
    %s1346 = sld [smem:[#allocation3 + $0x2]]
    %s1347 = sld [smem:[#allocation3 + $0x7]]
    %s1348 = sld [smem:[#allocation3 + $0xc]]
    %1350 = vset.pattern.permute.xlu0 32
    %1351 = vperm.xlu0 %1350, %v1344
    %v1352 = vpop.permute.xlu0 %1351
    %1355 = vset.pattern.permute.xlu0 32
    %1356 = vperm.xlu0 %1355, %v1345
    %v1357 = vpop.permute.xlu0 %1356
    %v1360 = vcombine.high %v1342, %v1342
    %v1361 = vsel %vm91, %v1344, 0
    %v1363 = vsel %vm91, %v1345, 0
    %v1365 = vsel %vm96, %v1342, 0
    %v1367 = vsel %vm96, %v1360, 0
    %1369 = vmatprep.subr.mxu0 %v1367
    %1370 = vmatpush1.msra.mxu0 %v1365
    %1371 = vmatprep.subr.mxu0 0.0
    %1372 = vmatpush1.msra.mxu0 0.0
    %1373 = vmatprep.subr.mxu0 0.0
    %1374 = vmatpush1.msra.mxu0 0.0
    %1375 = vmatprep.subr.mxu0 0.0
    %1376 = vmatpush1.msra.mxu0 0.0
    %1377 = vmatprep.subr.mxu0 0.0
    %1378 = vmatpush1.msra.mxu0 0.0
    %1379 = vmatprep.subr.mxu0 0.0
    %1380 = vmatpush1.msra.mxu0 0.0
    %1381 = vmatprep.subr.mxu0 0.0
    %1382 = vmatpush1.msra.mxu0 0.0
    %1383 = vmatprep.subr.mxu0 0.0
    %1384 = vmatpush1.msra.mxu0 0.0
    %1385 = vmatprep.subr.mxu0 0.0
    %1386 = vmatpush1.msra.mxu0 0.0
    %1387 = vmatprep.subr.mxu0 0.0
    %1388 = vmatpush1.msra.mxu0 0.0
    %1389 = vmatprep.subr.mxu0 0.0
    %1390 = vmatpush1.msra.mxu0 0.0
    %1391 = vmatprep.subr.mxu0 0.0
    %1392 = vmatpush1.msra.mxu0 0.0
    %1393 = vmatprep.subr.mxu0 0.0
    %1394 = vmatpush1.msra.mxu0 0.0
    %1395 = vmatprep.subr.mxu0 0.0
    %1396 = vmatpush1.msra.mxu0 0.0
    %1397 = vmatprep.subr.mxu0 0.0
    %1398 = vmatpush1.msra.mxu0 0.0
    %1399 = vmatprep.subr.mxu0 0.0
    %1400 = vmatpush1.msra.mxu0 0.0
    %1401 = vmatprep.subr.mxu0 0.0
    %1402 = vmatpush1.msra.mxu0 0.0
    %1403 = vmatprep.subr.mxu0 0.0
    %1404 = vmatpush1.msra.mxu0 0.0
    %1405 = vmatprep.subr.mxu0 0.0
    %1406 = vmatpush1.msra.mxu0 0.0
    %1407 = vmatprep.subr.mxu0 0.0
    %1408 = vmatpush1.msra.mxu0 0.0
    %1409 = vmatprep.subr.mxu0 0.0
    %1410 = vmatpush1.msra.mxu0 0.0
    %1411 = vmatprep.subr.mxu0 0.0
    %1412 = vmatpush1.msra.mxu0 0.0
    %1413 = vmatprep.subr.mxu0 0.0
    %1414 = vmatpush1.msra.mxu0 0.0
    %1415 = vmatprep.subr.mxu0 0.0
    %1416 = vmatpush1.msra.mxu0 0.0
    %1417 = vmatprep.subr.mxu0 0.0
    %1418 = vmatpush1.msra.mxu0 0.0
    %1419 = vmatprep.subr.mxu0 0.0
    %1420 = vmatpush1.msra.mxu0 0.0
    %1421 = vmatprep.subr.mxu0 0.0
    %1422 = vmatpush1.msra.mxu0 0.0
    %1423 = vmatprep.subr.mxu0 0.0
    %1424 = vmatpush1.msra.mxu0 0.0
    %1425 = vmatprep.subr.mxu0 0.0
    %1426 = vmatpush1.msra.mxu0 0.0
    %1427 = vmatprep.subr.mxu0 0.0
    %1428 = vmatpush1.msra.mxu0 0.0
    %1429 = vmatprep.subr.mxu0 0.0
    %1430 = vmatpush1.msra.mxu0 0.0
    %1431 = vmatprep.subr.mxu0 0.0
    %1432 = vmatpush1.msra.mxu0 0.0
    %1433 = vmatprep.mubr.f32.mxu0 0.0
    %1434 = vmatmul.mubr.f32.gmra.mrb[0].mxu0 %v1361
    %v1435 = vpop.f32.mrb[0].mxu0
    %v1436 = vadd.f32 %v1352, %v1435
    %v1437 = vpop.f32.mrb[0].mxu0
    %v1438 = vadd.f32 %v1352, %v1437
    %1439 = vmatprep.mubr.f32.mxu0 0.0
    %1440 = vmatmul.mubr.f32.gmra.mrb[0].mxu0 %v1363
    %v1441 = vpop.f32.mrb[0].mxu0
    %v1442 = vadd.f32 %v1357, %v1441
    %v1443 = vpop.f32.mrb[0].mxu0
    %v1444 = vadd.f32 %v1357, %v1443
    %1445 = vdwg.mxu0
    %v1446 = vadd.f32 %v1436, %v1438
    %1447 = vadd.xlane.f32.xlu0 %v1446
    %v1448 = vpop.xlane.xlu0 %1447
    %v1449 = vsel %vm181, %v1442, 0.0
    %v1450 = vsel %vm181, %v1444, 0.0
    %v1451 = vadd.f32 %v1449, %v1450
    %1452 = vadd.xlane.f32.xlu0 %v1451
    %v1453 = vpop.xlane.xlu0 %1452
    %v1454 = vmul.f32 %v1448, %v187
    %v1455 = vmul.f32 %v1453, %v187
    %v1456 = vmul.f32 %v1436, %v1436
    %v1457 = vmul.f32 %v1438, %v1438
    %v1458 = vmul.f32 %v1442, %v1442
    %v1459 = vmul.f32 %v1444, %v1444
    %v1460 = vadd.f32 %v1456, %v1457
    %1461 = vadd.xlane.f32.xlu0 %v1460
    %v1462 = vpop.xlane.xlu0 %1461
    %v1463 = vsel %vm181, %v1458, 0.0
    %v1464 = vsel %vm181, %v1459, 0.0
    %v1465 = vadd.f32 %v1463, %v1464
    %1466 = vadd.xlane.f32.xlu0 %v1465
    %v1467 = vpop.xlane.xlu0 %1466
    %v1468 = vmul.f32 %v1462, %v187
    %v1469 = vmul.f32 %v1467, %v187
    %v1470 = vmul.f32 %v1454, %v1454
    %v1471 = vmul.f32 %v1455, %v1455
    %v1472 = vsub.f32 %v1468, %v1470
    %v1473 = vsub.f32 %v1469, %v1471
    %v1474 = vmax.f32 %v1472, 0.0
    %v1475 = vmax.f32 %v1473, 0.0
    %v1476 = vsub.f32 %v1436, %v1454
    %v1477 = vsub.f32 %v1438, %v1454
    %v1478 = vsub.f32 %v1442, %v1455
    %v1479 = vsub.f32 %v1444, %v1455
    %v1480 = vadd.f32 %v1474, 1e-05
    %v1481 = vadd.f32 %v1475, 1e-05
    %v1482 = vrsqrt.pop %v1480
    %v1483 = vrsqrt.pop %v1481
    %v1484 = vmul.f32 %v1476, %v1482
    %v1485 = vmul.f32 %v1477, %v1482
    %v1486 = vmul.f32 %v1478, %v1483
    %v1487 = vmul.f32 %v1479, %v1483
    %v1488 = vmax.f32 %v1484, 0.0
    %v1489 = vmax.f32 %v1485, 0.0
    %v1490 = vmax.f32 %v1486, 0.0
    %v1491 = vmax.f32 %v1487, 0.0
    %1492 = vset.pattern.permute.xlu0 33
    %1493 = vperm.xlu0 %1492, %v1344
    %v1494 = vpop.permute.xlu0 %1493
    %1496 = vset.pattern.permute.xlu0 33
    %1497 = vperm.xlu0 %1496, %v1345
    %v1498 = vpop.permute.xlu0 %1497
    %1500 = vrot.lane.b32.xlu0 %v1344, 124
    %v1501 = vpop.permute.xlu0 %1500
    %1502 = vrot.lane.b32.xlu0 %v1345, 124
    %v1503 = vpop.permute.xlu0 %1502
    %v1504 = vsel %vm238, %v1501, 0
    %v1506 = vsel %vm238, %v1503, 0
    %v1509 = vsel %vm181, %v1490, 0
    %v1512 = vsel %vm181, %v1491, 0
    %1514 = vmatprep.subr.mxu0 %v1489
    %1515 = vmatpush1.msra.mxu0 %v1488
    %1516 = vmatprep.subr.mxu0 %v1512
    %1517 = vmatpush1.msra.mxu0 %v1509
    %1518 = vmatprep.subr.mxu0 0.0
    %1519 = vmatpush1.msra.mxu0 0.0
    %1520 = vmatprep.subr.mxu0 0.0
    %1521 = vmatpush1.msra.mxu0 0.0
    %1522 = vmatprep.subr.mxu0 0.0
    %1523 = vmatpush1.msra.mxu0 0.0
    %1524 = vmatprep.subr.mxu0 0.0
    %1525 = vmatpush1.msra.mxu0 0.0
    %1526 = vmatprep.subr.mxu0 0.0
    %1527 = vmatpush1.msra.mxu0 0.0
    %1528 = vmatprep.subr.mxu0 0.0
    %1529 = vmatpush1.msra.mxu0 0.0
    %1530 = vmatprep.subr.mxu0 0.0
    %1531 = vmatpush1.msra.mxu0 0.0
    %1532 = vmatprep.subr.mxu0 0.0
    %1533 = vmatpush1.msra.mxu0 0.0
    %1534 = vmatprep.subr.mxu0 0.0
    %1535 = vmatpush1.msra.mxu0 0.0
    %1536 = vmatprep.subr.mxu0 0.0
    %1537 = vmatpush1.msra.mxu0 0.0
    %1538 = vmatprep.subr.mxu0 0.0
    %1539 = vmatpush1.msra.mxu0 0.0
    %1540 = vmatprep.subr.mxu0 0.0
    %1541 = vmatpush1.msra.mxu0 0.0
    %1542 = vmatprep.subr.mxu0 0.0
    %1543 = vmatpush1.msra.mxu0 0.0
    %1544 = vmatprep.subr.mxu0 0.0
    %1545 = vmatpush1.msra.mxu0 0.0
    %1546 = vmatprep.subr.mxu0 0.0
    %1547 = vmatpush1.msra.mxu0 0.0
    %1548 = vmatprep.subr.mxu0 0.0
    %1549 = vmatpush1.msra.mxu0 0.0
    %1550 = vmatprep.subr.mxu0 0.0
    %1551 = vmatpush1.msra.mxu0 0.0
    %1552 = vmatprep.subr.mxu0 0.0
    %1553 = vmatpush1.msra.mxu0 0.0
    %1554 = vmatprep.subr.mxu0 0.0
    %1555 = vmatpush1.msra.mxu0 0.0
    %1556 = vmatprep.subr.mxu0 0.0
    %1557 = vmatpush1.msra.mxu0 0.0
    %1558 = vmatprep.subr.mxu0 0.0
    %1559 = vmatpush1.msra.mxu0 0.0
    %1560 = vmatprep.subr.mxu0 0.0
    %1561 = vmatpush1.msra.mxu0 0.0
    %1562 = vmatprep.subr.mxu0 0.0
    %1563 = vmatpush1.msra.mxu0 0.0
    %1564 = vmatprep.subr.mxu0 0.0
    %1565 = vmatpush1.msra.mxu0 0.0
    %1566 = vmatprep.subr.mxu0 0.0
    %1567 = vmatpush1.msra.mxu0 0.0
    %1568 = vmatprep.subr.mxu0 0.0
    %1569 = vmatpush1.msra.mxu0 0.0
    %1570 = vmatprep.subr.mxu0 0.0
    %1571 = vmatpush1.msra.mxu0 0.0
    %1572 = vmatprep.subr.mxu0 0.0
    %1573 = vmatpush1.msra.mxu0 0.0
    %1574 = vmatprep.subr.mxu0 0.0
    %1575 = vmatpush1.msra.mxu0 0.0
    %1576 = vmatprep.subr.mxu0 0.0
    %1577 = vmatpush1.msra.mxu0 0.0
    %1578 = vmatprep.mubr.f32.mxu0 0.0
    %1579 = vmatmul.mubr.f32.gmra.mrb[0].mxu0 %v1504
    %v1580 = vpop.f32.mrb[0].mxu0
    %v1581 = vadd.f32 %v1494, %v1580
    %v1582 = vpop.f32.mrb[0].mxu0
    %v1583 = vadd.f32 %v1494, %v1582
    %1584 = vmatprep.mubr.f32.mxu0 0.0
    %1585 = vmatmul.mubr.f32.gmra.mrb[0].mxu0 %v1506
    %v1586 = vpop.f32.mrb[0].mxu0
    %v1587 = vadd.f32 %v1498, %v1586
    %v1588 = vpop.f32.mrb[0].mxu0
    %v1589 = vadd.f32 %v1498, %v1588
    %1590 = vdwg.mxu0
    %v1591 = vadd.f32 %v1581, %v1583
    %1592 = vadd.xlane.f32.xlu0 %v1591
    %v1593 = vpop.xlane.xlu0 %1592
    %v1594 = vsel %vm181, %v1587, 0.0
    %v1595 = vsel %vm181, %v1589, 0.0
    %v1596 = vadd.f32 %v1594, %v1595
    %1597 = vadd.xlane.f32.xlu0 %v1596
    %v1598 = vpop.xlane.xlu0 %1597
    %v1599 = vmul.f32 %v1593, %v187
    %v1600 = vmul.f32 %v1598, %v187
    %v1601 = vmul.f32 %v1581, %v1581
    %v1602 = vmul.f32 %v1583, %v1583
    %v1603 = vmul.f32 %v1587, %v1587
    %v1604 = vmul.f32 %v1589, %v1589
    %v1605 = vadd.f32 %v1601, %v1602
    %1606 = vadd.xlane.f32.xlu0 %v1605
    %v1607 = vpop.xlane.xlu0 %1606
    %v1608 = vsel %vm181, %v1603, 0.0
    %v1609 = vsel %vm181, %v1604, 0.0
    %v1610 = vadd.f32 %v1608, %v1609
    %1611 = vadd.xlane.f32.xlu0 %v1610
    %v1612 = vpop.xlane.xlu0 %1611
    %v1613 = vmul.f32 %v1607, %v187
    %v1614 = vmul.f32 %v1612, %v187
    %v1615 = vmul.f32 %v1599, %v1599
    %v1616 = vmul.f32 %v1600, %v1600
    %v1617 = vsub.f32 %v1613, %v1615
    %v1618 = vsub.f32 %v1614, %v1616
    %v1619 = vmax.f32 %v1617, 0.0
    %v1620 = vmax.f32 %v1618, 0.0
    %v1621 = vsub.f32 %v1581, %v1599
    %v1622 = vsub.f32 %v1583, %v1599
    %v1623 = vsub.f32 %v1587, %v1600
    %v1624 = vsub.f32 %v1589, %v1600
    %v1625 = vadd.f32 %v1619, 1e-05
    %v1626 = vadd.f32 %v1620, 1e-05
    %v1627 = vrsqrt.pop %v1625
    %v1628 = vrsqrt.pop %v1626
    %v1629 = vmul.f32 %v1621, %v1627
    %v1630 = vmul.f32 %v1622, %v1627
    %v1631 = vmul.f32 %v1623, %v1628
    %v1632 = vmul.f32 %v1624, %v1628
    %v1633 = vmax.f32 %v1629, 0.0
    %v1634 = vmax.f32 %v1630, 0.0
    %v1635 = vmax.f32 %v1631, 0.0
    %v1636 = vmax.f32 %v1632, 0.0
    %1637 = vset.pattern.permute.xlu0 34
    %1638 = vperm.xlu0 %1637, %v1344
    %v1639 = vpop.permute.xlu0 %1638
    %1641 = vrot.lane.b32.xlu0 %v1344, 110
    %v1642 = vpop.permute.xlu0 %1641
    %v1643 = vsel %vm238, %v1642, 0
    %v1646 = vsel %vm181, %v1635, 0
    %v1649 = vsel %vm181, %v1636, 0
    %1651 = vmatprep.subr.mxu0 %v1634
    %1652 = vmatpush1.msra.mxu0 %v1633
    %1653 = vmatprep.subr.mxu0 %v1649
    %1654 = vmatpush1.msra.mxu0 %v1646
    %1655 = vmatprep.subr.mxu0 0.0
    %1656 = vmatpush1.msra.mxu0 0.0
    %1657 = vmatprep.subr.mxu0 0.0
    %1658 = vmatpush1.msra.mxu0 0.0
    %1659 = vmatprep.subr.mxu0 0.0
    %1660 = vmatpush1.msra.mxu0 0.0
    %1661 = vmatprep.subr.mxu0 0.0
    %1662 = vmatpush1.msra.mxu0 0.0
    %1663 = vmatprep.subr.mxu0 0.0
    %1664 = vmatpush1.msra.mxu0 0.0
    %1665 = vmatprep.subr.mxu0 0.0
    %1666 = vmatpush1.msra.mxu0 0.0
    %1667 = vmatprep.subr.mxu0 0.0
    %1668 = vmatpush1.msra.mxu0 0.0
    %1669 = vmatprep.subr.mxu0 0.0
    %1670 = vmatpush1.msra.mxu0 0.0
    %1671 = vmatprep.subr.mxu0 0.0
    %1672 = vmatpush1.msra.mxu0 0.0
    %1673 = vmatprep.subr.mxu0 0.0
    %1674 = vmatpush1.msra.mxu0 0.0
    %1675 = vmatprep.subr.mxu0 0.0
    %1676 = vmatpush1.msra.mxu0 0.0
    %1677 = vmatprep.subr.mxu0 0.0
    %1678 = vmatpush1.msra.mxu0 0.0
    %1679 = vmatprep.subr.mxu0 0.0
    %1680 = vmatpush1.msra.mxu0 0.0
    %1681 = vmatprep.subr.mxu0 0.0
    %1682 = vmatpush1.msra.mxu0 0.0
    %1683 = vmatprep.subr.mxu0 0.0
    %1684 = vmatpush1.msra.mxu0 0.0
    %1685 = vmatprep.subr.mxu0 0.0
    %1686 = vmatpush1.msra.mxu0 0.0
    %1687 = vmatprep.subr.mxu0 0.0
    %1688 = vmatpush1.msra.mxu0 0.0
    %1689 = vmatprep.subr.mxu0 0.0
    %1690 = vmatpush1.msra.mxu0 0.0
    %1691 = vmatprep.subr.mxu0 0.0
    %1692 = vmatpush1.msra.mxu0 0.0
    %1693 = vmatprep.subr.mxu0 0.0
    %1694 = vmatpush1.msra.mxu0 0.0
    %1695 = vmatprep.subr.mxu0 0.0
    %1696 = vmatpush1.msra.mxu0 0.0
    %1697 = vmatprep.subr.mxu0 0.0
    %1698 = vmatpush1.msra.mxu0 0.0
    %1699 = vmatprep.subr.mxu0 0.0
    %1700 = vmatpush1.msra.mxu0 0.0
    %1701 = vmatprep.subr.mxu0 0.0
    %1702 = vmatpush1.msra.mxu0 0.0
    %1703 = vmatprep.subr.mxu0 0.0
    %1704 = vmatpush1.msra.mxu0 0.0
    %1705 = vmatprep.subr.mxu0 0.0
    %1706 = vmatpush1.msra.mxu0 0.0
    %1707 = vmatprep.subr.mxu0 0.0
    %1708 = vmatpush1.msra.mxu0 0.0
    %1709 = vmatprep.subr.mxu0 0.0
    %1710 = vmatpush1.msra.mxu0 0.0
    %1711 = vmatprep.subr.mxu0 0.0
    %1712 = vmatpush1.msra.mxu0 0.0
    %1713 = vmatprep.subr.mxu0 0.0
    %1714 = vmatpush1.msra.mxu0 0.0
    %1715 = vmatprep.mubr.f32.mxu0 0.0
    %1716 = vmatmul.mubr.f32.gmra.mrb[0].mxu0 %v1643
    %v1717 = vpop.f32.mrb[0].mxu0
    %v1718 = vadd.f32 %v1639, %v1717
    %v1719 = vpop.f32.mrb[0].mxu0
    %v1720 = vadd.f32 %v1639, %v1719
    %1721 = vdwg.mxu0
    %s1722 = scalar_lea.vmem [#allocation7], 16
    %v1723 = vld [vmem:[%s1722] sm:$0xff]
    %v1724 = vstv %s1347
    %v1725 = vmul.f32 %v1724, %v1723
    %v1726 = vmul.f32 %v1718, %v1718
    %v1727 = vmul.f32 %v1720, %v1720
    %v1728 = vsel %vm96, %v1726, 0.0
    %v1729 = vrot.slane %v1728, 4
    %v1730 = vadd.f32 %v1728, %v1729
    %v1731 = vrot.slane %v1730, 2
    %v1732 = vadd.f32 %v1730, %v1731
    %v1733 = vrot.slane %v1732, 1
    %v1734 = vadd.f32 %v1732, %v1733
    %v1735 = vsel %vm96, %v1727, 0.0
    %v1736 = vrot.slane %v1735, 4
    %v1737 = vadd.f32 %v1735, %v1736
    %v1738 = vrot.slane %v1737, 2
    %v1739 = vadd.f32 %v1737, %v1738
    %v1740 = vrot.slane %v1739, 1
    %v1741 = vadd.f32 %v1739, %v1740
    %v1742 = vstv %s1346
    %v1743 = vmul.f32 %v1742, %v1734
    %v1744 = vmul.f32 %v1742, %v1741
    %v1746 = vcombine.high %v1725, %v1725
    %v1748 = vmul.f32 %v1718, %v1725
    %v1749 = vmul.f32 %v1720, %v1746
    %v1750 = vsel %vm96, %v1748, 0.0
    %v1751 = vrot.slane %v1750, 4
    %v1752 = vadd.f32 %v1750, %v1751
    %v1753 = vrot.slane %v1752, 2
    %v1754 = vadd.f32 %v1752, %v1753
    %v1755 = vrot.slane %v1754, 1
    %v1756 = vadd.f32 %v1754, %v1755
    %v1757 = vsel %vm96, %v1749, 0.0
    %v1758 = vrot.slane %v1757, 4
    %v1759 = vadd.f32 %v1757, %v1758
    %v1760 = vrot.slane %v1759, 2
    %v1761 = vadd.f32 %v1759, %v1760
    %v1762 = vrot.slane %v1761, 1
    %v1763 = vadd.f32 %v1761, %v1762
    %v1764 = vsub.f32 %v1332, %v1743
    %v1765 = vsub.f32 %v1333, %v1744
    %v1766 = vadd.f32 %v1764, %v1756
    %v1767 = vadd.f32 %v1765, %v1763
    %v1768 = vstv %s1348
    %v1769 = vmul.f32 %v1768, %v1718
    %v1770 = vmul.f32 %v1768, %v1720
    %v1773 = vcombine.low %v1769, %v1770
    %v1775 = vsub.f32 %v1342, %v1773
    %v1776 = vadd.f32 %v1775, %v1725
    %s1777 = scalar_lea.vmem [#allocation9], 48
    %v1778 = vld [vmem:[%s1777] sm:$0xff]
    %v1779 = vld [vmem:[%s1777 + $0x8] sm:$0x3f]
    %s1780 = sld [smem:[#allocation3 + $0x3]]
    %s1781 = sld [smem:[#allocation3 + $0x8]]
    %s1782 = sld [smem:[#allocation3 + $0xd]]
    %1784 = vset.pattern.permute.xlu0 32
    %1785 = vperm.xlu0 %1784, %v1778
    %v1786 = vpop.permute.xlu0 %1785
    %1789 = vset.pattern.permute.xlu0 32
    %1790 = vperm.xlu0 %1789, %v1779
    %v1791 = vpop.permute.xlu0 %1790
    %v1794 = vcombine.high %v1776, %v1776
    %v1795 = vsel %vm91, %v1778, 0
    %v1797 = vsel %vm91, %v1779, 0
    %v1799 = vsel %vm96, %v1776, 0
    %v1801 = vsel %vm96, %v1794, 0
    %1803 = vmatprep.subr.mxu0 %v1801
    %1804 = vmatpush1.msra.mxu0 %v1799
    %1805 = vmatprep.subr.mxu0 0.0
    %1806 = vmatpush1.msra.mxu0 0.0
    %1807 = vmatprep.subr.mxu0 0.0
    %1808 = vmatpush1.msra.mxu0 0.0
    %1809 = vmatprep.subr.mxu0 0.0
    %1810 = vmatpush1.msra.mxu0 0.0
    %1811 = vmatprep.subr.mxu0 0.0
    %1812 = vmatpush1.msra.mxu0 0.0
    %1813 = vmatprep.subr.mxu0 0.0
    %1814 = vmatpush1.msra.mxu0 0.0
    %1815 = vmatprep.subr.mxu0 0.0
    %1816 = vmatpush1.msra.mxu0 0.0
    %1817 = vmatprep.subr.mxu0 0.0
    %1818 = vmatpush1.msra.mxu0 0.0
    %1819 = vmatprep.subr.mxu0 0.0
    %1820 = vmatpush1.msra.mxu0 0.0
    %1821 = vmatprep.subr.mxu0 0.0
    %1822 = vmatpush1.msra.mxu0 0.0
    %1823 = vmatprep.subr.mxu0 0.0
    %1824 = vmatpush1.msra.mxu0 0.0
    %1825 = vmatprep.subr.mxu0 0.0
    %1826 = vmatpush1.msra.mxu0 0.0
    %1827 = vmatprep.subr.mxu0 0.0
    %1828 = vmatpush1.msra.mxu0 0.0
    %1829 = vmatprep.subr.mxu0 0.0
    %1830 = vmatpush1.msra.mxu0 0.0
    %1831 = vmatprep.subr.mxu0 0.0
    %1832 = vmatpush1.msra.mxu0 0.0
    %1833 = vmatprep.subr.mxu0 0.0
    %1834 = vmatpush1.msra.mxu0 0.0
    %1835 = vmatprep.subr.mxu0 0.0
    %1836 = vmatpush1.msra.mxu0 0.0
    %1837 = vmatprep.subr.mxu0 0.0
    %1838 = vmatpush1.msra.mxu0 0.0
    %1839 = vmatprep.subr.mxu0 0.0
    %1840 = vmatpush1.msra.mxu0 0.0
    %1841 = vmatprep.subr.mxu0 0.0
    %1842 = vmatpush1.msra.mxu0 0.0
    %1843 = vmatprep.subr.mxu0 0.0
    %1844 = vmatpush1.msra.mxu0 0.0
    %1845 = vmatprep.subr.mxu0 0.0
    %1846 = vmatpush1.msra.mxu0 0.0
    %1847 = vmatprep.subr.mxu0 0.0
    %1848 = vmatpush1.msra.mxu0 0.0
    %1849 = vmatprep.subr.mxu0 0.0
    %1850 = vmatpush1.msra.mxu0 0.0
    %1851 = vmatprep.subr.mxu0 0.0
    %1852 = vmatpush1.msra.mxu0 0.0
    %1853 = vmatprep.subr.mxu0 0.0
    %1854 = vmatpush1.msra.mxu0 0.0
    %1855 = vmatprep.subr.mxu0 0.0
    %1856 = vmatpush1.msra.mxu0 0.0
    %1857 = vmatprep.subr.mxu0 0.0
    %1858 = vmatpush1.msra.mxu0 0.0
    %1859 = vmatprep.subr.mxu0 0.0
    %1860 = vmatpush1.msra.mxu0 0.0
    %1861 = vmatprep.subr.mxu0 0.0
    %1862 = vmatpush1.msra.mxu0 0.0
    %1863 = vmatprep.subr.mxu0 0.0
    %1864 = vmatpush1.msra.mxu0 0.0
    %1865 = vmatprep.subr.mxu0 0.0
    %1866 = vmatpush1.msra.mxu0 0.0
    %1867 = vmatprep.mubr.f32.mxu0 0.0
    %1868 = vmatmul.mubr.f32.gmra.mrb[0].mxu0 %v1795
    %v1869 = vpop.f32.mrb[0].mxu0
    %v1870 = vadd.f32 %v1786, %v1869
    %v1871 = vpop.f32.mrb[0].mxu0
    %v1872 = vadd.f32 %v1786, %v1871
    %1873 = vmatprep.mubr.f32.mxu0 0.0
    %1874 = vmatmul.mubr.f32.gmra.mrb[0].mxu0 %v1797
    %v1875 = vpop.f32.mrb[0].mxu0
    %v1876 = vadd.f32 %v1791, %v1875
    %v1877 = vpop.f32.mrb[0].mxu0
    %v1878 = vadd.f32 %v1791, %v1877
    %1879 = vdwg.mxu0
    %v1880 = vadd.f32 %v1870, %v1872
    %1881 = vadd.xlane.f32.xlu0 %v1880
    %v1882 = vpop.xlane.xlu0 %1881
    %v1883 = vsel %vm181, %v1876, 0.0
    %v1884 = vsel %vm181, %v1878, 0.0
    %v1885 = vadd.f32 %v1883, %v1884
    %1886 = vadd.xlane.f32.xlu0 %v1885
    %v1887 = vpop.xlane.xlu0 %1886
    %v1888 = vmul.f32 %v1882, %v187
    %v1889 = vmul.f32 %v1887, %v187
    %v1890 = vmul.f32 %v1870, %v1870
    %v1891 = vmul.f32 %v1872, %v1872
    %v1892 = vmul.f32 %v1876, %v1876
    %v1893 = vmul.f32 %v1878, %v1878
    %v1894 = vadd.f32 %v1890, %v1891
    %1895 = vadd.xlane.f32.xlu0 %v1894
    %v1896 = vpop.xlane.xlu0 %1895
    %v1897 = vsel %vm181, %v1892, 0.0
    %v1898 = vsel %vm181, %v1893, 0.0
    %v1899 = vadd.f32 %v1897, %v1898
    %1900 = vadd.xlane.f32.xlu0 %v1899
    %v1901 = vpop.xlane.xlu0 %1900
    %v1902 = vmul.f32 %v1896, %v187
    %v1903 = vmul.f32 %v1901, %v187
    %v1904 = vmul.f32 %v1888, %v1888
    %v1905 = vmul.f32 %v1889, %v1889
    %v1906 = vsub.f32 %v1902, %v1904
    %v1907 = vsub.f32 %v1903, %v1905
    %v1908 = vmax.f32 %v1906, 0.0
    %v1909 = vmax.f32 %v1907, 0.0
    %v1910 = vsub.f32 %v1870, %v1888
    %v1911 = vsub.f32 %v1872, %v1888
    %v1912 = vsub.f32 %v1876, %v1889
    %v1913 = vsub.f32 %v1878, %v1889
    %v1914 = vadd.f32 %v1908, 1e-05
    %v1915 = vadd.f32 %v1909, 1e-05
    %v1916 = vrsqrt.pop %v1914
    %v1917 = vrsqrt.pop %v1915
    %v1918 = vmul.f32 %v1910, %v1916
    %v1919 = vmul.f32 %v1911, %v1916
    %v1920 = vmul.f32 %v1912, %v1917
    %v1921 = vmul.f32 %v1913, %v1917
    %v1922 = vmax.f32 %v1918, 0.0
    %v1923 = vmax.f32 %v1919, 0.0
    %v1924 = vmax.f32 %v1920, 0.0
    %v1925 = vmax.f32 %v1921, 0.0
    %1926 = vset.pattern.permute.xlu0 33
    %1927 = vperm.xlu0 %1926, %v1778
    %v1928 = vpop.permute.xlu0 %1927
    %1930 = vset.pattern.permute.xlu0 33
    %1931 = vperm.xlu0 %1930, %v1779
    %v1932 = vpop.permute.xlu0 %1931
    %1934 = vrot.lane.b32.xlu0 %v1778, 124
    %v1935 = vpop.permute.xlu0 %1934
    %1936 = vrot.lane.b32.xlu0 %v1779, 124
    %v1937 = vpop.permute.xlu0 %1936
    %v1938 = vsel %vm238, %v1935, 0
    %v1940 = vsel %vm238, %v1937, 0
    %v1943 = vsel %vm181, %v1924, 0
    %v1946 = vsel %vm181, %v1925, 0
    %1948 = vmatprep.subr.mxu0 %v1923
    %1949 = vmatpush1.msra.mxu0 %v1922
    %1950 = vmatprep.subr.mxu0 %v1946
    %1951 = vmatpush1.msra.mxu0 %v1943
    %1952 = vmatprep.subr.mxu0 0.0
    %1953 = vmatpush1.msra.mxu0 0.0
    %1954 = vmatprep.subr.mxu0 0.0
    %1955 = vmatpush1.msra.mxu0 0.0
    %1956 = vmatprep.subr.mxu0 0.0
    %1957 = vmatpush1.msra.mxu0 0.0
    %1958 = vmatprep.subr.mxu0 0.0
    %1959 = vmatpush1.msra.mxu0 0.0
    %1960 = vmatprep.subr.mxu0 0.0
    %1961 = vmatpush1.msra.mxu0 0.0
    %1962 = vmatprep.subr.mxu0 0.0
    %1963 = vmatpush1.msra.mxu0 0.0
    %1964 = vmatprep.subr.mxu0 0.0
    %1965 = vmatpush1.msra.mxu0 0.0
    %1966 = vmatprep.subr.mxu0 0.0
    %1967 = vmatpush1.msra.mxu0 0.0
    %1968 = vmatprep.subr.mxu0 0.0
    %1969 = vmatpush1.msra.mxu0 0.0
    %1970 = vmatprep.subr.mxu0 0.0
    %1971 = vmatpush1.msra.mxu0 0.0
    %1972 = vmatprep.subr.mxu0 0.0
    %1973 = vmatpush1.msra.mxu0 0.0
    %1974 = vmatprep.subr.mxu0 0.0
    %1975 = vmatpush1.msra.mxu0 0.0
    %1976 = vmatprep.subr.mxu0 0.0
    %1977 = vmatpush1.msra.mxu0 0.0
    %1978 = vmatprep.subr.mxu0 0.0
    %1979 = vmatpush1.msra.mxu0 0.0
    %1980 = vmatprep.subr.mxu0 0.0
    %1981 = vmatpush1.msra.mxu0 0.0
    %1982 = vmatprep.subr.mxu0 0.0
    %1983 = vmatpush1.msra.mxu0 0.0
    %1984 = vmatprep.subr.mxu0 0.0
    %1985 = vmatpush1.msra.mxu0 0.0
    %1986 = vmatprep.subr.mxu0 0.0
    %1987 = vmatpush1.msra.mxu0 0.0
    %1988 = vmatprep.subr.mxu0 0.0
    %1989 = vmatpush1.msra.mxu0 0.0
    %1990 = vmatprep.subr.mxu0 0.0
    %1991 = vmatpush1.msra.mxu0 0.0
    %1992 = vmatprep.subr.mxu0 0.0
    %1993 = vmatpush1.msra.mxu0 0.0
    %1994 = vmatprep.subr.mxu0 0.0
    %1995 = vmatpush1.msra.mxu0 0.0
    %1996 = vmatprep.subr.mxu0 0.0
    %1997 = vmatpush1.msra.mxu0 0.0
    %1998 = vmatprep.subr.mxu0 0.0
    %1999 = vmatpush1.msra.mxu0 0.0
    %2000 = vmatprep.subr.mxu0 0.0
    %2001 = vmatpush1.msra.mxu0 0.0
    %2002 = vmatprep.subr.mxu0 0.0
    %2003 = vmatpush1.msra.mxu0 0.0
    %2004 = vmatprep.subr.mxu0 0.0
    %2005 = vmatpush1.msra.mxu0 0.0
    %2006 = vmatprep.subr.mxu0 0.0
    %2007 = vmatpush1.msra.mxu0 0.0
    %2008 = vmatprep.subr.mxu0 0.0
    %2009 = vmatpush1.msra.mxu0 0.0
    %2010 = vmatprep.subr.mxu0 0.0
    %2011 = vmatpush1.msra.mxu0 0.0
    %2012 = vmatprep.mubr.f32.mxu0 0.0
    %2013 = vmatmul.mubr.f32.gmra.mrb[0].mxu0 %v1938
    %v2014 = vpop.f32.mrb[0].mxu0
    %v2015 = vadd.f32 %v1928, %v2014
    %v2016 = vpop.f32.mrb[0].mxu0
    %v2017 = vadd.f32 %v1928, %v2016
    %2018 = vmatprep.mubr.f32.mxu0 0.0
    %2019 = vmatmul.mubr.f32.gmra.mrb[0].mxu0 %v1940
    %v2020 = vpop.f32.mrb[0].mxu0
    %v2021 = vadd.f32 %v1932, %v2020
    %v2022 = vpop.f32.mrb[0].mxu0
    %v2023 = vadd.f32 %v1932, %v2022
    %2024 = vdwg.mxu0
    %v2025 = vadd.f32 %v2015, %v2017
    %2026 = vadd.xlane.f32.xlu0 %v2025
    %v2027 = vpop.xlane.xlu0 %2026
    %v2028 = vsel %vm181, %v2021, 0.0
    %v2029 = vsel %vm181, %v2023, 0.0
    %v2030 = vadd.f32 %v2028, %v2029
    %2031 = vadd.xlane.f32.xlu0 %v2030
    %v2032 = vpop.xlane.xlu0 %2031
    %v2033 = vmul.f32 %v2027, %v187
    %v2034 = vmul.f32 %v2032, %v187
    %v2035 = vmul.f32 %v2015, %v2015
    %v2036 = vmul.f32 %v2017, %v2017
    %v2037 = vmul.f32 %v2021, %v2021
    %v2038 = vmul.f32 %v2023, %v2023
    %v2039 = vadd.f32 %v2035, %v2036
    %2040 = vadd.xlane.f32.xlu0 %v2039
    %v2041 = vpop.xlane.xlu0 %2040
    %v2042 = vsel %vm181, %v2037, 0.0
    %v2043 = vsel %vm181, %v2038, 0.0
    %v2044 = vadd.f32 %v2042, %v2043
    %2045 = vadd.xlane.f32.xlu0 %v2044
    %v2046 = vpop.xlane.xlu0 %2045
    %v2047 = vmul.f32 %v2041, %v187
    %v2048 = vmul.f32 %v2046, %v187
    %v2049 = vmul.f32 %v2033, %v2033
    %v2050 = vmul.f32 %v2034, %v2034
    %v2051 = vsub.f32 %v2047, %v2049
    %v2052 = vsub.f32 %v2048, %v2050
    %v2053 = vmax.f32 %v2051, 0.0
    %v2054 = vmax.f32 %v2052, 0.0
    %v2055 = vsub.f32 %v2015, %v2033
    %v2056 = vsub.f32 %v2017, %v2033
    %v2057 = vsub.f32 %v2021, %v2034
    %v2058 = vsub.f32 %v2023, %v2034
    %v2059 = vadd.f32 %v2053, 1e-05
    %v2060 = vadd.f32 %v2054, 1e-05
    %v2061 = vrsqrt.pop %v2059
    %v2062 = vrsqrt.pop %v2060
    %v2063 = vmul.f32 %v2055, %v2061
    %v2064 = vmul.f32 %v2056, %v2061
    %v2065 = vmul.f32 %v2057, %v2062
    %v2066 = vmul.f32 %v2058, %v2062
    %v2067 = vmax.f32 %v2063, 0.0
    %v2068 = vmax.f32 %v2064, 0.0
    %v2069 = vmax.f32 %v2065, 0.0
    %v2070 = vmax.f32 %v2066, 0.0
    %2071 = vset.pattern.permute.xlu0 34
    %2072 = vperm.xlu0 %2071, %v1778
    %v2073 = vpop.permute.xlu0 %2072
    %2075 = vrot.lane.b32.xlu0 %v1778, 110
    %v2076 = vpop.permute.xlu0 %2075
    %v2077 = vsel %vm238, %v2076, 0
    %v2080 = vsel %vm181, %v2069, 0
    %v2083 = vsel %vm181, %v2070, 0
    %2085 = vmatprep.subr.mxu0 %v2068
    %2086 = vmatpush1.msra.mxu0 %v2067
    %2087 = vmatprep.subr.mxu0 %v2083
    %2088 = vmatpush1.msra.mxu0 %v2080
    %2089 = vmatprep.subr.mxu0 0.0
    %2090 = vmatpush1.msra.mxu0 0.0
    %2091 = vmatprep.subr.mxu0 0.0
    %2092 = vmatpush1.msra.mxu0 0.0
    %2093 = vmatprep.subr.mxu0 0.0
    %2094 = vmatpush1.msra.mxu0 0.0
    %2095 = vmatprep.subr.mxu0 0.0
    %2096 = vmatpush1.msra.mxu0 0.0
    %2097 = vmatprep.subr.mxu0 0.0
    %2098 = vmatpush1.msra.mxu0 0.0
    %2099 = vmatprep.subr.mxu0 0.0
    %2100 = vmatpush1.msra.mxu0 0.0
    %2101 = vmatprep.subr.mxu0 0.0
    %2102 = vmatpush1.msra.mxu0 0.0
    %2103 = vmatprep.subr.mxu0 0.0
    %2104 = vmatpush1.msra.mxu0 0.0
    %2105 = vmatprep.subr.mxu0 0.0
    %2106 = vmatpush1.msra.mxu0 0.0
    %2107 = vmatprep.subr.mxu0 0.0
    %2108 = vmatpush1.msra.mxu0 0.0
    %2109 = vmatprep.subr.mxu0 0.0
    %2110 = vmatpush1.msra.mxu0 0.0
    %2111 = vmatprep.subr.mxu0 0.0
    %2112 = vmatpush1.msra.mxu0 0.0
    %2113 = vmatprep.subr.mxu0 0.0
    %2114 = vmatpush1.msra.mxu0 0.0
    %2115 = vmatprep.subr.mxu0 0.0
    %2116 = vmatpush1.msra.mxu0 0.0
    %2117 = vmatprep.subr.mxu0 0.0
    %2118 = vmatpush1.msra.mxu0 0.0
    %2119 = vmatprep.subr.mxu0 0.0
    %2120 = vmatpush1.msra.mxu0 0.0
    %2121 = vmatprep.subr.mxu0 0.0
    %2122 = vmatpush1.msra.mxu0 0.0
    %2123 = vmatprep.subr.mxu0 0.0
    %2124 = vmatpush1.msra.mxu0 0.0
    %2125 = vmatprep.subr.mxu0 0.0
    %2126 = vmatpush1.msra.mxu0 0.0
    %2127 = vmatprep.subr.mxu0 0.0
    %2128 = vmatpush1.msra.mxu0 0.0
    %2129 = vmatprep.subr.mxu0 0.0
    %2130 = vmatpush1.msra.mxu0 0.0
    %2131 = vmatprep.subr.mxu0 0.0
    %2132 = vmatpush1.msra.mxu0 0.0
    %2133 = vmatprep.subr.mxu0 0.0
    %2134 = vmatpush1.msra.mxu0 0.0
    %2135 = vmatprep.subr.mxu0 0.0
    %2136 = vmatpush1.msra.mxu0 0.0
    %2137 = vmatprep.subr.mxu0 0.0
    %2138 = vmatpush1.msra.mxu0 0.0
    %2139 = vmatprep.subr.mxu0 0.0
    %2140 = vmatpush1.msra.mxu0 0.0
    %2141 = vmatprep.subr.mxu0 0.0
    %2142 = vmatpush1.msra.mxu0 0.0
    %2143 = vmatprep.subr.mxu0 0.0
    %2144 = vmatpush1.msra.mxu0 0.0
    %2145 = vmatprep.subr.mxu0 0.0
    %2146 = vmatpush1.msra.mxu0 0.0
    %2147 = vmatprep.subr.mxu0 0.0
    %2148 = vmatpush1.msra.mxu0 0.0
    %2149 = vmatprep.mubr.f32.mxu0 0.0
    %2150 = vmatmul.mubr.f32.gmra.mrb[0].mxu0 %v2077
    %v2151 = vpop.f32.mrb[0].mxu0
    %v2152 = vadd.f32 %v2073, %v2151
    %v2153 = vpop.f32.mrb[0].mxu0
    %v2154 = vadd.f32 %v2073, %v2153
    %2155 = vdwg.mxu0
    %s2156 = scalar_lea.vmem [#allocation7], 24
    %v2157 = vld [vmem:[%s2156] sm:$0xff]
    %v2158 = vstv %s1781
    %v2159 = vmul.f32 %v2158, %v2157
    %v2160 = vmul.f32 %v2152, %v2152
    %v2161 = vmul.f32 %v2154, %v2154
    %v2162 = vsel %vm96, %v2160, 0.0
    %v2163 = vrot.slane %v2162, 4
    %v2164 = vadd.f32 %v2162, %v2163
    %v2165 = vrot.slane %v2164, 2
    %v2166 = vadd.f32 %v2164, %v2165
    %v2167 = vrot.slane %v2166, 1
    %v2168 = vadd.f32 %v2166, %v2167
    %v2169 = vsel %vm96, %v2161, 0.0
    %v2170 = vrot.slane %v2169, 4
    %v2171 = vadd.f32 %v2169, %v2170
    %v2172 = vrot.slane %v2171, 2
    %v2173 = vadd.f32 %v2171, %v2172
    %v2174 = vrot.slane %v2173, 1
    %v2175 = vadd.f32 %v2173, %v2174
    %v2176 = vstv %s1780
    %v2177 = vmul.f32 %v2176, %v2168
    %v2178 = vmul.f32 %v2176, %v2175
    %v2180 = vcombine.high %v2159, %v2159
    %v2182 = vmul.f32 %v2152, %v2159
    %v2183 = vmul.f32 %v2154, %v2180
    %v2184 = vsel %vm96, %v2182, 0.0
    %v2185 = vrot.slane %v2184, 4
    %v2186 = vadd.f32 %v2184, %v2185
    %v2187 = vrot.slane %v2186, 2
    %v2188 = vadd.f32 %v2186, %v2187
    %v2189 = vrot.slane %v2188, 1
    %v2190 = vadd.f32 %v2188, %v2189
    %v2191 = vsel %vm96, %v2183, 0.0
    %v2192 = vrot.slane %v2191, 4
    %v2193 = vadd.f32 %v2191, %v2192
    %v2194 = vrot.slane %v2193, 2
    %v2195 = vadd.f32 %v2193, %v2194
    %v2196 = vrot.slane %v2195, 1
    %v2197 = vadd.f32 %v2195, %v2196
    %v2198 = vsub.f32 %v1766, %v2177
    %v2199 = vsub.f32 %v1767, %v2178
    %v2200 = vadd.f32 %v2198, %v2190
    %v2201 = vadd.f32 %v2199, %v2197
    %v2202 = vstv %s1782
    %v2203 = vmul.f32 %v2202, %v2152
    %v2204 = vmul.f32 %v2202, %v2154
    %v2207 = vcombine.low %v2203, %v2204
    %v2209 = vsub.f32 %v1776, %v2207
    %v2210 = vadd.f32 %v2209, %v2159
    %s2211 = scalar_lea.vmem [#allocation9], 64
    %v2212 = vld [vmem:[%s2211] sm:$0xff]
    %v2213 = vld [vmem:[%s2211 + $0x8] sm:$0x3f]
    %s2214 = sld [smem:[#allocation3 + $0x4]]
    %s2215 = sld [smem:[#allocation3 + $0x9]]
    %s2216 = sld [smem:[#allocation3 + $0xe]]
    %2218 = vset.pattern.permute.xlu0 32
    %2219 = vperm.xlu0 %2218, %v2212
    %v2220 = vpop.permute.xlu0 %2219
    %2223 = vset.pattern.permute.xlu0 32
    %2224 = vperm.xlu0 %2223, %v2213
    %v2225 = vpop.permute.xlu0 %2224
    %v2228 = vcombine.high %v2210, %v2210
    %v2229 = vsel %vm91, %v2212, 0
    %v2231 = vsel %vm91, %v2213, 0
    %v2233 = vsel %vm96, %v2210, 0
    %v2235 = vsel %vm96, %v2228, 0
    %2237 = vmatprep.subr.mxu0 %v2235
    %2238 = vmatpush1.msra.mxu0 %v2233
    %2239 = vmatprep.subr.mxu0 0.0
    %2240 = vmatpush1.msra.mxu0 0.0
    %2241 = vmatprep.subr.mxu0 0.0
    %2242 = vmatpush1.msra.mxu0 0.0
    %2243 = vmatprep.subr.mxu0 0.0
    %2244 = vmatpush1.msra.mxu0 0.0
    %2245 = vmatprep.subr.mxu0 0.0
    %2246 = vmatpush1.msra.mxu0 0.0
    %2247 = vmatprep.subr.mxu0 0.0
    %2248 = vmatpush1.msra.mxu0 0.0
    %2249 = vmatprep.subr.mxu0 0.0
    %2250 = vmatpush1.msra.mxu0 0.0
    %2251 = vmatprep.subr.mxu0 0.0
    %2252 = vmatpush1.msra.mxu0 0.0
    %2253 = vmatprep.subr.mxu0 0.0
    %2254 = vmatpush1.msra.mxu0 0.0
    %2255 = vmatprep.subr.mxu0 0.0
    %2256 = vmatpush1.msra.mxu0 0.0
    %2257 = vmatprep.subr.mxu0 0.0
    %2258 = vmatpush1.msra.mxu0 0.0
    %2259 = vmatprep.subr.mxu0 0.0
    %2260 = vmatpush1.msra.mxu0 0.0
    %2261 = vmatprep.subr.mxu0 0.0
    %2262 = vmatpush1.msra.mxu0 0.0
    %2263 = vmatprep.subr.mxu0 0.0
    %2264 = vmatpush1.msra.mxu0 0.0
    %2265 = vmatprep.subr.mxu0 0.0
    %2266 = vmatpush1.msra.mxu0 0.0
    %2267 = vmatprep.subr.mxu0 0.0
    %2268 = vmatpush1.msra.mxu0 0.0
    %2269 = vmatprep.subr.mxu0 0.0
    %2270 = vmatpush1.msra.mxu0 0.0
    %2271 = vmatprep.subr.mxu0 0.0
    %2272 = vmatpush1.msra.mxu0 0.0
    %2273 = vmatprep.subr.mxu0 0.0
    %2274 = vmatpush1.msra.mxu0 0.0
    %2275 = vmatprep.subr.mxu0 0.0
    %2276 = vmatpush1.msra.mxu0 0.0
    %2277 = vmatprep.subr.mxu0 0.0
    %2278 = vmatpush1.msra.mxu0 0.0
    %2279 = vmatprep.subr.mxu0 0.0
    %2280 = vmatpush1.msra.mxu0 0.0
    %2281 = vmatprep.subr.mxu0 0.0
    %2282 = vmatpush1.msra.mxu0 0.0
    %2283 = vmatprep.subr.mxu0 0.0
    %2284 = vmatpush1.msra.mxu0 0.0
    %2285 = vmatprep.subr.mxu0 0.0
    %2286 = vmatpush1.msra.mxu0 0.0
    %2287 = vmatprep.subr.mxu0 0.0
    %2288 = vmatpush1.msra.mxu0 0.0
    %2289 = vmatprep.subr.mxu0 0.0
    %2290 = vmatpush1.msra.mxu0 0.0
    %2291 = vmatprep.subr.mxu0 0.0
    %2292 = vmatpush1.msra.mxu0 0.0
    %2293 = vmatprep.subr.mxu0 0.0
    %2294 = vmatpush1.msra.mxu0 0.0
    %2295 = vmatprep.subr.mxu0 0.0
    %2296 = vmatpush1.msra.mxu0 0.0
    %2297 = vmatprep.subr.mxu0 0.0
    %2298 = vmatpush1.msra.mxu0 0.0
    %2299 = vmatprep.subr.mxu0 0.0
    %2300 = vmatpush1.msra.mxu0 0.0
    %2301 = vmatprep.mubr.f32.mxu0 0.0
    %2302 = vmatmul.mubr.f32.gmra.mrb[0].mxu0 %v2229
    %v2303 = vpop.f32.mrb[0].mxu0
    %v2304 = vadd.f32 %v2220, %v2303
    %v2305 = vpop.f32.mrb[0].mxu0
    %v2306 = vadd.f32 %v2220, %v2305
    %2307 = vmatprep.mubr.f32.mxu0 0.0
    %2308 = vmatmul.mubr.f32.gmra.mrb[0].mxu0 %v2231
    %v2309 = vpop.f32.mrb[0].mxu0
    %v2310 = vadd.f32 %v2225, %v2309
    %v2311 = vpop.f32.mrb[0].mxu0
    %v2312 = vadd.f32 %v2225, %v2311
    %2313 = vdwg.mxu0
    %v2314 = vadd.f32 %v2304, %v2306
    %2315 = vadd.xlane.f32.xlu0 %v2314
    %v2316 = vpop.xlane.xlu0 %2315
    %v2317 = vsel %vm181, %v2310, 0.0
    %v2318 = vsel %vm181, %v2312, 0.0
    %v2319 = vadd.f32 %v2317, %v2318
    %2320 = vadd.xlane.f32.xlu0 %v2319
    %v2321 = vpop.xlane.xlu0 %2320
    %v2322 = vmul.f32 %v2316, %v187
    %v2323 = vmul.f32 %v2321, %v187
    %v2324 = vmul.f32 %v2304, %v2304
    %v2325 = vmul.f32 %v2306, %v2306
    %v2326 = vmul.f32 %v2310, %v2310
    %v2327 = vmul.f32 %v2312, %v2312
    %v2328 = vadd.f32 %v2324, %v2325
    %2329 = vadd.xlane.f32.xlu0 %v2328
    %v2330 = vpop.xlane.xlu0 %2329
    %v2331 = vsel %vm181, %v2326, 0.0
    %v2332 = vsel %vm181, %v2327, 0.0
    %v2333 = vadd.f32 %v2331, %v2332
    %2334 = vadd.xlane.f32.xlu0 %v2333
    %v2335 = vpop.xlane.xlu0 %2334
    %v2336 = vmul.f32 %v2330, %v187
    %v2337 = vmul.f32 %v2335, %v187
    %v2338 = vmul.f32 %v2322, %v2322
    %v2339 = vmul.f32 %v2323, %v2323
    %v2340 = vsub.f32 %v2336, %v2338
    %v2341 = vsub.f32 %v2337, %v2339
    %v2342 = vmax.f32 %v2340, 0.0
    %v2343 = vmax.f32 %v2341, 0.0
    %v2344 = vsub.f32 %v2304, %v2322
    %v2345 = vsub.f32 %v2306, %v2322
    %v2346 = vsub.f32 %v2310, %v2323
    %v2347 = vsub.f32 %v2312, %v2323
    %v2348 = vadd.f32 %v2342, 1e-05
    %v2349 = vadd.f32 %v2343, 1e-05
    %v2350 = vrsqrt.pop %v2348
    %v2351 = vrsqrt.pop %v2349
    %v2352 = vmul.f32 %v2344, %v2350
    %v2353 = vmul.f32 %v2345, %v2350
    %v2354 = vmul.f32 %v2346, %v2351
    %v2355 = vmul.f32 %v2347, %v2351
    %v2356 = vmax.f32 %v2352, 0.0
    %v2357 = vmax.f32 %v2353, 0.0
    %v2358 = vmax.f32 %v2354, 0.0
    %v2359 = vmax.f32 %v2355, 0.0
    %2360 = vset.pattern.permute.xlu0 33
    %2361 = vperm.xlu0 %2360, %v2212
    %v2362 = vpop.permute.xlu0 %2361
    %2364 = vset.pattern.permute.xlu0 33
    %2365 = vperm.xlu0 %2364, %v2213
    %v2366 = vpop.permute.xlu0 %2365
    %2368 = vrot.lane.b32.xlu0 %v2212, 124
    %v2369 = vpop.permute.xlu0 %2368
    %2370 = vrot.lane.b32.xlu0 %v2213, 124
    %v2371 = vpop.permute.xlu0 %2370
    %v2372 = vsel %vm238, %v2369, 0
    %v2374 = vsel %vm238, %v2371, 0
    %v2377 = vsel %vm181, %v2358, 0
    %v2380 = vsel %vm181, %v2359, 0
    %2382 = vmatprep.subr.mxu0 %v2357
    %2383 = vmatpush1.msra.mxu0 %v2356
    %2384 = vmatprep.subr.mxu0 %v2380
    %2385 = vmatpush1.msra.mxu0 %v2377
    %2386 = vmatprep.subr.mxu0 0.0
    %2387 = vmatpush1.msra.mxu0 0.0
    %2388 = vmatprep.subr.mxu0 0.0
    %2389 = vmatpush1.msra.mxu0 0.0
    %2390 = vmatprep.subr.mxu0 0.0
    %2391 = vmatpush1.msra.mxu0 0.0
    %2392 = vmatprep.subr.mxu0 0.0
    %2393 = vmatpush1.msra.mxu0 0.0
    %2394 = vmatprep.subr.mxu0 0.0
    %2395 = vmatpush1.msra.mxu0 0.0
    %2396 = vmatprep.subr.mxu0 0.0
    %2397 = vmatpush1.msra.mxu0 0.0
    %2398 = vmatprep.subr.mxu0 0.0
    %2399 = vmatpush1.msra.mxu0 0.0
    %2400 = vmatprep.subr.mxu0 0.0
    %2401 = vmatpush1.msra.mxu0 0.0
    %2402 = vmatprep.subr.mxu0 0.0
    %2403 = vmatpush1.msra.mxu0 0.0
    %2404 = vmatprep.subr.mxu0 0.0
    %2405 = vmatpush1.msra.mxu0 0.0
    %2406 = vmatprep.subr.mxu0 0.0
    %2407 = vmatpush1.msra.mxu0 0.0
    %2408 = vmatprep.subr.mxu0 0.0
    %2409 = vmatpush1.msra.mxu0 0.0
    %2410 = vmatprep.subr.mxu0 0.0
    %2411 = vmatpush1.msra.mxu0 0.0
    %2412 = vmatprep.subr.mxu0 0.0
    %2413 = vmatpush1.msra.mxu0 0.0
    %2414 = vmatprep.subr.mxu0 0.0
    %2415 = vmatpush1.msra.mxu0 0.0
    %2416 = vmatprep.subr.mxu0 0.0
    %2417 = vmatpush1.msra.mxu0 0.0
    %2418 = vmatprep.subr.mxu0 0.0
    %2419 = vmatpush1.msra.mxu0 0.0
    %2420 = vmatprep.subr.mxu0 0.0
    %2421 = vmatpush1.msra.mxu0 0.0
    %2422 = vmatprep.subr.mxu0 0.0
    %2423 = vmatpush1.msra.mxu0 0.0
    %2424 = vmatprep.subr.mxu0 0.0
    %2425 = vmatpush1.msra.mxu0 0.0
    %2426 = vmatprep.subr.mxu0 0.0
    %2427 = vmatpush1.msra.mxu0 0.0
    %2428 = vmatprep.subr.mxu0 0.0
    %2429 = vmatpush1.msra.mxu0 0.0
    %2430 = vmatprep.subr.mxu0 0.0
    %2431 = vmatpush1.msra.mxu0 0.0
    %2432 = vmatprep.subr.mxu0 0.0
    %2433 = vmatpush1.msra.mxu0 0.0
    %2434 = vmatprep.subr.mxu0 0.0
    %2435 = vmatpush1.msra.mxu0 0.0
    %2436 = vmatprep.subr.mxu0 0.0
    %2437 = vmatpush1.msra.mxu0 0.0
    %2438 = vmatprep.subr.mxu0 0.0
    %2439 = vmatpush1.msra.mxu0 0.0
    %2440 = vmatprep.subr.mxu0 0.0
    %2441 = vmatpush1.msra.mxu0 0.0
    %2442 = vmatprep.subr.mxu0 0.0
    %2443 = vmatpush1.msra.mxu0 0.0
    %2444 = vmatprep.subr.mxu0 0.0
    %2445 = vmatpush1.msra.mxu0 0.0
    %2446 = vmatprep.mubr.f32.mxu0 0.0
    %2447 = vmatmul.mubr.f32.gmra.mrb[0].mxu0 %v2372
    %v2448 = vpop.f32.mrb[0].mxu0
    %v2449 = vadd.f32 %v2362, %v2448
    %v2450 = vpop.f32.mrb[0].mxu0
    %v2451 = vadd.f32 %v2362, %v2450
    %2452 = vmatprep.mubr.f32.mxu0 0.0
    %2453 = vmatmul.mubr.f32.gmra.mrb[0].mxu0 %v2374
    %v2454 = vpop.f32.mrb[0].mxu0
    %v2455 = vadd.f32 %v2366, %v2454
    %v2456 = vpop.f32.mrb[0].mxu0
    %v2457 = vadd.f32 %v2366, %v2456
    %2458 = vdwg.mxu0
    %v2459 = vadd.f32 %v2449, %v2451
    %2460 = vadd.xlane.f32.xlu0 %v2459
    %v2461 = vpop.xlane.xlu0 %2460
    %v2462 = vsel %vm181, %v2455, 0.0
    %v2463 = vsel %vm181, %v2457, 0.0
    %v2464 = vadd.f32 %v2462, %v2463
    %2465 = vadd.xlane.f32.xlu0 %v2464
    %v2466 = vpop.xlane.xlu0 %2465
    %v2467 = vmul.f32 %v2461, %v187
    %v2468 = vmul.f32 %v2466, %v187
    %v2469 = vmul.f32 %v2449, %v2449
    %v2470 = vmul.f32 %v2451, %v2451
    %v2471 = vmul.f32 %v2455, %v2455
    %v2472 = vmul.f32 %v2457, %v2457
    %v2473 = vadd.f32 %v2469, %v2470
    %2474 = vadd.xlane.f32.xlu0 %v2473
    %v2475 = vpop.xlane.xlu0 %2474
    %v2476 = vsel %vm181, %v2471, 0.0
    %v2477 = vsel %vm181, %v2472, 0.0
    %v2478 = vadd.f32 %v2476, %v2477
    %2479 = vadd.xlane.f32.xlu0 %v2478
    %v2480 = vpop.xlane.xlu0 %2479
    %v2481 = vmul.f32 %v2475, %v187
    %v2482 = vmul.f32 %v2480, %v187
    %v2483 = vmul.f32 %v2467, %v2467
    %v2484 = vmul.f32 %v2468, %v2468
    %v2485 = vsub.f32 %v2481, %v2483
    %v2486 = vsub.f32 %v2482, %v2484
    %v2487 = vmax.f32 %v2485, 0.0
    %v2488 = vmax.f32 %v2486, 0.0
    %v2489 = vsub.f32 %v2449, %v2467
    %v2490 = vsub.f32 %v2451, %v2467
    %v2491 = vsub.f32 %v2455, %v2468
    %v2492 = vsub.f32 %v2457, %v2468
    %v2493 = vadd.f32 %v2487, 1e-05
    %v2494 = vadd.f32 %v2488, 1e-05
    %v2495 = vrsqrt.pop %v2493
    %v2496 = vrsqrt.pop %v2494
    %v2497 = vmul.f32 %v2489, %v2495
    %v2498 = vmul.f32 %v2490, %v2495
    %v2499 = vmul.f32 %v2491, %v2496
    %v2500 = vmul.f32 %v2492, %v2496
    %v2501 = vmax.f32 %v2497, 0.0
    %v2502 = vmax.f32 %v2498, 0.0
    %v2503 = vmax.f32 %v2499, 0.0
    %v2504 = vmax.f32 %v2500, 0.0
    %2505 = vset.pattern.permute.xlu0 34
    %2506 = vperm.xlu0 %2505, %v2212
    %v2507 = vpop.permute.xlu0 %2506
    %2509 = vrot.lane.b32.xlu0 %v2212, 110
    %v2510 = vpop.permute.xlu0 %2509
    %v2511 = vsel %vm238, %v2510, 0
    %v2514 = vsel %vm181, %v2503, 0
    %v2517 = vsel %vm181, %v2504, 0
    %2519 = vmatprep.subr.mxu0 %v2502
    %2520 = vmatpush1.msra.mxu0 %v2501
    %2521 = vmatprep.subr.mxu0 %v2517
    %2522 = vmatpush1.msra.mxu0 %v2514
    %2523 = vmatprep.subr.mxu0 0.0
    %2524 = vmatpush1.msra.mxu0 0.0
    %2525 = vmatprep.subr.mxu0 0.0
    %2526 = vmatpush1.msra.mxu0 0.0
    %2527 = vmatprep.subr.mxu0 0.0
    %2528 = vmatpush1.msra.mxu0 0.0
    %2529 = vmatprep.subr.mxu0 0.0
    %2530 = vmatpush1.msra.mxu0 0.0
    %2531 = vmatprep.subr.mxu0 0.0
    %2532 = vmatpush1.msra.mxu0 0.0
    %2533 = vmatprep.subr.mxu0 0.0
    %2534 = vmatpush1.msra.mxu0 0.0
    %2535 = vmatprep.subr.mxu0 0.0
    %2536 = vmatpush1.msra.mxu0 0.0
    %2537 = vmatprep.subr.mxu0 0.0
    %2538 = vmatpush1.msra.mxu0 0.0
    %2539 = vmatprep.subr.mxu0 0.0
    %2540 = vmatpush1.msra.mxu0 0.0
    %2541 = vmatprep.subr.mxu0 0.0
    %2542 = vmatpush1.msra.mxu0 0.0
    %2543 = vmatprep.subr.mxu0 0.0
    %2544 = vmatpush1.msra.mxu0 0.0
    %2545 = vmatprep.subr.mxu0 0.0
    %2546 = vmatpush1.msra.mxu0 0.0
    %2547 = vmatprep.subr.mxu0 0.0
    %2548 = vmatpush1.msra.mxu0 0.0
    %2549 = vmatprep.subr.mxu0 0.0
    %2550 = vmatpush1.msra.mxu0 0.0
    %2551 = vmatprep.subr.mxu0 0.0
    %2552 = vmatpush1.msra.mxu0 0.0
    %2553 = vmatprep.subr.mxu0 0.0
    %2554 = vmatpush1.msra.mxu0 0.0
    %2555 = vmatprep.subr.mxu0 0.0
    %2556 = vmatpush1.msra.mxu0 0.0
    %2557 = vmatprep.subr.mxu0 0.0
    %2558 = vmatpush1.msra.mxu0 0.0
    %2559 = vmatprep.subr.mxu0 0.0
    %2560 = vmatpush1.msra.mxu0 0.0
    %2561 = vmatprep.subr.mxu0 0.0
    %2562 = vmatpush1.msra.mxu0 0.0
    %2563 = vmatprep.subr.mxu0 0.0
    %2564 = vmatpush1.msra.mxu0 0.0
    %2565 = vmatprep.subr.mxu0 0.0
    %2566 = vmatpush1.msra.mxu0 0.0
    %2567 = vmatprep.subr.mxu0 0.0
    %2568 = vmatpush1.msra.mxu0 0.0
    %2569 = vmatprep.subr.mxu0 0.0
    %2570 = vmatpush1.msra.mxu0 0.0
    %2571 = vmatprep.subr.mxu0 0.0
    %2572 = vmatpush1.msra.mxu0 0.0
    %2573 = vmatprep.subr.mxu0 0.0
    %2574 = vmatpush1.msra.mxu0 0.0
    %2575 = vmatprep.subr.mxu0 0.0
    %2576 = vmatpush1.msra.mxu0 0.0
    %2577 = vmatprep.subr.mxu0 0.0
    %2578 = vmatpush1.msra.mxu0 0.0
    %2579 = vmatprep.subr.mxu0 0.0
    %2580 = vmatpush1.msra.mxu0 0.0
    %2581 = vmatprep.subr.mxu0 0.0
    %2582 = vmatpush1.msra.mxu0 0.0
    %2583 = vmatprep.mubr.f32.mxu0 0.0
    %2584 = vmatmul.mubr.f32.gmra.mrb[0].mxu0 %v2511
    %v2585 = vpop.f32.mrb[0].mxu0
    %v2586 = vadd.f32 %v2507, %v2585
    %v2587 = vpop.f32.mrb[0].mxu0
    %v2588 = vadd.f32 %v2507, %v2587
    %2589 = vdwg.mxu0
    %s2590 = scalar_lea.vmem [#allocation7], 32
    %v2591 = vld [vmem:[%s2590] sm:$0xff]
    %v2592 = vstv %s2215
    %v2593 = vmul.f32 %v2592, %v2591
    %v2594 = vmul.f32 %v2586, %v2586
    %v2595 = vmul.f32 %v2588, %v2588
    %v2596 = vsel %vm96, %v2594, 0.0
    %v2597 = vrot.slane %v2596, 4
    %v2598 = vadd.f32 %v2596, %v2597
    %v2599 = vrot.slane %v2598, 2
    %v2600 = vadd.f32 %v2598, %v2599
    %v2601 = vrot.slane %v2600, 1
    %v2602 = vadd.f32 %v2600, %v2601
    %v2603 = vsel %vm96, %v2595, 0.0
    %v2604 = vrot.slane %v2603, 4
    %v2605 = vadd.f32 %v2603, %v2604
    %v2606 = vrot.slane %v2605, 2
    %v2607 = vadd.f32 %v2605, %v2606
    %v2608 = vrot.slane %v2607, 1
    %v2609 = vadd.f32 %v2607, %v2608
    %v2610 = vstv %s2214
    %v2611 = vmul.f32 %v2610, %v2602
    %v2612 = vmul.f32 %v2610, %v2609
    %v2614 = vcombine.high %v2593, %v2593
    %v2616 = vmul.f32 %v2586, %v2593
    %v2617 = vmul.f32 %v2588, %v2614
    %v2618 = vsel %vm96, %v2616, 0.0
    %v2619 = vrot.slane %v2618, 4
    %v2620 = vadd.f32 %v2618, %v2619
    %v2621 = vrot.slane %v2620, 2
    %v2622 = vadd.f32 %v2620, %v2621
    %v2623 = vrot.slane %v2622, 1
    %v2624 = vadd.f32 %v2622, %v2623
    %v2625 = vsel %vm96, %v2617, 0.0
    %v2626 = vrot.slane %v2625, 4
    %v2627 = vadd.f32 %v2625, %v2626
    %v2628 = vrot.slane %v2627, 2
    %v2629 = vadd.f32 %v2627, %v2628
    %v2630 = vrot.slane %v2629, 1
    %v2631 = vadd.f32 %v2629, %v2630
    %v2632 = vsub.f32 %v2200, %v2611
    %v2633 = vsub.f32 %v2201, %v2612
    %v2634 = vadd.f32 %v2632, %v2624
    %v2635 = vadd.f32 %v2633, %v2631
    %v2636 = vstv %s2216
    %v2637 = vmul.f32 %v2636, %v2586
    %v2638 = vmul.f32 %v2636, %v2588
    %v2641 = vcombine.low %v2637, %v2638
    %v2643 = vsub.f32 %v2210, %v2641
    %v2644 = vadd.f32 %v2643, %v2593
    %v2647 = vcombine.low %v2634, %v2635
    %v2649 = vunpack.c.l.s4 1966171168
    %v2650 = vunpack.c.0.s8 %v2649
    %v2651 = vlaneseq
    %v2652 = vshrl.u32 %v2651, 7
    %v2653 = vsub.s32 %v2650, %v2652
    %v2654 = vrot.slane %v2647, %v2653
    %v2656 = vunpack.c.l.s4 1966171168
    %v2657 = vunpack.c.0.s8 %v2656
    %v2658 = vlaneseq
    %v2659 = vshrl.u32 %v2658, 7
    %v2660 = vsub.s32 %v2657, %v2659
    %v2661 = vrot.slane %v2654, %v2660
    %v2663 = vlaneseq
    %vm2664 = vcmp.ge.s32.totalorder %v2663, 0
    %vm2665 = vcmp.lt.s32.totalorder %v2663, 256
    %vm2666 = vmand %vm2664, %vm2665
    %2667 = vst.msk [vmem:[#allocation12] ss:$8 sm:$0x3] %vm2666, %v2661
    %2668 = vst.msk [vmem:[#allocation12] ss:$8 sm:$0x0] %vm2666, %v2661
    %v2670 = vcombine.high %v2644, %v2644
    %v2671 = vrot.slane %v2644, 7
    %v2672 = vrot.slane %v2670, 7
    %2675 = vst [vmem:[#allocation12] sm:$0x1e] %v2671
    %2676 = vst [vmem:[#allocation12 + $0x8] sm:$0x1e] %v2672
    // Predicated region
    $region34: #{tpu_custom_call.1} parent=1 // pred_check
      _
    $region35: #{tpu_custom_call.1} parent=1 // pred_check_branch
      %2678 = sbr.rel (0) target = $region37
    $region36: #{tpu_custom_call.1} parent=1 // pred_region
      %s2680 = ssub.s32 256, 256
      %2681 = vsyncadd [#allocation6], %s2680
      %s2683 = sshll.u32 [#allocation12], 4
      %s2684 = int_to_ptr.vmem [resolvable:$true] %s2683
      %2686 = dma.vmem_to_hbm [thread:$0]  %s2684, 256, %s5, [#allocation6]
    $region37: #{tpu_custom_call.1} parent=1 // pred_fallthru
      _
    // Predicated region
    $region38: #{tpu_custom_call.1} parent=1 // pred_check
      _
    $region39: #{tpu_custom_call.1} parent=1 // pred_check_branch
      %2688 = sbr.rel (0) target = $region41
    $region40: #{tpu_custom_call.1} parent=1 // pred_region
      %2689 = dma.done [#allocation6], 256
    $region41: #{tpu_custom_call.1} parent=1 // pred_fallthru
      _
    %2690 = vsyncpa [#allocation5], 1
    %2691 = vsyncpa [#allocation8], 1
    %2692 = vsyncpa [#allocation11], 1
    %2693 = vsyncpa [#allocation6], 1

</llo_original>
